<compile_context>
chip_gen: v5e
topology: v5e:2x2
jax: 0.10.0
libtpu: 0.0.40
codegen_flags: <defaults>
</compile_context>

<pallas_src>
import functools

import jax
import jax.numpy as jnp
from jax.experimental import pallas as pl
from jax.experimental.pallas import tpu as pltpu

# ----------------------- model dimensions (scaled-down) -----------------------
C1, C2, C3, C4 = 16, 32, 64, 128          # stand-ins for 256/512/1024/2048
P_FEATS = 64                               # stand-in for 512 prop_feats channels
NUM_CLASSES = 4                            # len(lbls)+1
NUM_ANCHORS = 8
NUM_BBOX_HEADS = 11                        # x,y,w,h, x3d,y3d,z3d,w3d,h3d,l3d,rY3d
NUM_GROUPS = NUM_CLASSES + NUM_BBOX_HEADS  # 15 per-anchor output groups
HEAD_COUT = NUM_GROUPS * NUM_ANCHORS       # 120 real head channels
HEAD_COUT_PAD = 128                        # padded to 128 for lane-dense stores
STEM_CIN = 8                               # real cin=3 padded to 8 for the MXU

_VMEM_LIMIT = 48 * 1024 * 1024             # explicit scoped-VMEM limit; leaves
                                           # headroom under v7x's 64 MiB physical.


# ------------------------------- Pallas kernels -------------------------------
def _dual_dense_kernel(x_ref, d_ref, w_ref, b_ref, ox_ref, od_ref):
    # One grid step computes BOTH backbone branches (base + depth) for a row
    # tile: two bf16 MXU matmuls, f32 accumulation, ReLU, bf16 store.
    x = x_ref[...].astype(jnp.bfloat16)
    d = d_ref[...].astype(jnp.bfloat16)
    yb = jnp.dot(x, w_ref[0], preferred_element_type=jnp.float32) + b_ref[0]
    yd = jnp.dot(d, w_ref[1], preferred_element_type=jnp.float32) + b_ref[1]
    ox_ref[...] = jnp.maximum(yb, 0.0).astype(ox_ref.dtype)
    od_ref[...] = jnp.maximum(yd, 0.0).astype(od_ref.dtype)


def _dense_kernel(x_ref, w_ref, b_ref, o_ref, *, activation):
    x = x_ref[...].astype(jnp.bfloat16)
    y = jnp.dot(x, w_ref[...], preferred_element_type=jnp.float32) + b_ref[...]
    if activation == "relu":
        y = jnp.maximum(y, 0.0)
    o_ref[...] = y.astype(o_ref.dtype)


def _dense_premul_kernel(x_ref, m_ref, w_ref, b_ref, o_ref, *, activation):
    # Fused `x * depth` (f32 on the VPU after upcast-on-load) feeding the MXU.
    x = (x_ref[...].astype(jnp.float32) * m_ref[...].astype(jnp.float32))
    y = jnp.dot(x.astype(jnp.bfloat16), w_ref[...],
                preferred_element_type=jnp.float32) + b_ref[...]
    if activation == "relu":
        y = jnp.maximum(y, 0.0)
    o_ref[...] = y.astype(o_ref.dtype)


def _dlf_fused_kernel(x_ref, pd_ref, r_ref, o_ref, *, h, w, c, pad):
    # Fused dynamic_local_filtering(d=1)+(d=2)+(d=3) for one batch element.
    # Channel roll-sum (x + roll1 + roll2) is a 0/1 roll-matrix matmul on the
    # MXU — no concat copies, no VALU lane shuffles.
    # TODO(synk): when C is a multiple of 128, use pltpu.roll(axis=-1) instead.
    x2 = x_ref[0].reshape(h * w, c)                            # bf16, layout-free (w==8)
    xsum = jnp.dot(x2, r_ref[...], preferred_element_type=jnp.float32)  # (h*w, c) f32

    pd = pd_ref[0].astype(jnp.float32)                         # (h+2p, w+2p, c) f32
    # shared center tap (appears once per dilation) + factored diagonal taps:
    # rowsum_d = pd[y-d] + pd[y+d]  (H shifts are leading-dim slices — cheap),
    # then only 2 W-shifted slices of rowsum_d per dilation (6 total, was 12).
    filt = 3.0 * pd[pad:pad + h, pad:pad + w, :]
    for d in (1, 2, 3):
        rows = pd[pad - d:pad - d + h, :, :] + pd[pad + d:pad + d + h, :, :]
        filt = filt + rows[:, pad - d:pad - d + w, :] + rows[:, pad + d:pad + d + w, :]

    out = xsum * filt.reshape(h * w, c) * (1.0 / 27.0)          # (x+y+z)*filt / 27
    o_ref[...] = out.reshape(1, h * w, c).astype(o_ref.dtype)


def _prop_head_kernel(x_ref, d_ref, wc_ref, bc_ref, wh_ref, bh_ref, o_ref,
                      *, h, w, cin, cmid, cout):
    # Fused: (x * depth) -> in-VMEM zero pad -> 3x3 conv (+bias, ReLU) -> all
    # 1x1 heads as one lane-dense 128-wide matmul.  prop_feats never hits HBM.
    prod = x_ref[0].astype(jnp.float32) * d_ref[0].astype(jnp.float32)  # (h, w, cin)
    # pad=1 zero border built in VMEM (no XLA jnp.pad HBM round trip).
    zc = jnp.zeros((h, 1, cin), jnp.float32)
    zr = jnp.zeros((1, w + 2, cin), jnp.float32)
    padded = jnp.concatenate([zc, prod, zc], axis=1)            # (h, w+2, cin)
    padded = jnp.concatenate([zr, padded, zr], axis=0)          # (h+2, w+2, cin)
    padded = padded.astype(jnp.bfloat16)

    wc = wc_ref[...]                                            # (3, 3, cin, cmid) bf16
    acc = jnp.zeros((h * w, cmid), jnp.float32)                 # LOCAL accumulator
    for kx in range(3):
        # one flattened slab per kx (3 layout copies total instead of 9)
        slab = padded[:, kx:kx + w, :].reshape((h + 2) * w, cin)
        for ky in range(3):
            patch = slab[ky * w:(ky + h) * w, :]                # cheap row-offset slice
            acc = acc + jnp.dot(patch, wc[ky, kx],
                                preferred_element_type=jnp.float32)
    prop = jnp.maximum(acc + bc_ref[...], 0.0)                  # ReLU(prop_feats)
    head = jnp.dot(prop.astype(jnp.bfloat16), wh_ref[...],
                   preferred_element_type=jnp.float32) + bh_ref[...]
    o_ref[...] = head.reshape(1, h * w, cout).astype(o_ref.dtype)


# ------------------------------- Pallas wrappers -------------------------------
def _row_tile(rows, max_tile=512, min_steps=2):
    """Largest multiple-of-8 divisor of `rows` that is <= max_tile and yields at
    least `min_steps` grid steps (so both v7x TensorCores get work and the DMA
    pipeline has >=2 stages)."""
    cap = min(max_tile, max(8, rows // min_steps))
    best = None
    for t in range(8, cap + 1, 8):
        if rows % t == 0:
            best = t
    return best if best is not None else rows


def _pad_rows(a, rows_p):
    rows = a.shape[0]
    if rows_p == rows:
        return a
    return jnp.pad(a, ((0, rows_p - rows), (0, 0)))


def dual_dense(x2d, d2d, w2, b2):
    """One pallas_call computing ReLU(x @ Wb + bb) and ReLU(d @ Wd + bd)."""
    rows, cin = x2d.shape
    cout = w2.shape[-1]
    rows_p = ((rows + 7) // 8) * 8
    x2d = _pad_rows(x2d, rows_p)
    d2d = _pad_rows(d2d, rows_p)
    tr = _row_tile(rows_p)
    nblk = rows_p // tr
    yb, yd = pl.pallas_call(
        _dual_dense_kernel,
        out_shape=(jax.ShapeDtypeStruct((rows_p, cout), jnp.bfloat16),
                   jax.ShapeDtypeStruct((rows_p, cout), jnp.bfloat16)),
        grid_spec=pltpu.PrefetchScalarGridSpec(
            num_scalar_prefetch=0, grid=(nblk,),
            in_specs=[pl.BlockSpec((tr, cin), lambda i: (i, 0)),
                      pl.BlockSpec((tr, cin), lambda i: (i, 0)),
                      # TODO(synk): at real widths use pipeline_mode=pl.Buffered(1)
                      # on these grid-invariant weight/bias specs.
                      pl.BlockSpec((2, cin, cout), lambda i: (0, 0, 0)),
                      pl.BlockSpec((2, 1, cout), lambda i: (0, 0, 0))],
            out_specs=[pl.BlockSpec((tr, cout), lambda i: (i, 0)),
                       pl.BlockSpec((tr, cout), lambda i: (i, 0))]),
        compiler_params=pltpu.CompilerParams(
            dimension_semantics=("parallel",), vmem_limit_bytes=_VMEM_LIMIT),
    )(x2d, d2d, w2, b2)
    return yb[:rows], yd[:rows]


def dense(x2d, w, b, activation="none", premul=None):
    rows, cin = x2d.shape
    cout = w.shape[1]
    rows_p = ((rows + 7) // 8) * 8
    x2d = _pad_rows(x2d, rows_p)
    tr = _row_tile(rows_p)
    b2 = b.reshape(1, cout)
    if premul is None:
        kernel = functools.partial(_dense_kernel, activation=activation)
        in_specs = [pl.BlockSpec((tr, cin), lambda i: (i, 0)),
                    pl.BlockSpec((cin, cout), lambda i: (0, 0)),
                    pl.BlockSpec((1, cout), lambda i: (0, 0))]
        args = (x2d, w, b2)
    else:
        premul = _pad_rows(premul, rows_p)
        kernel = functools.partial(_dense_premul_kernel, activation=activation)
        in_specs = [pl.BlockSpec((tr, cin), lambda i: (i, 0)),
                    pl.BlockSpec((tr, cin), lambda i: (i, 0)),
                    pl.BlockSpec((cin, cout), lambda i: (0, 0)),
                    pl.BlockSpec((1, cout), lambda i: (0, 0))]
        args = (x2d, premul, w, b2)
    y = pl.pallas_call(
        kernel,
        out_shape=jax.ShapeDtypeStruct((rows_p, cout), jnp.bfloat16),
        grid_spec=pltpu.PrefetchScalarGridSpec(
            num_scalar_prefetch=0, grid=(rows_p // tr,),
            in_specs=in_specs,
            out_specs=pl.BlockSpec((tr, cout), lambda i: (i, 0))),
        compiler_params=pltpu.CompilerParams(
            dimension_semantics=("parallel",), vmem_limit_bytes=_VMEM_LIMIT),
    )(*args)
    return y[:rows]


def dlf_sum_123(x_nhwc, depth_nhwc):
    """Sum of dynamic_local_filtering(x, depth, d) for d in {1,2,3} — one kernel."""
    n, h, w, c = x_nhwc.shape
    pad = 3
    # TODO(synk): fold the reflect pad into in-kernel index math; only depth is
    # padded (never x), per the original module.
    pd = jnp.pad(depth_nhwc, ((0, 0), (pad, pad), (pad, pad), (0, 0)),
                 mode="reflect")
    # 0/1 roll matrix: column j sums channels {j, j-1, j-2} (mod c).
    idx = jnp.arange(c)
    roll_mat = (((idx[None, :] - idx[:, None]) % c) < 3).astype(jnp.bfloat16)
    out = pl.pallas_call(
        functools.partial(_dlf_fused_kernel, h=h, w=w, c=c, pad=pad),
        out_shape=jax.ShapeDtypeStruct((n, h * w, c), jnp.bfloat16),
        grid_spec=pltpu.PrefetchScalarGridSpec(
            num_scalar_prefetch=0, grid=(n,),
            in_specs=[pl.BlockSpec((1, h, w, c), lambda b: (b, 0, 0, 0)),
                      pl.BlockSpec((1, h + 2 * pad, w + 2 * pad, c),
                                   lambda b: (b, 0, 0, 0)),
                      pl.BlockSpec((c, c), lambda b: (0, 0))],
            out_specs=pl.BlockSpec((1, h * w, c), lambda b: (b, 0, 0))),
        compiler_params=pltpu.CompilerParams(
            dimension_semantics=("parallel",), vmem_limit_bytes=_VMEM_LIMIT),
    )(x_nhwc, pd, roll_mat)
    return out.reshape(n, h, w, c)


def prop_and_head(x_nhwc, dep_nhwc, wc, bc, wh, bh):
    """(x * depth) -> 3x3 conv + ReLU (prop_feats) -> fused 1x1 heads (128-wide)."""
    n, h, wd, cin = x_nhwc.shape
    cmid = wc.shape[-1]
    cout = wh.shape[-1]
    return pl.pallas_call(
        functools.partial(_prop_head_kernel, h=h, w=wd, cin=cin, cmid=cmid,
                          cout=cout),
        out_shape=jax.ShapeDtypeStruct((n, h * wd, cout), jnp.float32),
        grid_spec=pltpu.PrefetchScalarGridSpec(
            num_scalar_prefetch=0, grid=(n,),
            in_specs=[pl.BlockSpec((1, h, wd, cin), lambda i: (i, 0, 0, 0)),
                      pl.BlockSpec((1, h, wd, cin), lambda i: (i, 0, 0, 0)),
                      pl.BlockSpec((3, 3, cin, cmid), lambda i: (0, 0, 0, 0)),
                      pl.BlockSpec((1, cmid), lambda i: (0, 0)),
                      pl.BlockSpec((cmid, cout), lambda i: (0, 0)),
                      pl.BlockSpec((1, cout), lambda i: (0, 0))],
            out_specs=pl.BlockSpec((1, h * wd, cout), lambda i: (i, 0, 0))),
        compiler_params=pltpu.CompilerParams(
            dimension_semantics=("parallel",), vmem_limit_bytes=_VMEM_LIMIT),
    )(x_nhwc, dep_nhwc, wc, bc.reshape(1, cmid), wh, bh.reshape(1, cout))


# ------------------------------- parameters -----------------------------------
def init_params(key):
    def lin(k, cin, cout):
        k1, k2 = jax.random.split(k)
        w = jax.random.normal(k1, (cin, cout), jnp.float32) / jnp.sqrt(float(cin))
        b = 0.01 * jax.random.normal(k2, (cout,), jnp.float32)
        return w, b

    keys = iter(jax.random.split(key, 16))
    p = {}
    for name, cin, cout in [("stem", STEM_CIN, C1), ("l1", C1, C1),
                            ("l2", C1, C2), ("l3", C2, C3)]:
        wb_, bb_ = lin(next(keys), cin, cout)
        wd_, bd_ = lin(next(keys), cin, cout)
        if name == "stem":
            wb_ = wb_.at[3:].set(0.0)          # real cin is 3; padded rows carry 0
            wd_ = wd_.at[3:].set(0.0)
        p[name] = (jnp.stack([wb_, wd_], axis=0).astype(jnp.bfloat16),
                   jnp.stack([bb_, bd_], axis=0).reshape(2, 1, cout))
    for name in ("base_l4", "depth_l4"):
        w_, b_ = lin(next(keys), C3, C4)
        p[name] = (w_.astype(jnp.bfloat16), b_)

    kw, kb = jax.random.split(next(keys))
    wc = jax.random.normal(kw, (3, 3, C4, P_FEATS), jnp.float32) / jnp.sqrt(9.0 * C4)
    bc = 0.01 * jax.random.normal(kb, (P_FEATS,), jnp.float32)
    p["prop"] = (wc.astype(jnp.bfloat16), bc)

    kw2, kb2 = jax.random.split(next(keys))
    wh = jax.random.normal(kw2, (P_FEATS, HEAD_COUT_PAD), jnp.float32) / jnp.sqrt(float(P_FEATS))
    bh = 0.01 * jax.random.normal(kb2, (HEAD_COUT_PAD,), jnp.float32)
    wh = wh.at[:, HEAD_COUT:].set(0.0)         # padded lanes 120..127 carry 0
    bh = bh.at[HEAD_COUT:].set(0.0)
    p["head"] = (wh.astype(jnp.bfloat16), bh)
    return p


# ------------------------------- forward --------------------------------------
def _dual_stage(x_nhwc, d_nhwc, wb_stacked, stride):
    # Stand-in for a ResNet stage applied to BOTH branches in one pallas_call:
    # stride subsample + 1x1 conv + ReLU.
    w2, b2 = wb_stacked
    if stride > 1:
        x_nhwc = x_nhwc[:, ::stride, ::stride, :]
        d_nhwc = d_nhwc[:, ::stride, ::stride, :]
    n, h, wd, c = x_nhwc.shape
    cout = int(w2.shape[-1])
    yb, yd = dual_dense(x_nhwc.reshape(n * h * wd, c),
                        d_nhwc.reshape(n * h * wd, c), w2, b2)
    return yb.reshape(n, h, wd, cout), yd.reshape(n, h, wd, cout)


def _stage(x_nhwc, wb, stride=1, premul=None):
    w, b = wb
    if stride > 1:
        x_nhwc = x_nhwc[:, ::stride, ::stride, :]
        if premul is not None:
            premul = premul[:, ::stride, ::stride, :]
    n, h, wd, c = x_nhwc.shape
    m2 = None if premul is None else premul.reshape(n * h * wd, c)
    y = dense(x_nhwc.reshape(n * h * wd, c), w, b, activation="relu", premul=m2)
    return y.reshape(n, h, wd, int(w.shape[1]))


def rpn_forward(params, x_nchw, depth_nchw):
    batch = x_nchw.shape[0]
    x = jnp.transpose(x_nchw, (0, 2, 3, 1))                            # NHWC
    dep = jnp.transpose(depth_nchw, (0, 2, 3, 1))
    # pad input channels 3 -> 8 (zero rows in the stem weight match); bf16 from
    # here on — matmul operands are bf16, elementwise kernels upcast to f32.
    x = jnp.pad(x, ((0, 0), (0, 0), (0, 0), (0, STEM_CIN - x.shape[-1]))).astype(jnp.bfloat16)
    dep = jnp.pad(dep, ((0, 0), (0, 0), (0, 0), (0, STEM_CIN - dep.shape[-1]))).astype(jnp.bfloat16)

    # backbone: each stage runs both branches fused in ONE pallas_call.
    x, dep = _dual_stage(x, dep, params["stem"], 4)   # conv1/bn1/relu/maxpool stand-in
    x, dep = _dual_stage(x, dep, params["l1"], 1)
    x, dep = _dual_stage(x, dep, params["l2"], 2)

    # non-adaptive dilated branch: three DLF passes fused into one kernel.
    x = dlf_sum_123(x, dep)

    x, dep = _dual_stage(x, dep, params["l3"], 2)
    # x = x * dep fused into the layer-4 matmul prologue.
    x = _stage(x, params["base_l4"], 1, premul=dep)
    dep = _stage(dep, params["depth_l4"], 1)

    # x = x * dep fused into prop_feats (3x3 conv + ReLU), whose epilogue runs
    # all 1x1 heads as one lane-dense (128-wide) matmul; output stays flat.
    head = prop_and_head(x, dep, *params["prop"], *params["head"])      # (B,H*W,128)
    feat_h, feat_w = x.shape[1], x.shape[2]

    # Single permute into the final (B, A*H*W, groups) layout; groups =
    # [cls_0..cls_3, x, y, w, h, x3d, y3d, z3d, w3d, h3d, l3d, rY3d].
    core = head[:, :, :HEAD_COUT].reshape(
        batch, feat_h, feat_w, NUM_GROUPS, NUM_ANCHORS)
    core = jnp.transpose(core, (0, 4, 1, 2, 3)).reshape(
        batch, NUM_ANCHORS * feat_h * feat_w, NUM_GROUPS)
    cls_out = core[..., :NUM_CLASSES]
    bbox_2d = core[..., NUM_CLASSES:NUM_CLASSES + 4]
    bbox_3d = core[..., NUM_CLASSES + 4:]
    # tiny (B, A*H*W, 4) tensor: plain XLA softmax beats a masked-lane Pallas kernel
    prob = jax.nn.softmax(cls_out, axis=-1)

    feat_size = jnp.array([feat_h, feat_w], dtype=jnp.int32)
    # training path, use_corner / corner_in_3d disabled
    return cls_out, prob, bbox_2d, bbox_3d, feat_size


# --------------------------------- main ----------------------------------------
if __name__ == "__main__":
    key = jax.random.PRNGKey(0)
    kp, kx, kd = jax.random.split(key, 3)
    params = init_params(kp)
    x = jax.random.normal(kx, (2, 3, 64, 64), jnp.float32)      # NCHW image
    depth = jax.random.normal(kd, (2, 3, 64, 64), jnp.float32)  # NCHW depth map

    outs = jax.jit(rpn_forward)(params, x, depth)
    outs = jax.block_until_ready(outs)

    cls_o, prob_o, b2d, b3d, fs = outs
    assert cls_o.shape == (2, NUM_ANCHORS * 4 * 4, NUM_CLASSES)
    assert prob_o.shape == cls_o.shape
    assert b2d.shape == (2, NUM_ANCHORS * 4 * 4, 4)
    assert b3d.shape == (2, NUM_ANCHORS * 4 * 4, 7)
    assert bool(jnp.all(jnp.isfinite(prob_o)))
    print("KERNEL_OK")
</pallas_src>

<mosaic_0001>
module attributes {stable_mosaic.version = 11 : i64} {
  func.func @_dual_dense_kernel(%arg0: i32, %arg1: memref<256x8xbf16, #tpu.memory_space<vmem>>, %arg2: memref<256x8xbf16, #tpu.memory_space<vmem>>, %arg3: memref<2x8x16xbf16, #tpu.memory_space<vmem>>, %arg4: memref<2x1x16xf32, #tpu.memory_space<vmem>>, %arg5: memref<256x16xbf16, #tpu.memory_space<vmem>>, %arg6: memref<256x16xbf16, #tpu.memory_space<vmem>>) attributes {dimension_semantics = [#tpu.dimension_semantics<parallel>], iteration_bounds = array<i64: 2>, scalar_prefetch = 0 : i64, scratch_operands = 0 : i64, tpu.core_type = #tpu.core_type<tc>, window_params = [{transform_indices = @transform_0, window_bounds = array<i64: 256, 8>}, {transform_indices = @transform_1, window_bounds = array<i64: 256, 8>}, {pipeline_mode = #tpu.pipeline_mode<synchronous>, transform_indices = @transform_2, window_bounds = array<i64: 2, 8, 16>}, {pipeline_mode = #tpu.pipeline_mode<synchronous>, transform_indices = @transform_3, window_bounds = array<i64: 2, 1, 16>}, {transform_indices = @transform_4, window_bounds = array<i64: 256, 16>}, {transform_indices = @transform_5, window_bounds = array<i64: 256, 16>}]} {
    %c0 = arith.constant 0 : index
    %c0_0 = arith.constant 0 : index
    %0 = vector.load %arg1[%c0, %c0_0] : memref<256x8xbf16, #tpu.memory_space<vmem>>, vector<256x8xbf16>
    %c0_1 = arith.constant 0 : index
    %c0_2 = arith.constant 0 : index
    %1 = vector.load %arg2[%c0_1, %c0_2] : memref<256x8xbf16, #tpu.memory_space<vmem>>, vector<256x8xbf16>
    %c0_3 = arith.constant 0 : index
    %c0_4 = arith.constant 0 : index
    %c0_5 = arith.constant 0 : index
    %2 = vector.load %arg3[%c0_3, %c0_4, %c0_5] : memref<2x8x16xbf16, #tpu.memory_space<vmem>>, vector<1x8x16xbf16>
    %3 = vector.shape_cast %2 : vector<1x8x16xbf16> to vector<8x16xbf16>
    %cst = arith.constant dense<0.000000e+00> : vector<256x16xf32>
    %4 = tpu.matmul %0, %3, %cst {dimension_numbers = #tpu.dot_dimension_numbers<[1], [0], [0], [1], [0, 0, 1, 1], [], []>} : vector<256x8xbf16>, vector<8x16xbf16>, vector<256x16xf32> -> vector<256x16xf32>
    %c0_6 = arith.constant 0 : index
    %c0_7 = arith.constant 0 : index
    %c0_8 = arith.constant 0 : index
    %5 = vector.load %arg4[%c0_6, %c0_7, %c0_8] : memref<2x1x16xf32, #tpu.memory_space<vmem>>, vector<1x1x16xf32>
    %6 = vector.shape_cast %5 : vector<1x1x16xf32> to vector<1x16xf32>
    %7 = vector.broadcast %6 : vector<1x16xf32> to vector<256x16xf32>
    %8 = arith.addf %4, %7 : vector<256x16xf32>
    %c1 = arith.constant 1 : index
    %c0_9 = arith.constant 0 : index
    %c0_10 = arith.constant 0 : index
    %9 = vector.load %arg3[%c1, %c0_9, %c0_10] : memref<2x8x16xbf16, #tpu.memory_space<vmem>>, vector<1x8x16xbf16>
    %10 = vector.shape_cast %9 : vector<1x8x16xbf16> to vector<8x16xbf16>
    %cst_11 = arith.constant dense<0.000000e+00> : vector<256x16xf32>
    %11 = tpu.matmul %1, %10, %cst_11 {dimension_numbers = #tpu.dot_dimension_numbers<[1], [0], [0], [1], [0, 0, 1, 1], [], []>} : vector<256x8xbf16>, vector<8x16xbf16>, vector<256x16xf32> -> vector<256x16xf32>
    %c1_12 = arith.constant 1 : index
    %c0_13 = arith.constant 0 : index
    %c0_14 = arith.constant 0 : index
    %12 = vector.load %arg4[%c1_12, %c0_13, %c0_14] : memref<2x1x16xf32, #tpu.memory_space<vmem>>, vector<1x1x16xf32>
    %13 = vector.shape_cast %12 : vector<1x1x16xf32> to vector<1x16xf32>
    %14 = vector.broadcast %13 : vector<1x16xf32> to vector<256x16xf32>
    %15 = arith.addf %11, %14 : vector<256x16xf32>
    %cst_15 = arith.constant 0.000000e+00 : f32
    %16 = vector.broadcast %cst_15 : f32 to vector<256x16xf32>
    %17 = arith.maximumf %8, %16 : vector<256x16xf32>
    %18 = arith.truncf %17 : vector<256x16xf32> to vector<256x16xbf16>
    %c0_16 = arith.constant 0 : index
    %c0_17 = arith.constant 0 : index
    %19 = vector.load %arg5[%c0_16, %c0_17] : memref<256x16xbf16, #tpu.memory_space<vmem>>, vector<256x16xbf16>
    tpu.vector_store %arg5[%c0_16, %c0_17], %18 {strides = array<i32>} : memref<256x16xbf16, #tpu.memory_space<vmem>>, vector<256x16xbf16>,
    %cst_18 = arith.constant 0.000000e+00 : f32
    %20 = vector.broadcast %cst_18 : f32 to vector<256x16xf32>
    %21 = arith.maximumf %15, %20 : vector<256x16xf32>
    %22 = arith.truncf %21 : vector<256x16xf32> to vector<256x16xbf16>
    %c0_19 = arith.constant 0 : index
    %c0_20 = arith.constant 0 : index
    %23 = vector.load %arg6[%c0_19, %c0_20] : memref<256x16xbf16, #tpu.memory_space<vmem>>, vector<256x16xbf16>
    tpu.vector_store %arg6[%c0_19, %c0_20], %22 {strides = array<i32>} : memref<256x16xbf16, #tpu.memory_space<vmem>>, vector<256x16xbf16>,
    return
  }
  func.func @transform_0(%arg0: i32) -> (i32, i32) {
    %c0_i32 = arith.constant 0 : i32
    %c0_i32_0 = arith.constant 0 : i32
    return %arg0, %c0_i32 : i32, i32
  }
  func.func @transform_1(%arg0: i32) -> (i32, i32) {
    %c0_i32 = arith.constant 0 : i32
    %c0_i32_0 = arith.constant 0 : i32
    return %arg0, %c0_i32 : i32, i32
  }
  func.func @transform_2(%arg0: i32) -> (i32, i32, i32) {
    %c0_i32 = arith.constant 0 : i32
    %c0_i32_0 = arith.constant 0 : i32
    %c0_i32_1 = arith.constant 0 : i32
    %c0_i32_2 = arith.constant 0 : i32
    return %c0_i32, %c0_i32_0, %c0_i32_1 : i32, i32, i32
  }
  func.func @transform_3(%arg0: i32) -> (i32, i32, i32) {
    %c0_i32 = arith.constant 0 : i32
    %c0_i32_0 = arith.constant 0 : i32
    %c0_i32_1 = arith.constant 0 : i32
    %c0_i32_2 = arith.constant 0 : i32
    return %c0_i32, %c0_i32_0, %c0_i32_1 : i32, i32, i32
  }
  func.func @transform_4(%arg0: i32) -> (i32, i32) {
    %c0_i32 = arith.constant 0 : i32
    %c0_i32_0 = arith.constant 0 : i32
    return %arg0, %c0_i32 : i32, i32
  }
  func.func @transform_5(%arg0: i32) -> (i32, i32) {
    %c0_i32 = arith.constant 0 : i32
    %c0_i32_0 = arith.constant 0 : i32
    return %arg0, %c0_i32 : i32, i32
  }
}

module attributes {stable_mosaic.version = 11 : i64} {
  func.func @_dual_dense_kernel(%arg0: i32, %arg1: memref<256x16xbf16, #tpu.memory_space<vmem>>, %arg2: memref<256x16xbf16, #tpu.memory_space<vmem>>, %arg3: memref<2x16x16xbf16, #tpu.memory_space<vmem>>, %arg4: memref<2x1x16xf32, #tpu.memory_space<vmem>>, %arg5: memref<256x16xbf16, #tpu.memory_space<vmem>>, %arg6: memref<256x16xbf16, #tpu.memory_space<vmem>>) attributes {dimension_semantics = [#tpu.dimension_semantics<parallel>], iteration_bounds = array<i64: 2>, scalar_prefetch = 0 : i64, scratch_operands = 0 : i64, tpu.core_type = #tpu.core_type<tc>, window_params = [{transform_indices = @transform_0, window_bounds = array<i64: 256, 16>}, {transform_indices = @transform_1, window_bounds = array<i64: 256, 16>}, {pipeline_mode = #tpu.pipeline_mode<synchronous>, transform_indices = @transform_2, window_bounds = array<i64: 2, 16, 16>}, {pipeline_mode = #tpu.pipeline_mode<synchronous>, transform_indices = @transform_3, window_bounds = array<i64: 2, 1, 16>}, {transform_indices = @transform_4, window_bounds = array<i64: 256, 16>}, {transform_indices = @transform_5, window_bounds = array<i64: 256, 16>}]} {
    %c0 = arith.constant 0 : index
    %c0_0 = arith.constant 0 : index
    %0 = vector.load %arg1[%c0, %c0_0] : memref<256x16xbf16, #tpu.memory_space<vmem>>, vector<256x16xbf16>
    %c0_1 = arith.constant 0 : index
    %c0_2 = arith.constant 0 : index
    %1 = vector.load %arg2[%c0_1, %c0_2] : memref<256x16xbf16, #tpu.memory_space<vmem>>, vector<256x16xbf16>
    %c0_3 = arith.constant 0 : index
    %c0_4 = arith.constant 0 : index
    %c0_5 = arith.constant 0 : index
    %2 = vector.load %arg3[%c0_3, %c0_4, %c0_5] : memref<2x16x16xbf16, #tpu.memory_space<vmem>>, vector<1x16x16xbf16>
    %3 = vector.shape_cast %2 : vector<1x16x16xbf16> to vector<16x16xbf16>
    %cst = arith.constant dense<0.000000e+00> : vector<256x16xf32>
    %4 = tpu.matmul %0, %3, %cst {dimension_numbers = #tpu.dot_dimension_numbers<[1], [0], [0], [1], [0, 0, 1, 1], [], []>} : vector<256x16xbf16>, vector<16x16xbf16>, vector<256x16xf32> -> vector<256x16xf32>
    %c0_6 = arith.constant 0 : index
    %c0_7 = arith.constant 0 : index
    %c0_8 = arith.constant 0 : index
    %5 = vector.load %arg4[%c0_6, %c0_7, %c0_8] : memref<2x1x16xf32, #tpu.memory_space<vmem>>, vector<1x1x16xf32>
    %6 = vector.shape_cast %5 : vector<1x1x16xf32> to vector<1x16xf32>
    %7 = vector.broadcast %6 : vector<1x16xf32> to vector<256x16xf32>
    %8 = arith.addf %4, %7 : vector<256x16xf32>
    %c1 = arith.constant 1 : index
    %c0_9 = arith.constant 0 : index
    %c0_10 = arith.constant 0 : index
    %9 = vector.load %arg3[%c1, %c0_9, %c0_10] : memref<2x16x16xbf16, #tpu.memory_space<vmem>>, vector<1x16x16xbf16>
    %10 = vector.shape_cast %9 : vector<1x16x16xbf16> to vector<16x16xbf16>
    %cst_11 = arith.constant dense<0.000000e+00> : vector<256x16xf32>
    %11 = tpu.matmul %1, %10, %cst_11 {dimension_numbers = #tpu.dot_dimension_numbers<[1], [0], [0], [1], [0, 0, 1, 1], [], []>} : vector<256x16xbf16>, vector<16x16xbf16>, vector<256x16xf32> -> vector<256x16xf32>
    %c1_12 = arith.constant 1 : index
    %c0_13 = arith.constant 0 : index
    %c0_14 = arith.constant 0 : index
    %12 = vector.load %arg4[%c1_12, %c0_13, %c0_14] : memref<2x1x16xf32, #tpu.memory_space<vmem>>, vector<1x1x16xf32>
    %13 = vector.shape_cast %12 : vector<1x1x16xf32> to vector<1x16xf32>
    %14 = vector.broadcast %13 : vector<1x16xf32> to vector<256x16xf32>
    %15 = arith.addf %11, %14 : vector<256x16xf32>
    %cst_15 = arith.constant 0.000000e+00 : f32
    %16 = vector.broadcast %cst_15 : f32 to vector<256x16xf32>
    %17 = arith.maximumf %8, %16 : vector<256x16xf32>
    %18 = arith.truncf %17 : vector<256x16xf32> to vector<256x16xbf16>
    %c0_16 = arith.constant 0 : index
    %c0_17 = arith.constant 0 : index
    %19 = vector.load %arg5[%c0_16, %c0_17] : memref<256x16xbf16, #tpu.memory_space<vmem>>, vector<256x16xbf16>
    tpu.vector_store %arg5[%c0_16, %c0_17], %18 {strides = array<i32>} : memref<256x16xbf16, #tpu.memory_space<vmem>>, vector<256x16xbf16>,
    %cst_18 = arith.constant 0.000000e+00 : f32
    %20 = vector.broadcast %cst_18 : f32 to vector<256x16xf32>
    %21 = arith.maximumf %15, %20 : vector<256x16xf32>
    %22 = arith.truncf %21 : vector<256x16xf32> to vector<256x16xbf16>
    %c0_19 = arith.constant 0 : index
    %c0_20 = arith.constant 0 : index
    %23 = vector.load %arg6[%c0_19, %c0_20] : memref<256x16xbf16, #tpu.memory_space<vmem>>, vector<256x16xbf16>
    tpu.vector_store %arg6[%c0_19, %c0_20], %22 {strides = array<i32>} : memref<256x16xbf16, #tpu.memory_space<vmem>>, vector<256x16xbf16>,
    return
  }
  func.func @transform_0(%arg0: i32) -> (i32, i32) {
    %c0_i32 = arith.constant 0 : i32
    %c0_i32_0 = arith.constant 0 : i32
    return %arg0, %c0_i32 : i32, i32
  }
  func.func @transform_1(%arg0: i32) -> (i32, i32) {
    %c0_i32 = arith.constant 0 : i32
    %c0_i32_0 = arith.constant 0 : i32
    return %arg0, %c0_i32 : i32, i32
  }
  func.func @transform_2(%arg0: i32) -> (i32, i32, i32) {
    %c0_i32 = arith.constant 0 : i32
    %c0_i32_0 = arith.constant 0 : i32
    %c0_i32_1 = arith.constant 0 : i32
    %c0_i32_2 = arith.constant 0 : i32
    return %c0_i32, %c0_i32_0, %c0_i32_1 : i32, i32, i32
  }
  func.func @transform_3(%arg0: i32) -> (i32, i32, i32) {
    %c0_i32 = arith.constant 0 : i32
    %c0_i32_0 = arith.constant 0 : i32
    %c0_i32_1 = arith.constant 0 : i32
    %c0_i32_2 = arith.constant 0 : i32
    return %c0_i32, %c0_i32_0, %c0_i32_1 : i32, i32, i32
  }
  func.func @transform_4(%arg0: i32) -> (i32, i32) {
    %c0_i32 = arith.constant 0 : i32
    %c0_i32_0 = arith.constant 0 : i32
    return %arg0, %c0_i32 : i32, i32
  }
  func.func @transform_5(%arg0: i32) -> (i32, i32) {
    %c0_i32 = arith.constant 0 : i32
    %c0_i32_0 = arith.constant 0 : i32
    return %arg0, %c0_i32 : i32, i32
  }
}

module attributes {stable_mosaic.version = 11 : i64} {
  func.func @_dual_dense_kernel(%arg0: i32, %arg1: memref<64x16xbf16, #tpu.memory_space<vmem>>, %arg2: memref<64x16xbf16, #tpu.memory_space<vmem>>, %arg3: memref<2x16x32xbf16, #tpu.memory_space<vmem>>, %arg4: memref<2x1x32xf32, #tpu.memory_space<vmem>>, %arg5: memref<64x32xbf16, #tpu.memory_space<vmem>>, %arg6: memref<64x32xbf16, #tpu.memory_space<vmem>>) attributes {dimension_semantics = [#tpu.dimension_semantics<parallel>], iteration_bounds = array<i64: 2>, scalar_prefetch = 0 : i64, scratch_operands = 0 : i64, tpu.core_type = #tpu.core_type<tc>, window_params = [{transform_indices = @transform_0, window_bounds = array<i64: 64, 16>}, {transform_indices = @transform_1, window_bounds = array<i64: 64, 16>}, {pipeline_mode = #tpu.pipeline_mode<synchronous>, transform_indices = @transform_2, window_bounds = array<i64: 2, 16, 32>}, {pipeline_mode = #tpu.pipeline_mode<synchronous>, transform_indices = @transform_3, window_bounds = array<i64: 2, 1, 32>}, {transform_indices = @transform_4, window_bounds = array<i64: 64, 32>}, {transform_indices = @transform_5, window_bounds = array<i64: 64, 32>}]} {
    %c0 = arith.constant 0 : index
    %c0_0 = arith.constant 0 : index
    %0 = vector.load %arg1[%c0, %c0_0] : memref<64x16xbf16, #tpu.memory_space<vmem>>, vector<64x16xbf16>
    %c0_1 = arith.constant 0 : index
    %c0_2 = arith.constant 0 : index
    %1 = vector.load %arg2[%c0_1, %c0_2] : memref<64x16xbf16, #tpu.memory_space<vmem>>, vector<64x16xbf16>
    %c0_3 = arith.constant 0 : index
    %c0_4 = arith.constant 0 : index
    %c0_5 = arith.constant 0 : index
    %2 = vector.load %arg3[%c0_3, %c0_4, %c0_5] : memref<2x16x32xbf16, #tpu.memory_space<vmem>>, vector<1x16x32xbf16>
    %3 = vector.shape_cast %2 : vector<1x16x32xbf16> to vector<16x32xbf16>
    %cst = arith.constant dense<0.000000e+00> : vector<64x32xf32>
    %4 = tpu.matmul %0, %3, %cst {dimension_numbers = #tpu.dot_dimension_numbers<[1], [0], [0], [1], [0, 0, 1, 1], [], []>} : vector<64x16xbf16>, vector<16x32xbf16>, vector<64x32xf32> -> vector<64x32xf32>
    %c0_6 = arith.constant 0 : index
    %c0_7 = arith.constant 0 : index
    %c0_8 = arith.constant 0 : index
    %5 = vector.load %arg4[%c0_6, %c0_7, %c0_8] : memref<2x1x32xf32, #tpu.memory_space<vmem>>, vector<1x1x32xf32>
    %6 = vector.shape_cast %5 : vector<1x1x32xf32> to vector<1x32xf32>
    %7 = vector.broadcast %6 : vector<1x32xf32> to vector<64x32xf32>
    %8 = arith.addf %4, %7 : vector<64x32xf32>
    %c1 = arith.constant 1 : index
    %c0_9 = arith.constant 0 : index
    %c0_10 = arith.constant 0 : index
    %9 = vector.load %arg3[%c1, %c0_9, %c0_10] : memref<2x16x32xbf16, #tpu.memory_space<vmem>>, vector<1x16x32xbf16>
    %10 = vector.shape_cast %9 : vector<1x16x32xbf16> to vector<16x32xbf16>
    %cst_11 = arith.constant dense<0.000000e+00> : vector<64x32xf32>
    %11 = tpu.matmul %1, %10, %cst_11 {dimension_numbers = #tpu.dot_dimension_numbers<[1], [0], [0], [1], [0, 0, 1, 1], [], []>} : vector<64x16xbf16>, vector<16x32xbf16>, vector<64x32xf32> -> vector<64x32xf32>
    %c1_12 = arith.constant 1 : index
    %c0_13 = arith.constant 0 : index
    %c0_14 = arith.constant 0 : index
    %12 = vector.load %arg4[%c1_12, %c0_13, %c0_14] : memref<2x1x32xf32, #tpu.memory_space<vmem>>, vector<1x1x32xf32>
    %13 = vector.shape_cast %12 : vector<1x1x32xf32> to vector<1x32xf32>
    %14 = vector.broadcast %13 : vector<1x32xf32> to vector<64x32xf32>
    %15 = arith.addf %11, %14 : vector<64x32xf32>
    %cst_15 = arith.constant 0.000000e+00 : f32
    %16 = vector.broadcast %cst_15 : f32 to vector<64x32xf32>
    %17 = arith.maximumf %8, %16 : vector<64x32xf32>
    %18 = arith.truncf %17 : vector<64x32xf32> to vector<64x32xbf16>
    %c0_16 = arith.constant 0 : index
    %c0_17 = arith.constant 0 : index
    %19 = vector.load %arg5[%c0_16, %c0_17] : memref<64x32xbf16, #tpu.memory_space<vmem>>, vector<64x32xbf16>
    tpu.vector_store %arg5[%c0_16, %c0_17], %18 {strides = array<i32>} : memref<64x32xbf16, #tpu.memory_space<vmem>>, vector<64x32xbf16>,
    %cst_18 = arith.constant 0.000000e+00 : f32
    %20 = vector.broadcast %cst_18 : f32 to vector<64x32xf32>
    %21 = arith.maximumf %15, %20 : vector<64x32xf32>
    %22 = arith.truncf %21 : vector<64x32xf32> to vector<64x32xbf16>
    %c0_19 = arith.constant 0 : index
    %c0_20 = arith.constant 0 : index
    %23 = vector.load %arg6[%c0_19, %c0_20] : memref<64x32xbf16, #tpu.memory_space<vmem>>, vector<64x32xbf16>
    tpu.vector_store %arg6[%c0_19, %c0_20], %22 {strides = array<i32>} : memref<64x32xbf16, #tpu.memory_space<vmem>>, vector<64x32xbf16>,
    return
  }
  func.func @transform_0(%arg0: i32) -> (i32, i32) {
    %c0_i32 = arith.constant 0 : i32
    %c0_i32_0 = arith.constant 0 : i32
    return %arg0, %c0_i32 : i32, i32
  }
  func.func @transform_1(%arg0: i32) -> (i32, i32) {
    %c0_i32 = arith.constant 0 : i32
    %c0_i32_0 = arith.constant 0 : i32
    return %arg0, %c0_i32 : i32, i32
  }
  func.func @transform_2(%arg0: i32) -> (i32, i32, i32) {
    %c0_i32 = arith.constant 0 : i32
    %c0_i32_0 = arith.constant 0 : i32
    %c0_i32_1 = arith.constant 0 : i32
    %c0_i32_2 = arith.constant 0 : i32
    return %c0_i32, %c0_i32_0, %c0_i32_1 : i32, i32, i32
  }
  func.func @transform_3(%arg0: i32) -> (i32, i32, i32) {
    %c0_i32 = arith.constant 0 : i32
    %c0_i32_0 = arith.constant 0 : i32
    %c0_i32_1 = arith.constant 0 : i32
    %c0_i32_2 = arith.constant 0 : i32
    return %c0_i32, %c0_i32_0, %c0_i32_1 : i32, i32, i32
  }
  func.func @transform_4(%arg0: i32) -> (i32, i32) {
    %c0_i32 = arith.constant 0 : i32
    %c0_i32_0 = arith.constant 0 : i32
    return %arg0, %c0_i32 : i32, i32
  }
  func.func @transform_5(%arg0: i32) -> (i32, i32) {
    %c0_i32 = arith.constant 0 : i32
    %c0_i32_0 = arith.constant 0 : i32
    return %arg0, %c0_i32 : i32, i32
  }
}

module attributes {stable_mosaic.version = 11 : i64} {
  func.func @_dlf_fused_kernel(%arg0: i32, %arg1: memref<1x8x8x32xbf16, #tpu.memory_space<vmem>>, %arg2: memref<1x14x14x32xbf16, #tpu.memory_space<vmem>>, %arg3: memref<32x32xbf16, #tpu.memory_space<vmem>>, %arg4: memref<1x64x32xbf16, #tpu.memory_space<vmem>>) attributes {dimension_semantics = [#tpu.dimension_semantics<parallel>], iteration_bounds = array<i64: 2>, scalar_prefetch = 0 : i64, scratch_operands = 0 : i64, tpu.core_type = #tpu.core_type<tc>, window_params = [{transform_indices = @transform_0, window_bounds = array<i64: 1, 8, 8, 32>}, {transform_indices = @transform_1, window_bounds = array<i64: 1, 14, 14, 32>}, {pipeline_mode = #tpu.pipeline_mode<synchronous>, transform_indices = @transform_2, window_bounds = array<i64: 32, 32>}, {transform_indices = @transform_3, window_bounds = array<i64: 1, 64, 32>}]} {
    %c0 = arith.constant 0 : index
    %c0_0 = arith.constant 0 : index
    %c0_1 = arith.constant 0 : index
    %c0_2 = arith.constant 0 : index
    %0 = vector.load %arg1[%c0, %c0_0, %c0_1, %c0_2] : memref<1x8x8x32xbf16, #tpu.memory_space<vmem>>, vector<1x8x8x32xbf16>
    %1 = vector.shape_cast %0 : vector<1x8x8x32xbf16> to vector<8x8x32xbf16>
    %2 = vector.shape_cast %1 : vector<8x8x32xbf16> to vector<64x32xbf16>
    %c0_3 = arith.constant 0 : index
    %c0_4 = arith.constant 0 : index
    %3 = vector.load %arg3[%c0_3, %c0_4] : memref<32x32xbf16, #tpu.memory_space<vmem>>, vector<32x32xbf16>
    %cst = arith.constant dense<0.000000e+00> : vector<64x32xf32>
    %4 = tpu.matmul %2, %3, %cst {dimension_numbers = #tpu.dot_dimension_numbers<[1], [0], [0], [1], [0, 0, 1, 1], [], []>} : vector<64x32xbf16>, vector<32x32xbf16>, vector<64x32xf32> -> vector<64x32xf32>
    %c0_5 = arith.constant 0 : index
    %c0_6 = arith.constant 0 : index
    %c0_7 = arith.constant 0 : index
    %c0_8 = arith.constant 0 : index
    %5 = vector.load %arg2[%c0_5, %c0_6, %c0_7, %c0_8] : memref<1x14x14x32xbf16, #tpu.memory_space<vmem>>, vector<1x14x14x32xbf16>
    %6 = vector.shape_cast %5 : vector<1x14x14x32xbf16> to vector<14x14x32xbf16>
    %7 = arith.extf %6 : vector<14x14x32xbf16> to vector<14x14x32xf32>
    %8 = vector.extract_strided_slice %7 {offsets = [3, 3, 0], sizes = [8, 8, 32], strides = [1, 1, 1]} : vector<14x14x32xf32> to vector<8x8x32xf32>
    %cst_9 = arith.constant 3.000000e+00 : f32
    %9 = vector.broadcast %cst_9 : f32 to vector<8x8x32xf32>
    %10 = arith.mulf %9, %8 : vector<8x8x32xf32>
    %11 = vector.extract_strided_slice %7 {offsets = [2, 0, 0], sizes = [8, 14, 32], strides = [1, 1, 1]} : vector<14x14x32xf32> to vector<8x14x32xf32>
    %12 = vector.extract_strided_slice %7 {offsets = [4, 0, 0], sizes = [8, 14, 32], strides = [1, 1, 1]} : vector<14x14x32xf32> to vector<8x14x32xf32>
    %13 = arith.addf %11, %12 : vector<8x14x32xf32>
    %14 = vector.extract_strided_slice %13 {offsets = [0, 2, 0], sizes = [8, 8, 32], strides = [1, 1, 1]} : vector<8x14x32xf32> to vector<8x8x32xf32>
    %15 = arith.addf %10, %14 : vector<8x8x32xf32>
    %16 = vector.extract_strided_slice %13 {offsets = [0, 4, 0], sizes = [8, 8, 32], strides = [1, 1, 1]} : vector<8x14x32xf32> to vector<8x8x32xf32>
    %17 = arith.addf %15, %16 : vector<8x8x32xf32>
    %18 = vector.extract_strided_slice %7 {offsets = [1, 0, 0], sizes = [8, 14, 32], strides = [1, 1, 1]} : vector<14x14x32xf32> to vector<8x14x32xf32>
    %19 = vector.extract_strided_slice %7 {offsets = [5, 0, 0], sizes = [8, 14, 32], strides = [1, 1, 1]} : vector<14x14x32xf32> to vector<8x14x32xf32>
    %20 = arith.addf %18, %19 : vector<8x14x32xf32>
    %21 = vector.extract_strided_slice %20 {offsets = [0, 1, 0], sizes = [8, 8, 32], strides = [1, 1, 1]} : vector<8x14x32xf32> to vector<8x8x32xf32>
    %22 = arith.addf %17, %21 : vector<8x8x32xf32>
    %23 = vector.extract_strided_slice %20 {offsets = [0, 5, 0], sizes = [8, 8, 32], strides = [1, 1, 1]} : vector<8x14x32xf32> to vector<8x8x32xf32>
    %24 = arith.addf %22, %23 : vector<8x8x32xf32>
    %25 = vector.extract_strided_slice %7 {offsets = [0, 0, 0], sizes = [8, 14, 32], strides = [1, 1, 1]} : vector<14x14x32xf32> to vector<8x14x32xf32>
    %26 = vector.extract_strided_slice %7 {offsets = [6, 0, 0], sizes = [8, 14, 32], strides = [1, 1, 1]} : vector<14x14x32xf32> to vector<8x14x32xf32>
    %27 = arith.addf %25, %26 : vector<8x14x32xf32>
    %28 = vector.extract_strided_slice %27 {offsets = [0, 0, 0], sizes = [8, 8, 32], strides = [1, 1, 1]} : vector<8x14x32xf32> to vector<8x8x32xf32>
    %29 = arith.addf %24, %28 : vector<8x8x32xf32>
    %30 = vector.extract_strided_slice %27 {offsets = [0, 6, 0], sizes = [8, 8, 32], strides = [1, 1, 1]} : vector<8x14x32xf32> to vector<8x8x32xf32>
    %31 = arith.addf %29, %30 : vector<8x8x32xf32>
    %32 = vector.shape_cast %31 : vector<8x8x32xf32> to vector<64x32xf32>
    %33 = arith.mulf %4, %32 : vector<64x32xf32>
    %cst_10 = arith.constant 0.0370370373 : f32
    %34 = vector.broadcast %cst_10 : f32 to vector<64x32xf32>
    %35 = arith.mulf %33, %34 : vector<64x32xf32>
    %36 = vector.shape_cast %35 : vector<64x32xf32> to vector<1x64x32xf32>
    %37 = arith.truncf %36 : vector<1x64x32xf32> to vector<1x64x32xbf16>
    %c0_11 = arith.constant 0 : index
    %c0_12 = arith.constant 0 : index
    %c0_13 = arith.constant 0 : index
    %38 = vector.load %arg4[%c0_11, %c0_12, %c0_13] : memref<1x64x32xbf16, #tpu.memory_space<vmem>>, vector<1x64x32xbf16>
    tpu.vector_store %arg4[%c0_11, %c0_12, %c0_13], %37 {strides = array<i32>} : memref<1x64x32xbf16, #tpu.memory_space<vmem>>, vector<1x64x32xbf16>,
    return
  }
  func.func @transform_0(%arg0: i32) -> (i32, i32, i32, i32) {
    %c0_i32 = arith.constant 0 : i32
    %c0_i32_0 = arith.constant 0 : i32
    %c0_i32_1 = arith.constant 0 : i32
    %c0_i32_2 = arith.constant 0 : i32
    return %arg0, %c0_i32, %c0_i32_0, %c0_i32_1 : i32, i32, i32, i32
  }
  func.func @transform_1(%arg0: i32) -> (i32, i32, i32, i32) {
    %c0_i32 = arith.constant 0 : i32
    %c0_i32_0 = arith.constant 0 : i32
    %c0_i32_1 = arith.constant 0 : i32
    %c0_i32_2 = arith.constant 0 : i32
    return %arg0, %c0_i32, %c0_i32_0, %c0_i32_1 : i32, i32, i32, i32
  }
  func.func @transform_2(%arg0: i32) -> (i32, i32) {
    %c0_i32 = arith.constant 0 : i32
    %c0_i32_0 = arith.constant 0 : i32
    %c0_i32_1 = arith.constant 0 : i32
    return %c0_i32, %c0_i32_0 : i32, i32
  }
  func.func @transform_3(%arg0: i32) -> (i32, i32, i32) {
    %c0_i32 = arith.constant 0 : i32
    %c0_i32_0 = arith.constant 0 : i32
    %c0_i32_1 = arith.constant 0 : i32
    return %arg0, %c0_i32, %c0_i32_0 : i32, i32, i32
  }
}

module attributes {stable_mosaic.version = 11 : i64} {
  func.func @_dual_dense_kernel(%arg0: i32, %arg1: memref<16x32xbf16, #tpu.memory_space<vmem>>, %arg2: memref<16x32xbf16, #tpu.memory_space<vmem>>, %arg3: memref<2x32x64xbf16, #tpu.memory_space<vmem>>, %arg4: memref<2x1x64xf32, #tpu.memory_space<vmem>>, %arg5: memref<16x64xbf16, #tpu.memory_space<vmem>>, %arg6: memref<16x64xbf16, #tpu.memory_space<vmem>>) attributes {dimension_semantics = [#tpu.dimension_semantics<parallel>], iteration_bounds = array<i64: 2>, scalar_prefetch = 0 : i64, scratch_operands = 0 : i64, tpu.core_type = #tpu.core_type<tc>, window_params = [{transform_indices = @transform_0, window_bounds = array<i64: 16, 32>}, {transform_indices = @transform_1, window_bounds = array<i64: 16, 32>}, {pipeline_mode = #tpu.pipeline_mode<synchronous>, transform_indices = @transform_2, window_bounds = array<i64: 2, 32, 64>}, {pipeline_mode = #tpu.pipeline_mode<synchronous>, transform_indices = @transform_3, window_bounds = array<i64: 2, 1, 64>}, {transform_indices = @transform_4, window_bounds = array<i64: 16, 64>}, {transform_indices = @transform_5, window_bounds = array<i64: 16, 64>}]} {
    %c0 = arith.constant 0 : index
    %c0_0 = arith.constant 0 : index
    %0 = vector.load %arg1[%c0, %c0_0] : memref<16x32xbf16, #tpu.memory_space<vmem>>, vector<16x32xbf16>
    %c0_1 = arith.constant 0 : index
    %c0_2 = arith.constant 0 : index
    %1 = vector.load %arg2[%c0_1, %c0_2] : memref<16x32xbf16, #tpu.memory_space<vmem>>, vector<16x32xbf16>
    %c0_3 = arith.constant 0 : index
    %c0_4 = arith.constant 0 : index
    %c0_5 = arith.constant 0 : index
    %2 = vector.load %arg3[%c0_3, %c0_4, %c0_5] : memref<2x32x64xbf16, #tpu.memory_space<vmem>>, vector<1x32x64xbf16>
    %3 = vector.shape_cast %2 : vector<1x32x64xbf16> to vector<32x64xbf16>
    %cst = arith.constant dense<0.000000e+00> : vector<16x64xf32>
    %4 = tpu.matmul %0, %3, %cst {dimension_numbers = #tpu.dot_dimension_numbers<[1], [0], [0], [1], [0, 0, 1, 1], [], []>} : vector<16x32xbf16>, vector<32x64xbf16>, vector<16x64xf32> -> vector<16x64xf32>
    %c0_6 = arith.constant 0 : index
    %c0_7 = arith.constant 0 : index
    %c0_8 = arith.constant 0 : index
    %5 = vector.load %arg4[%c0_6, %c0_7, %c0_8] : memref<2x1x64xf32, #tpu.memory_space<vmem>>, vector<1x1x64xf32>
    %6 = vector.shape_cast %5 : vector<1x1x64xf32> to vector<1x64xf32>
    %7 = vector.broadcast %6 : vector<1x64xf32> to vector<16x64xf32>
    %8 = arith.addf %4, %7 : vector<16x64xf32>
    %c1 = arith.constant 1 : index
    %c0_9 = arith.constant 0 : index
    %c0_10 = arith.constant 0 : index
    %9 = vector.load %arg3[%c1, %c0_9, %c0_10] : memref<2x32x64xbf16, #tpu.memory_space<vmem>>, vector<1x32x64xbf16>
    %10 = vector.shape_cast %9 : vector<1x32x64xbf16> to vector<32x64xbf16>
    %cst_11 = arith.constant dense<0.000000e+00> : vector<16x64xf32>
    %11 = tpu.matmul %1, %10, %cst_11 {dimension_numbers = #tpu.dot_dimension_numbers<[1], [0], [0], [1], [0, 0, 1, 1], [], []>} : vector<16x32xbf16>, vector<32x64xbf16>, vector<16x64xf32> -> vector<16x64xf32>
    %c1_12 = arith.constant 1 : index
    %c0_13 = arith.constant 0 : index
    %c0_14 = arith.constant 0 : index
    %12 = vector.load %arg4[%c1_12, %c0_13, %c0_14] : memref<2x1x64xf32, #tpu.memory_space<vmem>>, vector<1x1x64xf32>
    %13 = vector.shape_cast %12 : vector<1x1x64xf32> to vector<1x64xf32>
    %14 = vector.broadcast %13 : vector<1x64xf32> to vector<16x64xf32>
    %15 = arith.addf %11, %14 : vector<16x64xf32>
    %cst_15 = arith.constant 0.000000e+00 : f32
    %16 = vector.broadcast %cst_15 : f32 to vector<16x64xf32>
    %17 = arith.maximumf %8, %16 : vector<16x64xf32>
    %18 = arith.truncf %17 : vector<16x64xf32> to vector<16x64xbf16>
    %c0_16 = arith.constant 0 : index
    %c0_17 = arith.constant 0 : index
    %19 = vector.load %arg5[%c0_16, %c0_17] : memref<16x64xbf16, #tpu.memory_space<vmem>>, vector<16x64xbf16>
    tpu.vector_store %arg5[%c0_16, %c0_17], %18 {strides = array<i32>} : memref<16x64xbf16, #tpu.memory_space<vmem>>, vector<16x64xbf16>,
    %cst_18 = arith.constant 0.000000e+00 : f32
    %20 = vector.broadcast %cst_18 : f32 to vector<16x64xf32>
    %21 = arith.maximumf %15, %20 : vector<16x64xf32>
    %22 = arith.truncf %21 : vector<16x64xf32> to vector<16x64xbf16>
    %c0_19 = arith.constant 0 : index
    %c0_20 = arith.constant 0 : index
    %23 = vector.load %arg6[%c0_19, %c0_20] : memref<16x64xbf16, #tpu.memory_space<vmem>>, vector<16x64xbf16>
    tpu.vector_store %arg6[%c0_19, %c0_20], %22 {strides = array<i32>} : memref<16x64xbf16, #tpu.memory_space<vmem>>, vector<16x64xbf16>,
    return
  }
  func.func @transform_0(%arg0: i32) -> (i32, i32) {
    %c0_i32 = arith.constant 0 : i32
    %c0_i32_0 = arith.constant 0 : i32
    return %arg0, %c0_i32 : i32, i32
  }
  func.func @transform_1(%arg0: i32) -> (i32, i32) {
    %c0_i32 = arith.constant 0 : i32
    %c0_i32_0 = arith.constant 0 : i32
    return %arg0, %c0_i32 : i32, i32
  }
  func.func @transform_2(%arg0: i32) -> (i32, i32, i32) {
    %c0_i32 = arith.constant 0 : i32
    %c0_i32_0 = arith.constant 0 : i32
    %c0_i32_1 = arith.constant 0 : i32
    %c0_i32_2 = arith.constant 0 : i32
    return %c0_i32, %c0_i32_0, %c0_i32_1 : i32, i32, i32
  }
  func.func @transform_3(%arg0: i32) -> (i32, i32, i32) {
    %c0_i32 = arith.constant 0 : i32
    %c0_i32_0 = arith.constant 0 : i32
    %c0_i32_1 = arith.constant 0 : i32
    %c0_i32_2 = arith.constant 0 : i32
    return %c0_i32, %c0_i32_0, %c0_i32_1 : i32, i32, i32
  }
  func.func @transform_4(%arg0: i32) -> (i32, i32) {
    %c0_i32 = arith.constant 0 : i32
    %c0_i32_0 = arith.constant 0 : i32
    return %arg0, %c0_i32 : i32, i32
  }
  func.func @transform_5(%arg0: i32) -> (i32, i32) {
    %c0_i32 = arith.constant 0 : i32
    %c0_i32_0 = arith.constant 0 : i32
    return %arg0, %c0_i32 : i32, i32
  }
}

module attributes {stable_mosaic.version = 11 : i64} {
  func.func @_dense_premul_kernel(%arg0: i32, %arg1: memref<16x64xbf16, #tpu.memory_space<vmem>>, %arg2: memref<16x64xbf16, #tpu.memory_space<vmem>>, %arg3: memref<64x128xbf16, #tpu.memory_space<vmem>>, %arg4: memref<1x128xf32, #tpu.memory_space<vmem>>, %arg5: memref<16x128xbf16, #tpu.memory_space<vmem>>) attributes {dimension_semantics = [#tpu.dimension_semantics<parallel>], iteration_bounds = array<i64: 2>, scalar_prefetch = 0 : i64, scratch_operands = 0 : i64, tpu.core_type = #tpu.core_type<tc>, window_params = [{transform_indices = @transform_0, window_bounds = array<i64: 16, 64>}, {transform_indices = @transform_1, window_bounds = array<i64: 16, 64>}, {pipeline_mode = #tpu.pipeline_mode<synchronous>, transform_indices = @transform_2, window_bounds = array<i64: 64, 128>}, {pipeline_mode = #tpu.pipeline_mode<synchronous>, transform_indices = @transform_3, window_bounds = array<i64: 1, 128>}, {transform_indices = @transform_4, window_bounds = array<i64: 16, 128>}]} {
    %c0 = arith.constant 0 : index
    %c0_0 = arith.constant 0 : index
    %0 = vector.load %arg1[%c0, %c0_0] : memref<16x64xbf16, #tpu.memory_space<vmem>>, vector<16x64xbf16>
    %1 = arith.extf %0 : vector<16x64xbf16> to vector<16x64xf32>
    %c0_1 = arith.constant 0 : index
    %c0_2 = arith.constant 0 : index
    %2 = vector.load %arg2[%c0_1, %c0_2] : memref<16x64xbf16, #tpu.memory_space<vmem>>, vector<16x64xbf16>
    %3 = arith.extf %2 : vector<16x64xbf16> to vector<16x64xf32>
    %4 = arith.mulf %1, %3 : vector<16x64xf32>
    %5 = arith.truncf %4 : vector<16x64xf32> to vector<16x64xbf16>
    %c0_3 = arith.constant 0 : index
    %c0_4 = arith.constant 0 : index
    %6 = vector.load %arg3[%c0_3, %c0_4] : memref<64x128xbf16, #tpu.memory_space<vmem>>, vector<64x128xbf16>
    %cst = arith.constant dense<0.000000e+00> : vector<16x128xf32>
    %7 = tpu.matmul %5, %6, %cst {dimension_numbers = #tpu.dot_dimension_numbers<[1], [0], [0], [1], [0, 0, 1, 1], [], []>} : vector<16x64xbf16>, vector<64x128xbf16>, vector<16x128xf32> -> vector<16x128xf32>
    %c0_5 = arith.constant 0 : index
    %c0_6 = arith.constant 0 : index
    %8 = vector.load %arg4[%c0_5, %c0_6] : memref<1x128xf32, #tpu.memory_space<vmem>>, vector<1x128xf32>
    %9 = vector.broadcast %8 : vector<1x128xf32> to vector<16x128xf32>
    %10 = arith.addf %7, %9 : vector<16x128xf32>
    %cst_7 = arith.constant 0.000000e+00 : f32
    %11 = vector.broadcast %cst_7 : f32 to vector<16x128xf32>
    %12 = arith.maximumf %10, %11 : vector<16x128xf32>
    %13 = arith.truncf %12 : vector<16x128xf32> to vector<16x128xbf16>
    %c0_8 = arith.constant 0 : index
    %c0_9 = arith.constant 0 : index
    %14 = vector.load %arg5[%c0_8, %c0_9] : memref<16x128xbf16, #tpu.memory_space<vmem>>, vector<16x128xbf16>
    tpu.vector_store %arg5[%c0_8, %c0_9], %13 {strides = array<i32>} : memref<16x128xbf16, #tpu.memory_space<vmem>>, vector<16x128xbf16>,
    return
  }
  func.func @transform_0(%arg0: i32) -> (i32, i32) {
    %c0_i32 = arith.constant 0 : i32
    %c0_i32_0 = arith.constant 0 : i32
    return %arg0, %c0_i32 : i32, i32
  }
  func.func @transform_1(%arg0: i32) -> (i32, i32) {
    %c0_i32 = arith.constant 0 : i32
    %c0_i32_0 = arith.constant 0 : i32
    return %arg0, %c0_i32 : i32, i32
  }
  func.func @transform_2(%arg0: i32) -> (i32, i32) {
    %c0_i32 = arith.constant 0 : i32
    %c0_i32_0 = arith.constant 0 : i32
    %c0_i32_1 = arith.constant 0 : i32
    return %c0_i32, %c0_i32_0 : i32, i32
  }
  func.func @transform_3(%arg0: i32) -> (i32, i32) {
    %c0_i32 = arith.constant 0 : i32
    %c0_i32_0 = arith.constant 0 : i32
    %c0_i32_1 = arith.constant 0 : i32
    return %c0_i32, %c0_i32_0 : i32, i32
  }
  func.func @transform_4(%arg0: i32) -> (i32, i32) {
    %c0_i32 = arith.constant 0 : i32
    %c0_i32_0 = arith.constant 0 : i32
    return %arg0, %c0_i32 : i32, i32
  }
}

module attributes {stable_mosaic.version = 11 : i64} {
  func.func @_dense_kernel(%arg0: i32, %arg1: memref<16x64xbf16, #tpu.memory_space<vmem>>, %arg2: memref<64x128xbf16, #tpu.memory_space<vmem>>, %arg3: memref<1x128xf32, #tpu.memory_space<vmem>>, %arg4: memref<16x128xbf16, #tpu.memory_space<vmem>>) attributes {dimension_semantics = [#tpu.dimension_semantics<parallel>], iteration_bounds = array<i64: 2>, scalar_prefetch = 0 : i64, scratch_operands = 0 : i64, tpu.core_type = #tpu.core_type<tc>, window_params = [{transform_indices = @transform_0, window_bounds = array<i64: 16, 64>}, {pipeline_mode = #tpu.pipeline_mode<synchronous>, transform_indices = @transform_1, window_bounds = array<i64: 64, 128>}, {pipeline_mode = #tpu.pipeline_mode<synchronous>, transform_indices = @transform_2, window_bounds = array<i64: 1, 128>}, {transform_indices = @transform_3, window_bounds = array<i64: 16, 128>}]} {
    %c0 = arith.constant 0 : index
    %c0_0 = arith.constant 0 : index
    %0 = vector.load %arg1[%c0, %c0_0] : memref<16x64xbf16, #tpu.memory_space<vmem>>, vector<16x64xbf16>
    %c0_1 = arith.constant 0 : index
    %c0_2 = arith.constant 0 : index
    %1 = vector.load %arg2[%c0_1, %c0_2] : memref<64x128xbf16, #tpu.memory_space<vmem>>, vector<64x128xbf16>
    %cst = arith.constant dense<0.000000e+00> : vector<16x128xf32>
    %2 = tpu.matmul %0, %1, %cst {dimension_numbers = #tpu.dot_dimension_numbers<[1], [0], [0], [1], [0, 0, 1, 1], [], []>} : vector<16x64xbf16>, vector<64x128xbf16>, vector<16x128xf32> -> vector<16x128xf32>
    %c0_3 = arith.constant 0 : index
    %c0_4 = arith.constant 0 : index
    %3 = vector.load %arg3[%c0_3, %c0_4] : memref<1x128xf32, #tpu.memory_space<vmem>>, vector<1x128xf32>
    %4 = vector.broadcast %3 : vector<1x128xf32> to vector<16x128xf32>
    %5 = arith.addf %2, %4 : vector<16x128xf32>
    %cst_5 = arith.constant 0.000000e+00 : f32
    %6 = vector.broadcast %cst_5 : f32 to vector<16x128xf32>
    %7 = arith.maximumf %5, %6 : vector<16x128xf32>
    %8 = arith.truncf %7 : vector<16x128xf32> to vector<16x128xbf16>
    %c0_6 = arith.constant 0 : index
    %c0_7 = arith.constant 0 : index
    %9 = vector.load %arg4[%c0_6, %c0_7] : memref<16x128xbf16, #tpu.memory_space<vmem>>, vector<16x128xbf16>
    tpu.vector_store %arg4[%c0_6, %c0_7], %8 {strides = array<i32>} : memref<16x128xbf16, #tpu.memory_space<vmem>>, vector<16x128xbf16>,
    return
  }
  func.func @transform_0(%arg0: i32) -> (i32, i32) {
    %c0_i32 = arith.constant 0 : i32
    %c0_i32_0 = arith.constant 0 : i32
    return %arg0, %c0_i32 : i32, i32
  }
  func.func @transform_1(%arg0: i32) -> (i32, i32) {
    %c0_i32 = arith.constant 0 : i32
    %c0_i32_0 = arith.constant 0 : i32
    %c0_i32_1 = arith.constant 0 : i32
    return %c0_i32, %c0_i32_0 : i32, i32
  }
  func.func @transform_2(%arg0: i32) -> (i32, i32) {
    %c0_i32 = arith.constant 0 : i32
    %c0_i32_0 = arith.constant 0 : i32
    %c0_i32_1 = arith.constant 0 : i32
    return %c0_i32, %c0_i32_0 : i32, i32
  }
  func.func @transform_3(%arg0: i32) -> (i32, i32) {
    %c0_i32 = arith.constant 0 : i32
    %c0_i32_0 = arith.constant 0 : i32
    return %arg0, %c0_i32 : i32, i32
  }
}

module attributes {stable_mosaic.version = 11 : i64} {
  func.func @_prop_head_kernel(%arg0: i32, %arg1: memref<1x4x4x128xbf16, #tpu.memory_space<vmem>>, %arg2: memref<1x4x4x128xbf16, #tpu.memory_space<vmem>>, %arg3: memref<3x3x128x64xbf16, #tpu.memory_space<vmem>>, %arg4: memref<1x64xf32, #tpu.memory_space<vmem>>, %arg5: memref<64x128xbf16, #tpu.memory_space<vmem>>, %arg6: memref<1x128xf32, #tpu.memory_space<vmem>>, %arg7: memref<1x16x128xf32, #tpu.memory_space<vmem>>) attributes {dimension_semantics = [#tpu.dimension_semantics<parallel>], iteration_bounds = array<i64: 2>, scalar_prefetch = 0 : i64, scratch_operands = 0 : i64, tpu.core_type = #tpu.core_type<tc>, window_params = [{transform_indices = @transform_0, window_bounds = array<i64: 1, 4, 4, 128>}, {transform_indices = @transform_1, window_bounds = array<i64: 1, 4, 4, 128>}, {pipeline_mode = #tpu.pipeline_mode<synchronous>, transform_indices = @transform_2, window_bounds = array<i64: 3, 3, 128, 64>}, {pipeline_mode = #tpu.pipeline_mode<synchronous>, transform_indices = @transform_3, window_bounds = array<i64: 1, 64>}, {pipeline_mode = #tpu.pipeline_mode<synchronous>, transform_indices = @transform_4, window_bounds = array<i64: 64, 128>}, {pipeline_mode = #tpu.pipeline_mode<synchronous>, transform_indices = @transform_5, window_bounds = array<i64: 1, 128>}, {transform_indices = @transform_6, window_bounds = array<i64: 1, 16, 128>}]} {
    %c0 = arith.constant 0 : index
    %c0_0 = arith.constant 0 : index
    %c0_1 = arith.constant 0 : index
    %c0_2 = arith.constant 0 : index
    %0 = vector.load %arg1[%c0, %c0_0, %c0_1, %c0_2] : memref<1x4x4x128xbf16, #tpu.memory_space<vmem>>, vector<1x4x4x128xbf16>
    %1 = vector.shape_cast %0 : vector<1x4x4x128xbf16> to vector<4x4x128xbf16>
    %2 = arith.extf %1 : vector<4x4x128xbf16> to vector<4x4x128xf32>
    %c0_3 = arith.constant 0 : index
    %c0_4 = arith.constant 0 : index
    %c0_5 = arith.constant 0 : index
    %c0_6 = arith.constant 0 : index
    %3 = vector.load %arg2[%c0_3, %c0_4, %c0_5, %c0_6] : memref<1x4x4x128xbf16, #tpu.memory_space<vmem>>, vector<1x4x4x128xbf16>
    %4 = vector.shape_cast %3 : vector<1x4x4x128xbf16> to vector<4x4x128xbf16>
    %5 = arith.extf %4 : vector<4x4x128xbf16> to vector<4x4x128xf32>
    %6 = arith.mulf %2, %5 : vector<4x4x128xf32>
    %cst = arith.constant 0.000000e+00 : f32
    %7 = vector.broadcast %cst : f32 to vector<4x1x128xf32>
    %cst_7 = arith.constant 0.000000e+00 : f32
    %8 = vector.broadcast %cst_7 : f32 to vector<1x6x128xf32>
    %9 = tpu.concatenate %7, %6, %7 in 1 : vector<4x1x128xf32>, vector<4x4x128xf32>, vector<4x1x128xf32> -> vector<4x6x128xf32>
    %10 = tpu.concatenate %8, %9, %8 in 0 : vector<1x6x128xf32>, vector<4x6x128xf32>, vector<1x6x128xf32> -> vector<6x6x128xf32>
    %11 = arith.truncf %10 : vector<6x6x128xf32> to vector<6x6x128xbf16>
    %c0_8 = arith.constant 0 : index
    %c0_9 = arith.constant 0 : index
    %c0_10 = arith.constant 0 : index
    %c0_11 = arith.constant 0 : index
    %12 = vector.load %arg3[%c0_8, %c0_9, %c0_10, %c0_11] : memref<3x3x128x64xbf16, #tpu.memory_space<vmem>>, vector<3x3x128x64xbf16>
    %cst_12 = arith.constant 0.000000e+00 : f32
    %13 = vector.broadcast %cst_12 : f32 to vector<16x64xf32>
    %14 = vector.extract_strided_slice %11 {offsets = [0, 0, 0], sizes = [6, 4, 128], strides = [1, 1, 1]} : vector<6x6x128xbf16> to vector<6x4x128xbf16>
    %15 = vector.shape_cast %14 : vector<6x4x128xbf16> to vector<24x128xbf16>
    %16 = vector.extract_strided_slice %15 {offsets = [0, 0], sizes = [16, 128], strides = [1, 1]} : vector<24x128xbf16> to vector<16x128xbf16>
    %17 = vector.extract_strided_slice %12 {offsets = [0, 0, 0, 0], sizes = [1, 1, 128, 64], strides = [1, 1, 1, 1]} : vector<3x3x128x64xbf16> to vector<1x1x128x64xbf16>
    %18 = vector.shape_cast %17 : vector<1x1x128x64xbf16> to vector<128x64xbf16>
    %cst_13 = arith.constant dense<0.000000e+00> : vector<16x64xf32>
    %19 = tpu.matmul %16, %18, %cst_13 {dimension_numbers = #tpu.dot_dimension_numbers<[1], [0], [0], [1], [0, 0, 1, 1], [], []>} : vector<16x128xbf16>, vector<128x64xbf16>, vector<16x64xf32> -> vector<16x64xf32>
    %20 = arith.addf %13, %19 : vector<16x64xf32>
    %21 = vector.extract_strided_slice %15 {offsets = [4, 0], sizes = [16, 128], strides = [1, 1]} : vector<24x128xbf16> to vector<16x128xbf16>
    %22 = vector.extract_strided_slice %12 {offsets = [1, 0, 0, 0], sizes = [1, 1, 128, 64], strides = [1, 1, 1, 1]} : vector<3x3x128x64xbf16> to vector<1x1x128x64xbf16>
    %23 = vector.shape_cast %22 : vector<1x1x128x64xbf16> to vector<128x64xbf16>
    %cst_14 = arith.constant dense<0.000000e+00> : vector<16x64xf32>
    %24 = tpu.matmul %21, %23, %cst_14 {dimension_numbers = #tpu.dot_dimension_numbers<[1], [0], [0], [1], [0, 0, 1, 1], [], []>} : vector<16x128xbf16>, vector<128x64xbf16>, vector<16x64xf32> -> vector<16x64xf32>
    %25 = arith.addf %20, %24 : vector<16x64xf32>
    %26 = vector.extract_strided_slice %15 {offsets = [8, 0], sizes = [16, 128], strides = [1, 1]} : vector<24x128xbf16> to vector<16x128xbf16>
    %27 = vector.extract_strided_slice %12 {offsets = [2, 0, 0, 0], sizes = [1, 1, 128, 64], strides = [1, 1, 1, 1]} : vector<3x3x128x64xbf16> to vector<1x1x128x64xbf16>
    %28 = vector.shape_cast %27 : vector<1x1x128x64xbf16> to vector<128x64xbf16>
    %cst_15 = arith.constant dense<0.000000e+00> : vector<16x64xf32>
    %29 = tpu.matmul %26, %28, %cst_15 {dimension_numbers = #tpu.dot_dimension_numbers<[1], [0], [0], [1], [0, 0, 1, 1], [], []>} : vector<16x128xbf16>, vector<128x64xbf16>, vector<16x64xf32> -> vector<16x64xf32>
    %30 = arith.addf %25, %29 : vector<16x64xf32>
    %31 = vector.extract_strided_slice %11 {offsets = [0, 1, 0], sizes = [6, 4, 128], strides = [1, 1, 1]} : vector<6x6x128xbf16> to vector<6x4x128xbf16>
    %32 = vector.shape_cast %31 : vector<6x4x128xbf16> to vector<24x128xbf16>
    %33 = vector.extract_strided_slice %32 {offsets = [0, 0], sizes = [16, 128], strides = [1, 1]} : vector<24x128xbf16> to vector<16x128xbf16>
    %34 = vector.extract_strided_slice %12 {offsets = [0, 1, 0, 0], sizes = [1, 1, 128, 64], strides = [1, 1, 1, 1]} : vector<3x3x128x64xbf16> to vector<1x1x128x64xbf16>
    %35 = vector.shape_cast %34 : vector<1x1x128x64xbf16> to vector<128x64xbf16>
    %cst_16 = arith.constant dense<0.000000e+00> : vector<16x64xf32>
    %36 = tpu.matmul %33, %35, %cst_16 {dimension_numbers = #tpu.dot_dimension_numbers<[1], [0], [0], [1], [0, 0, 1, 1], [], []>} : vector<16x128xbf16>, vector<128x64xbf16>, vector<16x64xf32> -> vector<16x64xf32>
    %37 = arith.addf %30, %36 : vector<16x64xf32>
    %38 = vector.extract_strided_slice %32 {offsets = [4, 0], sizes = [16, 128], strides = [1, 1]} : vector<24x128xbf16> to vector<16x128xbf16>
    %39 = vector.extract_strided_slice %12 {offsets = [1, 1, 0, 0], sizes = [1, 1, 128, 64], strides = [1, 1, 1, 1]} : vector<3x3x128x64xbf16> to vector<1x1x128x64xbf16>
    %40 = vector.shape_cast %39 : vector<1x1x128x64xbf16> to vector<128x64xbf16>
    %cst_17 = arith.constant dense<0.000000e+00> : vector<16x64xf32>
    %41 = tpu.matmul %38, %40, %cst_17 {dimension_numbers = #tpu.dot_dimension_numbers<[1], [0], [0], [1], [0, 0, 1, 1], [], []>} : vector<16x128xbf16>, vector<128x64xbf16>, vector<16x64xf32> -> vector<16x64xf32>
    %42 = arith.addf %37, %41 : vector<16x64xf32>
    %43 = vector.extract_strided_slice %32 {offsets = [8, 0], sizes = [16, 128], strides = [1, 1]} : vector<24x128xbf16> to vector<16x128xbf16>
    %44 = vector.extract_strided_slice %12 {offsets = [2, 1, 0, 0], sizes = [1, 1, 128, 64], strides = [1, 1, 1, 1]} : vector<3x3x128x64xbf16> to vector<1x1x128x64xbf16>
    %45 = vector.shape_cast %44 : vector<1x1x128x64xbf16> to vector<128x64xbf16>
    %cst_18 = arith.constant dense<0.000000e+00> : vector<16x64xf32>
    %46 = tpu.matmul %43, %45, %cst_18 {dimension_numbers = #tpu.dot_dimension_numbers<[1], [0], [0], [1], [0, 0, 1, 1], [], []>} : vector<16x128xbf16>, vector<128x64xbf16>, vector<16x64xf32> -> vector<16x64xf32>
    %47 = arith.addf %42, %46 : vector<16x64xf32>
    %48 = vector.extract_strided_slice %11 {offsets = [0, 2, 0], sizes = [6, 4, 128], strides = [1, 1, 1]} : vector<6x6x128xbf16> to vector<6x4x128xbf16>
    %49 = vector.shape_cast %48 : vector<6x4x128xbf16> to vector<24x128xbf16>
    %50 = vector.extract_strided_slice %49 {offsets = [0, 0], sizes = [16, 128], strides = [1, 1]} : vector<24x128xbf16> to vector<16x128xbf16>
    %51 = vector.extract_strided_slice %12 {offsets = [0, 2, 0, 0], sizes = [1, 1, 128, 64], strides = [1, 1, 1, 1]} : vector<3x3x128x64xbf16> to vector<1x1x128x64xbf16>
    %52 = vector.shape_cast %51 : vector<1x1x128x64xbf16> to vector<128x64xbf16>
    %cst_19 = arith.constant dense<0.000000e+00> : vector<16x64xf32>
    %53 = tpu.matmul %50, %52, %cst_19 {dimension_numbers = #tpu.dot_dimension_numbers<[1], [0], [0], [1], [0, 0, 1, 1], [], []>} : vector<16x128xbf16>, vector<128x64xbf16>, vector<16x64xf32> -> vector<16x64xf32>
    %54 = arith.addf %47, %53 : vector<16x64xf32>
    %55 = vector.extract_strided_slice %49 {offsets = [4, 0], sizes = [16, 128], strides = [1, 1]} : vector<24x128xbf16> to vector<16x128xbf16>
    %56 = vector.extract_strided_slice %12 {offsets = [1, 2, 0, 0], sizes = [1, 1, 128, 64], strides = [1, 1, 1, 1]} : vector<3x3x128x64xbf16> to vector<1x1x128x64xbf16>
    %57 = vector.shape_cast %56 : vector<1x1x128x64xbf16> to vector<128x64xbf16>
    %cst_20 = arith.constant dense<0.000000e+00> : vector<16x64xf32>
    %58 = tpu.matmul %55, %57, %cst_20 {dimension_numbers = #tpu.dot_dimension_numbers<[1], [0], [0], [1], [0, 0, 1, 1], [], []>} : vector<16x128xbf16>, vector<128x64xbf16>, vector<16x64xf32> -> vector<16x64xf32>
    %59 = arith.addf %54, %58 : vector<16x64xf32>
    %60 = vector.extract_strided_slice %49 {offsets = [8, 0], sizes = [16, 128], strides = [1, 1]} : vector<24x128xbf16> to vector<16x128xbf16>
    %61 = vector.extract_strided_slice %12 {offsets = [2, 2, 0, 0], sizes = [1, 1, 128, 64], strides = [1, 1, 1, 1]} : vector<3x3x128x64xbf16> to vector<1x1x128x64xbf16>
    %62 = vector.shape_cast %61 : vector<1x1x128x64xbf16> to vector<128x64xbf16>
    %cst_21 = arith.constant dense<0.000000e+00> : vector<16x64xf32>
    %63 = tpu.matmul %60, %62, %cst_21 {dimension_numbers = #tpu.dot_dimension_numbers<[1], [0], [0], [1], [0, 0, 1, 1], [], []>} : vector<16x128xbf16>, vector<128x64xbf16>, vector<16x64xf32> -> vector<16x64xf32>
    %64 = arith.addf %59, %63 : vector<16x64xf32>
    %c0_22 = arith.constant 0 : index
    %c0_23 = arith.constant 0 : index
    %65 = vector.load %arg4[%c0_22, %c0_23] : memref<1x64xf32, #tpu.memory_space<vmem>>, vector<1x64xf32>
    %66 = vector.broadcast %65 : vector<1x64xf32> to vector<16x64xf32>
    %67 = arith.addf %64, %66 : vector<16x64xf32>
    %cst_24 = arith.constant 0.000000e+00 : f32
    %68 = vector.broadcast %cst_24 : f32 to vector<16x64xf32>
    %69 = arith.maximumf %67, %68 : vector<16x64xf32>
    %70 = arith.truncf %69 : vector<16x64xf32> to vector<16x64xbf16>
    %c0_25 = arith.constant 0 : index
    %c0_26 = arith.constant 0 : index
    %71 = vector.load %arg5[%c0_25, %c0_26] : memref<64x128xbf16, #tpu.memory_space<vmem>>, vector<64x128xbf16>
    %cst_27 = arith.constant dense<0.000000e+00> : vector<16x128xf32>
    %72 = tpu.matmul %70, %71, %cst_27 {dimension_numbers = #tpu.dot_dimension_numbers<[1], [0], [0], [1], [0, 0, 1, 1], [], []>} : vector<16x64xbf16>, vector<64x128xbf16>, vector<16x128xf32> -> vector<16x128xf32>
    %c0_28 = arith.constant 0 : index
    %c0_29 = arith.constant 0 : index
    %73 = vector.load %arg6[%c0_28, %c0_29] : memref<1x128xf32, #tpu.memory_space<vmem>>, vector<1x128xf32>
    %74 = vector.broadcast %73 : vector<1x128xf32> to vector<16x128xf32>
    %75 = arith.addf %72, %74 : vector<16x128xf32>
    %76 = vector.shape_cast %75 : vector<16x128xf32> to vector<1x16x128xf32>
    %c0_30 = arith.constant 0 : index
    %c0_31 = arith.constant 0 : index
    %c0_32 = arith.constant 0 : index
    %77 = vector.load %arg7[%c0_30, %c0_31, %c0_32] : memref<1x16x128xf32, #tpu.memory_space<vmem>>, vector<1x16x128xf32>
    tpu.vector_store %arg7[%c0_30, %c0_31, %c0_32], %76 {strides = array<i32>} : memref<1x16x128xf32, #tpu.memory_space<vmem>>, vector<1x16x128xf32>,
    return
  }
  func.func @transform_0(%arg0: i32) -> (i32, i32, i32, i32) {
    %c0_i32 = arith.constant 0 : i32
    %c0_i32_0 = arith.constant 0 : i32
    %c0_i32_1 = arith.constant 0 : i32
    %c0_i32_2 = arith.constant 0 : i32
    return %arg0, %c0_i32, %c0_i32_0, %c0_i32_1 : i32, i32, i32, i32
  }
  func.func @transform_1(%arg0: i32) -> (i32, i32, i32, i32) {
    %c0_i32 = arith.constant 0 : i32
    %c0_i32_0 = arith.constant 0 : i32
    %c0_i32_1 = arith.constant 0 : i32
    %c0_i32_2 = arith.constant 0 : i32
    return %arg0, %c0_i32, %c0_i32_0, %c0_i32_1 : i32, i32, i32, i32
  }
  func.func @transform_2(%arg0: i32) -> (i32, i32, i32, i32) {
    %c0_i32 = arith.constant 0 : i32
    %c0_i32_0 = arith.constant 0 : i32
    %c0_i32_1 = arith.constant 0 : i32
    %c0_i32_2 = arith.constant 0 : i32
    %c0_i32_3 = arith.constant 0 : i32
    return %c0_i32, %c0_i32_0, %c0_i32_1, %c0_i32_2 : i32, i32, i32, i32
  }
  func.func @transform_3(%arg0: i32) -> (i32, i32) {
    %c0_i32 = arith.constant 0 : i32
    %c0_i32_0 = arith.constant 0 : i32
    %c0_i32_1 = arith.constant 0 : i32
    return %c0_i32, %c0_i32_0 : i32, i32
  }
  func.func @transform_4(%arg0: i32) -> (i32, i32) {
    %c0_i32 = arith.constant 0 : i32
    %c0_i32_0 = arith.constant 0 : i32
    %c0_i32_1 = arith.constant 0 : i32
    return %c0_i32, %c0_i32_0 : i32, i32
  }
  func.func @transform_5(%arg0: i32) -> (i32, i32) {
    %c0_i32 = arith.constant 0 : i32
    %c0_i32_0 = arith.constant 0 : i32
    %c0_i32_1 = arith.constant 0 : i32
    return %c0_i32, %c0_i32_0 : i32, i32
  }
  func.func @transform_6(%arg0: i32) -> (i32, i32, i32) {
    %c0_i32 = arith.constant 0 : i32
    %c0_i32_0 = arith.constant 0 : i32
    %c0_i32_1 = arith.constant 0 : i32
    return %arg0, %c0_i32, %c0_i32_0 : i32, i32, i32
  }
}

</mosaic_0001>

<llo_original>
// kernel: rpn_forward.10
$region0: #{rpn_forward.10}
  #allocation0 [shape = 'u32[]', space=smem, size = 0x4, offset = 0x4, fixed_abs, tag = 'smem constant byte address 0x4 - core index']
  #allocation1 [shape = 'u32[72,128]{1,0:T(1,128)}', space=vmem, size = 0x9000, scoped, tag = 'internal scratch']
  %s0 = inlined_call_operand.vmem [shape: bf16[128,16], index: 0, kind: input, shape index: {}]
  %s1 = inlined_call_operand.vmem [shape: bf16[128,16], index: 1, kind: input, shape index: {}]
  %s2 = inlined_call_operand.vmem [shape: bf16[2,16,32], index: 2, kind: input, shape index: {}]
  %s3 = inlined_call_operand.vmem [shape: f32[2,1,32], index: 3, kind: input, shape index: {}]
  %s4 = inlined_call_operand.vmem [shape: bf16[128,32], index: 4, kind: output, shape index: {0}]
  %s5 = inlined_call_operand.vmem [shape: bf16[128,32], index: 5, kind: output, shape index: {1}]
  %6 = xla_tuple %s4, %s5
  %s7 = sld [smem:[#allocation0]]
  $region57: #{rpn_forward.10} parent=0
    _
  %s9 = ssub.s32 1, %s7
  %s10 = scalar_select 0, %s9, %s7
  loop: start=0, step=1, limit=4
  $region2: #{rpn_forward.10} parent=0 // loop_pre_header
    _
  $region3: #{rpn_forward.10} parent=0 // loop_header
    %s12 = sphi 0, %s16
    %p13 = scmp.ge.s32.totalorder %s12, 4
    %s22 = sphi 0, %s24
    %s25 = sphi 0, %s22
    %s26 = sphi 0, %s25
    %s42 = sphi 0, %s26
    %s48 = sphi 0, %s50
    %s51 = sphi 0, %s48
    %s52 = sphi 0, %s51
    %s68 = sphi 0, %s52
    %s72 = sphi 0, %s72
    %s74 = sphi 0, %s72
    %s75 = sphi 0, %s74
    %s89 = sphi 0, %s75
    %s93 = sphi 0, %s93
    %s95 = sphi 0, %s93
    %s96 = sphi 0, %s95
    %s110 = sphi 0, %s96
    %s116 = sphi 0, %s118
    %s119 = sphi 0, %s116
    %s120 = sphi 0, %s119
    %s136 = sphi 0, %s120
    %s142 = sphi 0, %s144
    %s145 = sphi 0, %s142
    %s146 = sphi 0, %s145
    %s162 = sphi 0, %s146
  $region4: #{rpn_forward.10} parent=0 // loop_header_branch
    %15 = sbr.rel (%p13) target = $region8
  $region5: #{rpn_forward.10} parent=0 // loop_body
    %s17 = ssub.s32 %s12, 1
    %s18 = ssub.s32 %s12, 2
    %s19 = sadd.s32 %s12, 1
    %s20 = ssub.s32 %s12, %s19
    %p21 = scmp.eq.s32.totalorder %s20, 0
    %s23 = sadd.s32 %s22, 1
    %s24 = scalar_select %p21, %s22, %s23
    %p27 = pneg %p21
    %p28 = scmp.eq.s32.totalorder %s12, 1
    %p29 = por %p27, %p28
    %p30 = scmp.ne.s32.totalorder %s22, %s25
    %p31 = scmp.eq.s32.totalorder %s12, 0
    %p32 = por %p30, %p31
    %p33 = scmp.ne.s32.totalorder %s22, %s25
    %p34 = scmp.eq.s32.totalorder %s17, 1
    %p35 = por %p33, %p34
    %p36 = scmp.ne.s32.totalorder %s25, %s26
    %p37 = scmp.eq.s32.totalorder %s17, 0
    %p38 = por %p36, %p37
    %p39 = scmp.ne.s32.totalorder %s25, %s26
    %p40 = scmp.eq.s32.totalorder %s18, 1
    %p41 = por %p39, %p40
    %p43 = scmp.ne.s32.totalorder %s26, %s42
    %p44 = scmp.eq.s32.totalorder %s18, 0
    %p45 = por %p43, %p44
    %s46 = ssub.s32 %s12, %s19
    %p47 = scmp.eq.s32.totalorder %s46, 0
    %s49 = sadd.s32 %s48, 1
    %s50 = scalar_select %p47, %s48, %s49
    %p53 = pneg %p47
    %p54 = scmp.eq.s32.totalorder %s12, 1
    %p55 = por %p53, %p54
    %p56 = scmp.ne.s32.totalorder %s48, %s51
    %p57 = scmp.eq.s32.totalorder %s12, 0
    %p58 = por %p56, %p57
    %p59 = scmp.ne.s32.totalorder %s48, %s51
    %p60 = scmp.eq.s32.totalorder %s17, 1
    %p61 = por %p59, %p60
    %p62 = scmp.ne.s32.totalorder %s51, %s52
    %p63 = scmp.eq.s32.totalorder %s17, 0
    %p64 = por %p62, %p63
    %p65 = scmp.ne.s32.totalorder %s51, %s52
    %p66 = scmp.eq.s32.totalorder %s18, 1
    %p67 = por %p65, %p66
    %p69 = scmp.ne.s32.totalorder %s52, %s68
    %p70 = scmp.eq.s32.totalorder %s18, 0
    %p71 = por %p69, %p70
    %s73 = sadd.s32 %s72, 1
    %p76 = scmp.eq.s32.totalorder %s12, 1
    %p77 = scmp.ne.s32.totalorder %s72, %s74
    %p78 = scmp.eq.s32.totalorder %s12, 0
    %p79 = por %p77, %p78
    %p80 = scmp.ne.s32.totalorder %s72, %s74
    %p81 = scmp.eq.s32.totalorder %s17, 1
    %p82 = por %p80, %p81
    %p83 = scmp.ne.s32.totalorder %s74, %s75
    %p84 = scmp.eq.s32.totalorder %s17, 0
    %p85 = por %p83, %p84
    %p86 = scmp.ne.s32.totalorder %s74, %s75
    %p87 = scmp.eq.s32.totalorder %s18, 1
    %p88 = por %p86, %p87
    %p90 = scmp.ne.s32.totalorder %s75, %s89
    %p91 = scmp.eq.s32.totalorder %s18, 0
    %p92 = por %p90, %p91
    %s94 = sadd.s32 %s93, 1
    %p97 = scmp.eq.s32.totalorder %s12, 1
    %p98 = scmp.ne.s32.totalorder %s93, %s95
    %p99 = scmp.eq.s32.totalorder %s12, 0
    %p100 = por %p98, %p99
    %p101 = scmp.ne.s32.totalorder %s93, %s95
    %p102 = scmp.eq.s32.totalorder %s17, 1
    %p103 = por %p101, %p102
    %p104 = scmp.ne.s32.totalorder %s95, %s96
    %p105 = scmp.eq.s32.totalorder %s17, 0
    %p106 = por %p104, %p105
    %p107 = scmp.ne.s32.totalorder %s95, %s96
    %p108 = scmp.eq.s32.totalorder %s18, 1
    %p109 = por %p107, %p108
    %p111 = scmp.ne.s32.totalorder %s96, %s110
    %p112 = scmp.eq.s32.totalorder %s18, 0
    %p113 = por %p111, %p112
    %s114 = ssub.s32 %s12, %s19
    %p115 = scmp.eq.s32.totalorder %s114, 0
    %s117 = sadd.s32 %s116, 1
    %s118 = scalar_select %p115, %s116, %s117
    %p121 = pneg %p115
    %p122 = scmp.eq.s32.totalorder %s12, 1
    %p123 = por %p121, %p122
    %p124 = scmp.ne.s32.totalorder %s116, %s119
    %p125 = scmp.eq.s32.totalorder %s12, 0
    %p126 = por %p124, %p125
    %p127 = scmp.ne.s32.totalorder %s116, %s119
    %p128 = scmp.eq.s32.totalorder %s17, 1
    %p129 = por %p127, %p128
    %p130 = scmp.ne.s32.totalorder %s119, %s120
    %p131 = scmp.eq.s32.totalorder %s17, 0
    %p132 = por %p130, %p131
    %p133 = scmp.ne.s32.totalorder %s119, %s120
    %p134 = scmp.eq.s32.totalorder %s18, 1
    %p135 = por %p133, %p134
    %p137 = scmp.ne.s32.totalorder %s120, %s136
    %p138 = scmp.eq.s32.totalorder %s18, 0
    %p139 = por %p137, %p138
    %s140 = ssub.s32 %s12, %s19
    %p141 = scmp.eq.s32.totalorder %s140, 0
    %s143 = sadd.s32 %s142, 1
    %s144 = scalar_select %p141, %s142, %s143
    %p147 = pneg %p141
    %p148 = scmp.eq.s32.totalorder %s12, 1
    %p149 = por %p147, %p148
    %p150 = scmp.ne.s32.totalorder %s142, %s145
    %p151 = scmp.eq.s32.totalorder %s12, 0
    %p152 = por %p150, %p151
    %p153 = scmp.ne.s32.totalorder %s142, %s145
    %p154 = scmp.eq.s32.totalorder %s17, 1
    %p155 = por %p153, %p154
    %p156 = scmp.ne.s32.totalorder %s145, %s146
    %p157 = scmp.eq.s32.totalorder %s17, 0
    %p158 = por %p156, %p157
    %p159 = scmp.ne.s32.totalorder %s145, %s146
    %p160 = scmp.eq.s32.totalorder %s18, 1
    %p161 = por %p159, %p160
    %p163 = scmp.ne.s32.totalorder %s146, %s162
    %p164 = scmp.eq.s32.totalorder %s18, 0
    %p165 = por %p163, %p164
    %p166 = scmp.le.s32.totalorder 1, %s12
    %p167 = scmp.lt.s32.totalorder %s12, 3
    %p168 = pnand %p166, %p167
    %p169 = pneg %p168
    // Predicated region
    $region9: #{rpn_forward.10} parent=5 // pred_check
      _
    $region10: #{rpn_forward.10} parent=5 // pred_check_branch
      %171 = sbr.rel (%p168) target = $region12
    $region11: #{rpn_forward.10} parent=5 // pred_region
      %s172 = ssub.s32 %s12, 1
      // Predicated region
      $region13: #{rpn_forward.10} parent=11 // pred_check
        %p173 = pneg %p85
      $region14: #{rpn_forward.10} parent=11 // pred_check_branch
        %175 = sbr.rel (%p173) target = $region16
      $region15: #{rpn_forward.10} parent=11 // pred_region
        _
      $region16: #{rpn_forward.10} parent=11 // pred_fallthru
        _
      // Predicated region
      $region17: #{rpn_forward.10} parent=11 // pred_check
        %p176 = pneg %p106
      $region18: #{rpn_forward.10} parent=11 // pred_check_branch
        %178 = sbr.rel (%p176) target = $region20
      $region19: #{rpn_forward.10} parent=11 // pred_region
        _
      $region20: #{rpn_forward.10} parent=11 // pred_fallthru
        _
    $region12: #{rpn_forward.10} parent=5 // pred_fallthru
      _
    %p179 = scmp.lt.s32.totalorder %s12, 2
    // Predicated region
    $region21: #{rpn_forward.10} parent=5 // pred_check
      %p180 = pneg %p179
    $region22: #{rpn_forward.10} parent=5 // pred_check_branch
      %182 = sbr.rel (%p180) target = $region24
    $region23: #{rpn_forward.10} parent=5 // pred_region
      // Predicated region
      $region25: #{rpn_forward.10} parent=23 // pred_check
        %p183 = pneg %p32
      $region26: #{rpn_forward.10} parent=23 // pred_check_branch
        %185 = sbr.rel (%p183) target = $region28
      $region27: #{rpn_forward.10} parent=23 // pred_region
        %s186 = smul.u32 8, %s12
        %p187 = scmp.lt.s32.totalorder %s186, 15
        %s188 = scalar_select %p187, %s186, 15
        %s189 = smul.addr %s188, 4
        %s190 = scalar_lea.vmem %s0, %s189
        %s191 = smul.u32 8, %s12
      $region28: #{rpn_forward.10} parent=23 // pred_fallthru
        _
      // Predicated region
      $region29: #{rpn_forward.10} parent=23 // pred_check
        %p192 = pneg %p58
      $region30: #{rpn_forward.10} parent=23 // pred_check_branch
        %194 = sbr.rel (%p192) target = $region32
      $region31: #{rpn_forward.10} parent=23 // pred_region
        %s195 = smul.u32 8, %s12
        %p196 = scmp.lt.s32.totalorder %s195, 15
        %s197 = scalar_select %p196, %s195, 15
        %s198 = smul.addr %s197, 4
        %s199 = scalar_lea.vmem %s1, %s198
        %s200 = smul.u32 8, %s12
      $region32: #{rpn_forward.10} parent=23 // pred_fallthru
        _
    $region24: #{rpn_forward.10} parent=5 // pred_fallthru
      _
    %p201 = scmp.le.s32.totalorder 1, %s12
    %p202 = scmp.lt.s32.totalorder %s12, 3
    %p203 = pnand %p201, %p202
    %p204 = pneg %p203
    // Predicated region
    $region33: #{rpn_forward.10} parent=5 // pred_check
      _
    $region34: #{rpn_forward.10} parent=5 // pred_check_branch
      %206 = sbr.rel (%p203) target = $region36
    $region35: #{rpn_forward.10} parent=5 // pred_region
      %s207 = ssub.s32 %s12, 1
      %s208 = smul.u32 8, %s17
      %p209 = scmp.lt.s32.totalorder %s208, 15
      %s210 = scalar_select %p209, %s208, 15
      %s211 = smul.addr %s210, 4
      %s212 = scalar_lea.vmem %s0, %s211
      %p213 = pneg %p38
      %p214 = pneg %p35
      %s215 = smul.u32 8, %s17
      %p216 = scmp.lt.s32.totalorder %s215, 15
      %s217 = scalar_select %p216, %s215, 15
      %s218 = smul.addr %s217, 4
      %s219 = scalar_lea.vmem %s1, %s218
      %p220 = pneg %p64
      %p221 = pneg %p61
      %p222 = pneg %p85
      %p223 = pneg %p82
      %p224 = pneg %p106
      %p225 = pneg %p103
      %p226 = pneg %p132
      %p227 = pneg %p129
      %s228 = smul.u32 8, %s17
      %p229 = scmp.lt.s32.totalorder %s228, 15
      %s230 = scalar_select %p229, %s228, 15
      %s231 = smul.addr %s230, 4
      %s232 = scalar_lea.vmem %s4, %s231
      %p233 = pneg %p158
      %p234 = pneg %p155
      %s235 = smul.u32 8, %s17
      %p236 = scmp.lt.s32.totalorder %s235, 15
      %s237 = scalar_select %p236, %s235, 15
      %s238 = smul.addr %s237, 4
      %s239 = scalar_lea.vmem %s5, %s238
      %s240 = smul.u32 8, %s17
      %p241 = scmp.lt.s32.totalorder %s240, 15
      %s242 = scalar_select %p241, %s240, 15
      %s243 = smul.addr %s242, 4
      %s244 = scalar_lea.vmem %s0, %s243
      %s245 = smul.u32 8, %s17
      %s246 = smul.u32 8, %s17
      %p247 = scmp.lt.s32.totalorder %s246, 15
      %s248 = scalar_select %p247, %s246, 15
      %s249 = smul.addr %s248, 4
      %s250 = scalar_lea.vmem %s1, %s249
      %s251 = smul.u32 8, %s17
      %s252 = smul.u32 8, %s17
      %p253 = scmp.lt.s32.totalorder %s252, 15
      %s254 = scalar_select %p253, %s252, 15
      %s255 = smul.addr %s254, 4
      %s256 = scalar_lea.vmem %s4, %s255
      %s257 = smul.u32 8, %s17
      %s258 = smul.u32 8, %s17
      %p259 = scmp.lt.s32.totalorder %s258, 15
      %s260 = scalar_select %p259, %s258, 15
      %s261 = smul.addr %s260, 4
      %s262 = scalar_lea.vmem %s5, %s261
      %s263 = smul.u32 8, %s17
      %v265 = vld [vmem:[%s244] sm:$0xf]
      %v266 = vld [vmem:[%s244 + $0x4] sm:$0xf]
      %v267 = vld [vmem:[%s244 + $0x8] sm:$0xf]
      %v268 = vld [vmem:[%s244 + $0xc] sm:$0xf]
      %v269 = vld [vmem:[%s244 + $0x10] sm:$0xf]
      %v270 = vld [vmem:[%s244 + $0x14] sm:$0xf]
      %v271 = vld [vmem:[%s244 + $0x18] sm:$0xf]
      %v272 = vld [vmem:[%s244 + $0x1c] sm:$0xf]
      %v273 = vld [vmem:[%s250] sm:$0xf]
      %v274 = vld [vmem:[%s250 + $0x4] sm:$0xf]
      %v275 = vld [vmem:[%s250 + $0x8] sm:$0xf]
      %v276 = vld [vmem:[%s250 + $0xc] sm:$0xf]
      %v277 = vld [vmem:[%s250 + $0x10] sm:$0xf]
      %v278 = vld [vmem:[%s250 + $0x14] sm:$0xf]
      %v279 = vld [vmem:[%s250 + $0x18] sm:$0xf]
      %v280 = vld [vmem:[%s250 + $0x1c] sm:$0xf]
      %v281 = vld [vmem:[%s2] sm:$0xf]
      %v282 = vld [vmem:[%s2 + $0x4] sm:$0xf]
      %v283 = vld [vmem:[%s3] sm:$0x1]
      %v285 = vperm.slane %v283, 0
      %v295 = vunpack.c.l.b16 %v265
      %v296 = vunpack.c.l.b16 %v266
      %v297 = vunpack.c.l.b16 %v267
      %v298 = vunpack.c.l.b16 %v268
      %v299 = vunpack.c.l.b16 %v269
      %v300 = vunpack.c.l.b16 %v270
      %v301 = vunpack.c.l.b16 %v271
      %v302 = vunpack.c.l.b16 %v272
      %v303 = vpack.c.b16 %v296, %v295
      %v304 = vpack.c.b16 %v298, %v297
      %v305 = vpack.c.b16 %v300, %v299
      %v306 = vpack.c.b16 %v302, %v301
      %v309 = vunpack.c.l.b16 %v281
      %v310 = vunpack.c.l.b16 %v282
      %v311 = vpack.c.b16 %v310, %v309
      %vm313 = vcmask 130048
      %v315 = vsel %vm313, %v303, 0
      %v318 = vsel %vm313, %v304, 0
      %v321 = vsel %vm313, %v305, 0
      %v324 = vsel %vm313, %v306, 0
      %326 = vmatpush.bf16.msra.mxu0 0
      %327 = vmatpush.bf16.msra.mxu0 0
      %328 = vmatpush.bf16.msra.mxu0 0
      %329 = vmatpush.bf16.msra.mxu0 0
      %330 = vmatpush.bf16.msra.mxu0 0
      %331 = vmatpush.bf16.msra.mxu0 0
      %332 = vmatpush.bf16.msra.mxu0 0
      %333 = vmatpush.bf16.msra.mxu0 %v311
      %334 = vmatmul.bf16.gmra.mxu0 %v315
      %v335 = vpop.f32.mrf.mxu0
      %v336 = vadd.f32 %v285, %v335
      %v337 = vpop.f32.mrf.mxu0
      %v338 = vadd.f32 %v285, %v337
      %339 = vmatmul.bf16.gmra.mxu0 %v318
      %v340 = vpop.f32.mrf.mxu0
      %v341 = vadd.f32 %v285, %v340
      %v342 = vpop.f32.mrf.mxu0
      %v343 = vadd.f32 %v285, %v342
      %344 = vmatmul.bf16.gmra.mxu0 %v321
      %v345 = vpop.f32.mrf.mxu0
      %v346 = vadd.f32 %v285, %v345
      %v347 = vpop.f32.mrf.mxu0
      %v348 = vadd.f32 %v285, %v347
      %349 = vmatmul.bf16.gmra.mxu0 %v324
      %v350 = vpop.f32.mrf.mxu0
      %v351 = vadd.f32 %v285, %v350
      %v352 = vpop.f32.mrf.mxu0
      %v353 = vadd.f32 %v285, %v352
      %354 = vdwg.mxu0
      %s355 = scalar_lea.vmem %s2, 8
      %v356 = vld [vmem:[%s355] sm:$0xf]
      %v357 = vld [vmem:[%s355 + $0x4] sm:$0xf]
      %s358 = scalar_lea.vmem %s3, 1
      %v359 = vld [vmem:[%s358] sm:$0x1]
      %v361 = vperm.slane %v359, 0
      %v371 = vunpack.c.l.b16 %v273
      %v372 = vunpack.c.l.b16 %v274
      %v373 = vunpack.c.l.b16 %v275
      %v374 = vunpack.c.l.b16 %v276
      %v375 = vunpack.c.l.b16 %v277
      %v376 = vunpack.c.l.b16 %v278
      %v377 = vunpack.c.l.b16 %v279
      %v378 = vunpack.c.l.b16 %v280
      %v379 = vpack.c.b16 %v372, %v371
      %v380 = vpack.c.b16 %v374, %v373
      %v381 = vpack.c.b16 %v376, %v375
      %v382 = vpack.c.b16 %v378, %v377
      %v385 = vunpack.c.l.b16 %v356
      %v386 = vunpack.c.l.b16 %v357
      %v387 = vpack.c.b16 %v386, %v385
      %v390 = vsel %vm313, %v379, 0
      %v393 = vsel %vm313, %v380, 0
      %v396 = vsel %vm313, %v381, 0
      %v399 = vsel %vm313, %v382, 0
      %401 = vmatpush.bf16.msra.mxu0 0
      %402 = vmatpush.bf16.msra.mxu0 0
      %403 = vmatpush.bf16.msra.mxu0 0
      %404 = vmatpush.bf16.msra.mxu0 0
      %405 = vmatpush.bf16.msra.mxu0 0
      %406 = vmatpush.bf16.msra.mxu0 0
      %407 = vmatpush.bf16.msra.mxu0 0
      %408 = vmatpush.bf16.msra.mxu0 %v387
      %409 = vmatmul.bf16.gmra.mxu0 %v390
      %v410 = vpop.f32.mrf.mxu0
      %v411 = vadd.f32 %v361, %v410
      %v412 = vpop.f32.mrf.mxu0
      %v413 = vadd.f32 %v361, %v412
      %414 = vmatmul.bf16.gmra.mxu0 %v393
      %v415 = vpop.f32.mrf.mxu0
      %v416 = vadd.f32 %v361, %v415
      %v417 = vpop.f32.mrf.mxu0
      %v418 = vadd.f32 %v361, %v417
      %419 = vmatmul.bf16.gmra.mxu0 %v396
      %v420 = vpop.f32.mrf.mxu0
      %v421 = vadd.f32 %v361, %v420
      %v422 = vpop.f32.mrf.mxu0
      %v423 = vadd.f32 %v361, %v422
      %424 = vmatmul.bf16.gmra.mxu0 %v399
      %v425 = vpop.f32.mrf.mxu0
      %v426 = vadd.f32 %v361, %v425
      %v427 = vpop.f32.mrf.mxu0
      %v428 = vadd.f32 %v361, %v427
      %429 = vdwg.mxu0
      %v430 = vmax.f32 %v336, 0.0
      %v431 = vmax.f32 %v338, 0.0
      %v432 = vmax.f32 %v341, 0.0
      %v433 = vmax.f32 %v343, 0.0
      %v434 = vmax.f32 %v346, 0.0
      %v435 = vmax.f32 %v348, 0.0
      %v436 = vmax.f32 %v351, 0.0
      %v437 = vmax.f32 %v353, 0.0
      %v438 = vpack.c.bf16 %v430, %v430
      %v439 = vpack.c.bf16 %v431, %v431
      %v440 = vpack.c.bf16 %v432, %v432
      %v441 = vpack.c.bf16 %v433, %v433
      %v442 = vpack.c.bf16 %v434, %v434
      %v443 = vpack.c.bf16 %v435, %v435
      %v444 = vpack.c.bf16 %v436, %v436
      %v445 = vpack.c.bf16 %v437, %v437
      %vm446 = vcmask 257024
      %447 = vst.msk [vmem:[%s256] sm:$0xf] %vm446, %v438
      %448 = vst.msk [vmem:[%s256 + $0x4] sm:$0xf] %vm446, %v439
      %449 = vst.msk [vmem:[%s256 + $0x8] sm:$0xf] %vm446, %v440
      %450 = vst.msk [vmem:[%s256 + $0xc] sm:$0xf] %vm446, %v441
      %451 = vst.msk [vmem:[%s256 + $0x10] sm:$0xf] %vm446, %v442
      %452 = vst.msk [vmem:[%s256 + $0x14] sm:$0xf] %vm446, %v443
      %453 = vst.msk [vmem:[%s256 + $0x18] sm:$0xf] %vm446, %v444
      %454 = vst.msk [vmem:[%s256 + $0x1c] sm:$0xf] %vm446, %v445
      %v455 = vmax.f32 %v411, 0.0
      %v456 = vmax.f32 %v413, 0.0
      %v457 = vmax.f32 %v416, 0.0
      %v458 = vmax.f32 %v418, 0.0
      %v459 = vmax.f32 %v421, 0.0
      %v460 = vmax.f32 %v423, 0.0
      %v461 = vmax.f32 %v426, 0.0
      %v462 = vmax.f32 %v428, 0.0
      %v463 = vpack.c.bf16 %v455, %v455
      %v464 = vpack.c.bf16 %v456, %v456
      %v465 = vpack.c.bf16 %v457, %v457
      %v466 = vpack.c.bf16 %v458, %v458
      %v467 = vpack.c.bf16 %v459, %v459
      %v468 = vpack.c.bf16 %v460, %v460
      %v469 = vpack.c.bf16 %v461, %v461
      %v470 = vpack.c.bf16 %v462, %v462
      %471 = vst.msk [vmem:[%s262] sm:$0xf] %vm446, %v463
      %472 = vst.msk [vmem:[%s262 + $0x4] sm:$0xf] %vm446, %v464
      %473 = vst.msk [vmem:[%s262 + $0x8] sm:$0xf] %vm446, %v465
      %474 = vst.msk [vmem:[%s262 + $0xc] sm:$0xf] %vm446, %v466
      %475 = vst.msk [vmem:[%s262 + $0x10] sm:$0xf] %vm446, %v467
      %476 = vst.msk [vmem:[%s262 + $0x14] sm:$0xf] %vm446, %v468
      %477 = vst.msk [vmem:[%s262 + $0x18] sm:$0xf] %vm446, %v469
      %478 = vst.msk [vmem:[%s262 + $0x1c] sm:$0xf] %vm446, %v470
      %s479 = smul.u32 8, %s17
      %p480 = scmp.lt.s32.totalorder %s479, 15
      %s481 = scalar_select %p480, %s479, 15
      %s482 = smul.addr %s481, 4
      %s483 = scalar_lea.vmem %s4, %s482
      %s484 = smul.u32 8, %s17
      %p485 = scmp.lt.s32.totalorder %s484, 15
      %s486 = scalar_select %p485, %s484, 15
      %s487 = smul.addr %s486, 4
      %s488 = scalar_lea.vmem %s5, %s487
      // Predicated region
      $region37: #{rpn_forward.10} parent=35 // pred_check
        %p489 = pneg %p129
      $region38: #{rpn_forward.10} parent=35 // pred_check_branch
        %491 = sbr.rel (%p489) target = $region40
      $region39: #{rpn_forward.10} parent=35 // pred_region
        %s492 = smul.u32 8, %s17
      $region40: #{rpn_forward.10} parent=35 // pred_fallthru
        _
      // Predicated region
      $region41: #{rpn_forward.10} parent=35 // pred_check
        %p493 = pneg %p155
      $region42: #{rpn_forward.10} parent=35 // pred_check_branch
        %495 = sbr.rel (%p493) target = $region44
      $region43: #{rpn_forward.10} parent=35 // pred_region
        %s496 = smul.u32 8, %s17
      $region44: #{rpn_forward.10} parent=35 // pred_fallthru
        _
    $region36: #{rpn_forward.10} parent=5 // pred_fallthru
      _
    %p497 = scmp.le.s32.totalorder 2, %s12
    // Predicated region
    $region45: #{rpn_forward.10} parent=5 // pred_check
      %p498 = pneg %p497
    $region46: #{rpn_forward.10} parent=5 // pred_check_branch
      %500 = sbr.rel (%p498) target = $region48
    $region47: #{rpn_forward.10} parent=5 // pred_region
      %s501 = ssub.s32 %s12, 2
      // Predicated region
      $region49: #{rpn_forward.10} parent=47 // pred_check
        %p502 = pneg %p135
      $region50: #{rpn_forward.10} parent=47 // pred_check_branch
        %504 = sbr.rel (%p502) target = $region52
      $region51: #{rpn_forward.10} parent=47 // pred_region
        %s505 = smul.u32 8, %s18
        %p506 = scmp.lt.s32.totalorder %s505, 15
        %s507 = scalar_select %p506, %s505, 15
        %s508 = smul.addr %s507, 4
        %s509 = scalar_lea.vmem %s4, %s508
      $region52: #{rpn_forward.10} parent=47 // pred_fallthru
        _
      // Predicated region
      $region53: #{rpn_forward.10} parent=47 // pred_check
        %p510 = pneg %p161
      $region54: #{rpn_forward.10} parent=47 // pred_check_branch
        %512 = sbr.rel (%p510) target = $region56
      $region55: #{rpn_forward.10} parent=47 // pred_region
        %s513 = smul.u32 8, %s18
        %p514 = scmp.lt.s32.totalorder %s513, 15
        %s515 = scalar_select %p514, %s513, 15
        %s516 = smul.addr %s515, 4
        %s517 = scalar_lea.vmem %s5, %s516
      $region56: #{rpn_forward.10} parent=47 // pred_fallthru
        _
    $region48: #{rpn_forward.10} parent=5 // pred_fallthru
      _
  $region6: #{rpn_forward.10} parent=0 // loop_footer
    %s16 = sadd.s32 1, %s12
  $region7: #{rpn_forward.10} parent=0 // loop_footer_branch
    %11 = sbr.rel target = $region3
  $region8: #{rpn_forward.10} parent=0 // loop_exit
    _

// kernel: rpn_forward.8
$region0: #{rpn_forward.8}
  #allocation0 [shape = 'u32[]', space=smem, size = 0x4, offset = 0x4, fixed_abs, tag = 'smem constant byte address 0x4 - core index']
  #allocation1 [shape = 'u32[72,128]{1,0:T(1,128)}', space=vmem, size = 0x9000, scoped, tag = 'internal scratch']
  %s0 = inlined_call_operand.vmem [shape: bf16[512,8], index: 0, kind: input, shape index: {}]
  %s1 = inlined_call_operand.vmem [shape: bf16[512,8], index: 1, kind: input, shape index: {}]
  %s2 = inlined_call_operand.vmem [shape: bf16[2,8,16], index: 2, kind: input, shape index: {}]
  %s3 = inlined_call_operand.vmem [shape: f32[2,1,16], index: 3, kind: input, shape index: {}]
  %s4 = inlined_call_operand.vmem [shape: bf16[512,16], index: 4, kind: output, shape index: {0}]
  %s5 = inlined_call_operand.vmem [shape: bf16[512,16], index: 5, kind: output, shape index: {1}]
  %6 = xla_tuple %s4, %s5
  %s7 = sld [smem:[#allocation0]]
  $region57: #{rpn_forward.8} parent=0
    _
  %s9 = ssub.s32 1, %s7
  %s10 = scalar_select 0, %s9, %s7
  loop: start=0, step=1, limit=4
  $region2: #{rpn_forward.8} parent=0 // loop_pre_header
    _
  $region3: #{rpn_forward.8} parent=0 // loop_header
    %s12 = sphi 0, %s16
    %p13 = scmp.ge.s32.totalorder %s12, 4
    %s22 = sphi 0, %s24
    %s25 = sphi 0, %s22
    %s26 = sphi 0, %s25
    %s42 = sphi 0, %s26
    %s48 = sphi 0, %s50
    %s51 = sphi 0, %s48
    %s52 = sphi 0, %s51
    %s68 = sphi 0, %s52
    %s72 = sphi 0, %s72
    %s74 = sphi 0, %s72
    %s75 = sphi 0, %s74
    %s89 = sphi 0, %s75
    %s93 = sphi 0, %s93
    %s95 = sphi 0, %s93
    %s96 = sphi 0, %s95
    %s110 = sphi 0, %s96
    %s116 = sphi 0, %s118
    %s119 = sphi 0, %s116
    %s120 = sphi 0, %s119
    %s136 = sphi 0, %s120
    %s142 = sphi 0, %s144
    %s145 = sphi 0, %s142
    %s146 = sphi 0, %s145
    %s162 = sphi 0, %s146
  $region4: #{rpn_forward.8} parent=0 // loop_header_branch
    %15 = sbr.rel (%p13) target = $region8
  $region5: #{rpn_forward.8} parent=0 // loop_body
    %s17 = ssub.s32 %s12, 1
    %s18 = ssub.s32 %s12, 2
    %s19 = sadd.s32 %s12, 1
    %s20 = ssub.s32 %s12, %s19
    %p21 = scmp.eq.s32.totalorder %s20, 0
    %s23 = sadd.s32 %s22, 1
    %s24 = scalar_select %p21, %s22, %s23
    %p27 = pneg %p21
    %p28 = scmp.eq.s32.totalorder %s12, 1
    %p29 = por %p27, %p28
    %p30 = scmp.ne.s32.totalorder %s22, %s25
    %p31 = scmp.eq.s32.totalorder %s12, 0
    %p32 = por %p30, %p31
    %p33 = scmp.ne.s32.totalorder %s22, %s25
    %p34 = scmp.eq.s32.totalorder %s17, 1
    %p35 = por %p33, %p34
    %p36 = scmp.ne.s32.totalorder %s25, %s26
    %p37 = scmp.eq.s32.totalorder %s17, 0
    %p38 = por %p36, %p37
    %p39 = scmp.ne.s32.totalorder %s25, %s26
    %p40 = scmp.eq.s32.totalorder %s18, 1
    %p41 = por %p39, %p40
    %p43 = scmp.ne.s32.totalorder %s26, %s42
    %p44 = scmp.eq.s32.totalorder %s18, 0
    %p45 = por %p43, %p44
    %s46 = ssub.s32 %s12, %s19
    %p47 = scmp.eq.s32.totalorder %s46, 0
    %s49 = sadd.s32 %s48, 1
    %s50 = scalar_select %p47, %s48, %s49
    %p53 = pneg %p47
    %p54 = scmp.eq.s32.totalorder %s12, 1
    %p55 = por %p53, %p54
    %p56 = scmp.ne.s32.totalorder %s48, %s51
    %p57 = scmp.eq.s32.totalorder %s12, 0
    %p58 = por %p56, %p57
    %p59 = scmp.ne.s32.totalorder %s48, %s51
    %p60 = scmp.eq.s32.totalorder %s17, 1
    %p61 = por %p59, %p60
    %p62 = scmp.ne.s32.totalorder %s51, %s52
    %p63 = scmp.eq.s32.totalorder %s17, 0
    %p64 = por %p62, %p63
    %p65 = scmp.ne.s32.totalorder %s51, %s52
    %p66 = scmp.eq.s32.totalorder %s18, 1
    %p67 = por %p65, %p66
    %p69 = scmp.ne.s32.totalorder %s52, %s68
    %p70 = scmp.eq.s32.totalorder %s18, 0
    %p71 = por %p69, %p70
    %s73 = sadd.s32 %s72, 1
    %p76 = scmp.eq.s32.totalorder %s12, 1
    %p77 = scmp.ne.s32.totalorder %s72, %s74
    %p78 = scmp.eq.s32.totalorder %s12, 0
    %p79 = por %p77, %p78
    %p80 = scmp.ne.s32.totalorder %s72, %s74
    %p81 = scmp.eq.s32.totalorder %s17, 1
    %p82 = por %p80, %p81
    %p83 = scmp.ne.s32.totalorder %s74, %s75
    %p84 = scmp.eq.s32.totalorder %s17, 0
    %p85 = por %p83, %p84
    %p86 = scmp.ne.s32.totalorder %s74, %s75
    %p87 = scmp.eq.s32.totalorder %s18, 1
    %p88 = por %p86, %p87
    %p90 = scmp.ne.s32.totalorder %s75, %s89
    %p91 = scmp.eq.s32.totalorder %s18, 0
    %p92 = por %p90, %p91
    %s94 = sadd.s32 %s93, 1
    %p97 = scmp.eq.s32.totalorder %s12, 1
    %p98 = scmp.ne.s32.totalorder %s93, %s95
    %p99 = scmp.eq.s32.totalorder %s12, 0
    %p100 = por %p98, %p99
    %p101 = scmp.ne.s32.totalorder %s93, %s95
    %p102 = scmp.eq.s32.totalorder %s17, 1
    %p103 = por %p101, %p102
    %p104 = scmp.ne.s32.totalorder %s95, %s96
    %p105 = scmp.eq.s32.totalorder %s17, 0
    %p106 = por %p104, %p105
    %p107 = scmp.ne.s32.totalorder %s95, %s96
    %p108 = scmp.eq.s32.totalorder %s18, 1
    %p109 = por %p107, %p108
    %p111 = scmp.ne.s32.totalorder %s96, %s110
    %p112 = scmp.eq.s32.totalorder %s18, 0
    %p113 = por %p111, %p112
    %s114 = ssub.s32 %s12, %s19
    %p115 = scmp.eq.s32.totalorder %s114, 0
    %s117 = sadd.s32 %s116, 1
    %s118 = scalar_select %p115, %s116, %s117
    %p121 = pneg %p115
    %p122 = scmp.eq.s32.totalorder %s12, 1
    %p123 = por %p121, %p122
    %p124 = scmp.ne.s32.totalorder %s116, %s119
    %p125 = scmp.eq.s32.totalorder %s12, 0
    %p126 = por %p124, %p125
    %p127 = scmp.ne.s32.totalorder %s116, %s119
    %p128 = scmp.eq.s32.totalorder %s17, 1
    %p129 = por %p127, %p128
    %p130 = scmp.ne.s32.totalorder %s119, %s120
    %p131 = scmp.eq.s32.totalorder %s17, 0
    %p132 = por %p130, %p131
    %p133 = scmp.ne.s32.totalorder %s119, %s120
    %p134 = scmp.eq.s32.totalorder %s18, 1
    %p135 = por %p133, %p134
    %p137 = scmp.ne.s32.totalorder %s120, %s136
    %p138 = scmp.eq.s32.totalorder %s18, 0
    %p139 = por %p137, %p138
    %s140 = ssub.s32 %s12, %s19
    %p141 = scmp.eq.s32.totalorder %s140, 0
    %s143 = sadd.s32 %s142, 1
    %s144 = scalar_select %p141, %s142, %s143
    %p147 = pneg %p141
    %p148 = scmp.eq.s32.totalorder %s12, 1
    %p149 = por %p147, %p148
    %p150 = scmp.ne.s32.totalorder %s142, %s145
    %p151 = scmp.eq.s32.totalorder %s12, 0
    %p152 = por %p150, %p151
    %p153 = scmp.ne.s32.totalorder %s142, %s145
    %p154 = scmp.eq.s32.totalorder %s17, 1
    %p155 = por %p153, %p154
    %p156 = scmp.ne.s32.totalorder %s145, %s146
    %p157 = scmp.eq.s32.totalorder %s17, 0
    %p158 = por %p156, %p157
    %p159 = scmp.ne.s32.totalorder %s145, %s146
    %p160 = scmp.eq.s32.totalorder %s18, 1
    %p161 = por %p159, %p160
    %p163 = scmp.ne.s32.totalorder %s146, %s162
    %p164 = scmp.eq.s32.totalorder %s18, 0
    %p165 = por %p163, %p164
    %p166 = scmp.le.s32.totalorder 1, %s12
    %p167 = scmp.lt.s32.totalorder %s12, 3
    %p168 = pnand %p166, %p167
    %p169 = pneg %p168
    // Predicated region
    $region9: #{rpn_forward.8} parent=5 // pred_check
      _
    $region10: #{rpn_forward.8} parent=5 // pred_check_branch
      %171 = sbr.rel (%p168) target = $region12
    $region11: #{rpn_forward.8} parent=5 // pred_region
      %s172 = ssub.s32 %s12, 1
      // Predicated region
      $region13: #{rpn_forward.8} parent=11 // pred_check
        %p173 = pneg %p85
      $region14: #{rpn_forward.8} parent=11 // pred_check_branch
        %175 = sbr.rel (%p173) target = $region16
      $region15: #{rpn_forward.8} parent=11 // pred_region
        _
      $region16: #{rpn_forward.8} parent=11 // pred_fallthru
        _
      // Predicated region
      $region17: #{rpn_forward.8} parent=11 // pred_check
        %p176 = pneg %p106
      $region18: #{rpn_forward.8} parent=11 // pred_check_branch
        %178 = sbr.rel (%p176) target = $region20
      $region19: #{rpn_forward.8} parent=11 // pred_region
        _
      $region20: #{rpn_forward.8} parent=11 // pred_fallthru
        _
    $region12: #{rpn_forward.8} parent=5 // pred_fallthru
      _
    %p179 = scmp.lt.s32.totalorder %s12, 2
    // Predicated region
    $region21: #{rpn_forward.8} parent=5 // pred_check
      %p180 = pneg %p179
    $region22: #{rpn_forward.8} parent=5 // pred_check_branch
      %182 = sbr.rel (%p180) target = $region24
    $region23: #{rpn_forward.8} parent=5 // pred_region
      // Predicated region
      $region25: #{rpn_forward.8} parent=23 // pred_check
        %p183 = pneg %p32
      $region26: #{rpn_forward.8} parent=23 // pred_check_branch
        %185 = sbr.rel (%p183) target = $region28
      $region27: #{rpn_forward.8} parent=23 // pred_region
        %s186 = smul.u32 32, %s12
        %p187 = scmp.lt.s32.totalorder %s186, 63
        %s188 = scalar_select %p187, %s186, 63
        %s189 = smul.addr %s188, 4
        %s190 = scalar_lea.vmem %s0, %s189
        %s191 = smul.u32 32, %s12
      $region28: #{rpn_forward.8} parent=23 // pred_fallthru
        _
      // Predicated region
      $region29: #{rpn_forward.8} parent=23 // pred_check
        %p192 = pneg %p58
      $region30: #{rpn_forward.8} parent=23 // pred_check_branch
        %194 = sbr.rel (%p192) target = $region32
      $region31: #{rpn_forward.8} parent=23 // pred_region
        %s195 = smul.u32 32, %s12
        %p196 = scmp.lt.s32.totalorder %s195, 63
        %s197 = scalar_select %p196, %s195, 63
        %s198 = smul.addr %s197, 4
        %s199 = scalar_lea.vmem %s1, %s198
        %s200 = smul.u32 32, %s12
      $region32: #{rpn_forward.8} parent=23 // pred_fallthru
        _
    $region24: #{rpn_forward.8} parent=5 // pred_fallthru
      _
    %p201 = scmp.le.s32.totalorder 1, %s12
    %p202 = scmp.lt.s32.totalorder %s12, 3
    %p203 = pnand %p201, %p202
    %p204 = pneg %p203
    // Predicated region
    $region33: #{rpn_forward.8} parent=5 // pred_check
      _
    $region34: #{rpn_forward.8} parent=5 // pred_check_branch
      %206 = sbr.rel (%p203) target = $region36
    $region35: #{rpn_forward.8} parent=5 // pred_region
      %s207 = ssub.s32 %s12, 1
      %s208 = smul.u32 32, %s17
      %p209 = scmp.lt.s32.totalorder %s208, 63
      %s210 = scalar_select %p209, %s208, 63
      %s211 = smul.addr %s210, 4
      %s212 = scalar_lea.vmem %s0, %s211
      %p213 = pneg %p38
      %p214 = pneg %p35
      %s215 = smul.u32 32, %s17
      %p216 = scmp.lt.s32.totalorder %s215, 63
      %s217 = scalar_select %p216, %s215, 63
      %s218 = smul.addr %s217, 4
      %s219 = scalar_lea.vmem %s1, %s218
      %p220 = pneg %p64
      %p221 = pneg %p61
      %p222 = pneg %p85
      %p223 = pneg %p82
      %p224 = pneg %p106
      %p225 = pneg %p103
      %p226 = pneg %p132
      %p227 = pneg %p129
      %s228 = smul.u32 32, %s17
      %p229 = scmp.lt.s32.totalorder %s228, 63
      %s230 = scalar_select %p229, %s228, 63
      %s231 = smul.addr %s230, 4
      %s232 = scalar_lea.vmem %s4, %s231
      %p233 = pneg %p158
      %p234 = pneg %p155
      %s235 = smul.u32 32, %s17
      %p236 = scmp.lt.s32.totalorder %s235, 63
      %s237 = scalar_select %p236, %s235, 63
      %s238 = smul.addr %s237, 4
      %s239 = scalar_lea.vmem %s5, %s238
      %s240 = smul.u32 32, %s17
      %p241 = scmp.lt.s32.totalorder %s240, 63
      %s242 = scalar_select %p241, %s240, 63
      %s243 = smul.addr %s242, 4
      %s244 = scalar_lea.vmem %s0, %s243
      %s245 = smul.u32 32, %s17
      %s246 = smul.u32 32, %s17
      %p247 = scmp.lt.s32.totalorder %s246, 63
      %s248 = scalar_select %p247, %s246, 63
      %s249 = smul.addr %s248, 4
      %s250 = scalar_lea.vmem %s1, %s249
      %s251 = smul.u32 32, %s17
      %s252 = smul.u32 32, %s17
      %p253 = scmp.lt.s32.totalorder %s252, 63
      %s254 = scalar_select %p253, %s252, 63
      %s255 = smul.addr %s254, 4
      %s256 = scalar_lea.vmem %s4, %s255
      %s257 = smul.u32 32, %s17
      %s258 = smul.u32 32, %s17
      %p259 = scmp.lt.s32.totalorder %s258, 63
      %s260 = scalar_select %p259, %s258, 63
      %s261 = smul.addr %s260, 4
      %s262 = scalar_lea.vmem %s5, %s261
      %s263 = smul.u32 32, %s17
      %v265 = vld [vmem:[%s244] sm:$0xf]
      %v266 = vld [vmem:[%s244 + $0x4] sm:$0xf]
      %v267 = vld [vmem:[%s244 + $0x8] sm:$0xf]
      %v268 = vld [vmem:[%s244 + $0xc] sm:$0xf]
      %v269 = vld [vmem:[%s244 + $0x10] sm:$0xf]
      %v270 = vld [vmem:[%s244 + $0x14] sm:$0xf]
      %v271 = vld [vmem:[%s244 + $0x18] sm:$0xf]
      %v272 = vld [vmem:[%s244 + $0x1c] sm:$0xf]
      %v273 = vld [vmem:[%s244 + $0x20] sm:$0xf]
      %v274 = vld [vmem:[%s244 + $0x24] sm:$0xf]
      %v275 = vld [vmem:[%s244 + $0x28] sm:$0xf]
      %v276 = vld [vmem:[%s244 + $0x2c] sm:$0xf]
      %v277 = vld [vmem:[%s244 + $0x30] sm:$0xf]
      %v278 = vld [vmem:[%s244 + $0x34] sm:$0xf]
      %v279 = vld [vmem:[%s244 + $0x38] sm:$0xf]
      %v280 = vld [vmem:[%s244 + $0x3c] sm:$0xf]
      %v281 = vld [vmem:[%s244 + $0x40] sm:$0xf]
      %v282 = vld [vmem:[%s244 + $0x44] sm:$0xf]
      %v283 = vld [vmem:[%s244 + $0x48] sm:$0xf]
      %v284 = vld [vmem:[%s244 + $0x4c] sm:$0xf]
      %v285 = vld [vmem:[%s244 + $0x50] sm:$0xf]
      %v286 = vld [vmem:[%s244 + $0x54] sm:$0xf]
      %v287 = vld [vmem:[%s244 + $0x58] sm:$0xf]
      %v288 = vld [vmem:[%s244 + $0x5c] sm:$0xf]
      %v289 = vld [vmem:[%s244 + $0x60] sm:$0xf]
      %v290 = vld [vmem:[%s244 + $0x64] sm:$0xf]
      %v291 = vld [vmem:[%s244 + $0x68] sm:$0xf]
      %v292 = vld [vmem:[%s244 + $0x6c] sm:$0xf]
      %v293 = vld [vmem:[%s244 + $0x70] sm:$0xf]
      %v294 = vld [vmem:[%s244 + $0x74] sm:$0xf]
      %v295 = vld [vmem:[%s244 + $0x78] sm:$0xf]
      %v296 = vld [vmem:[%s244 + $0x7c] sm:$0xf]
      %v297 = vld [vmem:[%s250] sm:$0xf]
      %v298 = vld [vmem:[%s250 + $0x4] sm:$0xf]
      %v299 = vld [vmem:[%s250 + $0x8] sm:$0xf]
      %v300 = vld [vmem:[%s250 + $0xc] sm:$0xf]
      %v301 = vld [vmem:[%s250 + $0x10] sm:$0xf]
      %v302 = vld [vmem:[%s250 + $0x14] sm:$0xf]
      %v303 = vld [vmem:[%s250 + $0x18] sm:$0xf]
      %v304 = vld [vmem:[%s250 + $0x1c] sm:$0xf]
      %v305 = vld [vmem:[%s250 + $0x20] sm:$0xf]
      %v306 = vld [vmem:[%s250 + $0x24] sm:$0xf]
      %v307 = vld [vmem:[%s250 + $0x28] sm:$0xf]
      %v308 = vld [vmem:[%s250 + $0x2c] sm:$0xf]
      %v309 = vld [vmem:[%s250 + $0x30] sm:$0xf]
      %v310 = vld [vmem:[%s250 + $0x34] sm:$0xf]
      %v311 = vld [vmem:[%s250 + $0x38] sm:$0xf]
      %v312 = vld [vmem:[%s250 + $0x3c] sm:$0xf]
      %v313 = vld [vmem:[%s250 + $0x40] sm:$0xf]
      %v314 = vld [vmem:[%s250 + $0x44] sm:$0xf]
      %v315 = vld [vmem:[%s250 + $0x48] sm:$0xf]
      %v316 = vld [vmem:[%s250 + $0x4c] sm:$0xf]
      %v317 = vld [vmem:[%s250 + $0x50] sm:$0xf]
      %v318 = vld [vmem:[%s250 + $0x54] sm:$0xf]
      %v319 = vld [vmem:[%s250 + $0x58] sm:$0xf]
      %v320 = vld [vmem:[%s250 + $0x5c] sm:$0xf]
      %v321 = vld [vmem:[%s250 + $0x60] sm:$0xf]
      %v322 = vld [vmem:[%s250 + $0x64] sm:$0xf]
      %v323 = vld [vmem:[%s250 + $0x68] sm:$0xf]
      %v324 = vld [vmem:[%s250 + $0x6c] sm:$0xf]
      %v325 = vld [vmem:[%s250 + $0x70] sm:$0xf]
      %v326 = vld [vmem:[%s250 + $0x74] sm:$0xf]
      %v327 = vld [vmem:[%s250 + $0x78] sm:$0xf]
      %v328 = vld [vmem:[%s250 + $0x7c] sm:$0xf]
      %v329 = vld [vmem:[%s2] sm:$0xf]
      %v330 = vld [vmem:[%s3] sm:$0x1]
      %v332 = vperm.slane %v330, 0
      %v366 = vunpack.c.l.b16 %v265
      %v367 = vunpack.c.l.b16 %v266
      %v368 = vunpack.c.l.b16 %v267
      %v369 = vunpack.c.l.b16 %v268
      %v370 = vunpack.c.l.b16 %v269
      %v371 = vunpack.c.l.b16 %v270
      %v372 = vunpack.c.l.b16 %v271
      %v373 = vunpack.c.l.b16 %v272
      %v374 = vunpack.c.l.b16 %v273
      %v375 = vunpack.c.l.b16 %v274
      %v376 = vunpack.c.l.b16 %v275
      %v377 = vunpack.c.l.b16 %v276
      %v378 = vunpack.c.l.b16 %v277
      %v379 = vunpack.c.l.b16 %v278
      %v380 = vunpack.c.l.b16 %v279
      %v381 = vunpack.c.l.b16 %v280
      %v382 = vunpack.c.l.b16 %v281
      %v383 = vunpack.c.l.b16 %v282
      %v384 = vunpack.c.l.b16 %v283
      %v385 = vunpack.c.l.b16 %v284
      %v386 = vunpack.c.l.b16 %v285
      %v387 = vunpack.c.l.b16 %v286
      %v388 = vunpack.c.l.b16 %v287
      %v389 = vunpack.c.l.b16 %v288
      %v390 = vunpack.c.l.b16 %v289
      %v391 = vunpack.c.l.b16 %v290
      %v392 = vunpack.c.l.b16 %v291
      %v393 = vunpack.c.l.b16 %v292
      %v394 = vunpack.c.l.b16 %v293
      %v395 = vunpack.c.l.b16 %v294
      %v396 = vunpack.c.l.b16 %v295
      %v397 = vunpack.c.l.b16 %v296
      %v398 = vpack.c.b16 %v367, %v366
      %v399 = vpack.c.b16 %v369, %v368
      %v400 = vpack.c.b16 %v371, %v370
      %v401 = vpack.c.b16 %v373, %v372
      %v402 = vpack.c.b16 %v375, %v374
      %v403 = vpack.c.b16 %v377, %v376
      %v404 = vpack.c.b16 %v379, %v378
      %v405 = vpack.c.b16 %v381, %v380
      %v406 = vpack.c.b16 %v383, %v382
      %v407 = vpack.c.b16 %v385, %v384
      %v408 = vpack.c.b16 %v387, %v386
      %v409 = vpack.c.b16 %v389, %v388
      %v410 = vpack.c.b16 %v391, %v390
      %v411 = vpack.c.b16 %v393, %v392
      %v412 = vpack.c.b16 %v395, %v394
      %v413 = vpack.c.b16 %v397, %v396
      %vm414 = vcmask 64512
      %v416 = vsel %vm414, %v398, 0
      %v419 = vsel %vm414, %v399, 0
      %v422 = vsel %vm414, %v400, 0
      %v425 = vsel %vm414, %v401, 0
      %v428 = vsel %vm414, %v402, 0
      %v431 = vsel %vm414, %v403, 0
      %v434 = vsel %vm414, %v404, 0
      %v437 = vsel %vm414, %v405, 0
      %v440 = vsel %vm414, %v406, 0
      %v443 = vsel %vm414, %v407, 0
      %v446 = vsel %vm414, %v408, 0
      %v449 = vsel %vm414, %v409, 0
      %v452 = vsel %vm414, %v410, 0
      %v455 = vsel %vm414, %v411, 0
      %v458 = vsel %vm414, %v412, 0
      %v461 = vsel %vm414, %v413, 0
      %vm463 = vcmask 1043456
      %v465 = vsel %vm463, %v329, 0
      %467 = vmatpush.bf16.msra.mxu0 0
      %468 = vmatpush.bf16.msra.mxu0 0
      %469 = vmatpush.bf16.msra.mxu0 0
      %470 = vmatpush.bf16.msra.mxu0 0
      %471 = vmatpush.bf16.msra.mxu0 0
      %472 = vmatpush.bf16.msra.mxu0 0
      %473 = vmatpush.bf16.msra.mxu0 0
      %474 = vmatpush.bf16.msra.mxu0 %v465
      %475 = vmatmul.bf16.gmra.mxu0 %v416
      %v476 = vpop.f32.mrf.mxu0
      %v477 = vadd.f32 %v332, %v476
      %v478 = vpop.f32.mrf.mxu0
      %v479 = vadd.f32 %v332, %v478
      %480 = vmatmul.bf16.gmra.mxu0 %v419
      %v481 = vpop.f32.mrf.mxu0
      %v482 = vadd.f32 %v332, %v481
      %v483 = vpop.f32.mrf.mxu0
      %v484 = vadd.f32 %v332, %v483
      %485 = vmatmul.bf16.gmra.mxu0 %v422
      %v486 = vpop.f32.mrf.mxu0
      %v487 = vadd.f32 %v332, %v486
      %v488 = vpop.f32.mrf.mxu0
      %v489 = vadd.f32 %v332, %v488
      %490 = vmatmul.bf16.gmra.mxu0 %v425
      %v491 = vpop.f32.mrf.mxu0
      %v492 = vadd.f32 %v332, %v491
      %v493 = vpop.f32.mrf.mxu0
      %v494 = vadd.f32 %v332, %v493
      %495 = vmatmul.bf16.gmra.mxu0 %v428
      %v496 = vpop.f32.mrf.mxu0
      %v497 = vadd.f32 %v332, %v496
      %v498 = vpop.f32.mrf.mxu0
      %v499 = vadd.f32 %v332, %v498
      %500 = vmatmul.bf16.gmra.mxu0 %v431
      %v501 = vpop.f32.mrf.mxu0
      %v502 = vadd.f32 %v332, %v501
      %v503 = vpop.f32.mrf.mxu0
      %v504 = vadd.f32 %v332, %v503
      %505 = vmatmul.bf16.gmra.mxu0 %v434
      %v506 = vpop.f32.mrf.mxu0
      %v507 = vadd.f32 %v332, %v506
      %v508 = vpop.f32.mrf.mxu0
      %v509 = vadd.f32 %v332, %v508
      %510 = vmatmul.bf16.gmra.mxu0 %v437
      %v511 = vpop.f32.mrf.mxu0
      %v512 = vadd.f32 %v332, %v511
      %v513 = vpop.f32.mrf.mxu0
      %v514 = vadd.f32 %v332, %v513
      %515 = vmatmul.bf16.gmra.mxu0 %v440
      %v516 = vpop.f32.mrf.mxu0
      %v517 = vadd.f32 %v332, %v516
      %v518 = vpop.f32.mrf.mxu0
      %v519 = vadd.f32 %v332, %v518
      %520 = vmatmul.bf16.gmra.mxu0 %v443
      %v521 = vpop.f32.mrf.mxu0
      %v522 = vadd.f32 %v332, %v521
      %v523 = vpop.f32.mrf.mxu0
      %v524 = vadd.f32 %v332, %v523
      %525 = vmatmul.bf16.gmra.mxu0 %v446
      %v526 = vpop.f32.mrf.mxu0
      %v527 = vadd.f32 %v332, %v526
      %v528 = vpop.f32.mrf.mxu0
      %v529 = vadd.f32 %v332, %v528
      %530 = vmatmul.bf16.gmra.mxu0 %v449
      %v531 = vpop.f32.mrf.mxu0
      %v532 = vadd.f32 %v332, %v531
      %v533 = vpop.f32.mrf.mxu0
      %v534 = vadd.f32 %v332, %v533
      %535 = vmatmul.bf16.gmra.mxu0 %v452
      %v536 = vpop.f32.mrf.mxu0
      %v537 = vadd.f32 %v332, %v536
      %v538 = vpop.f32.mrf.mxu0
      %v539 = vadd.f32 %v332, %v538
      %540 = vmatmul.bf16.gmra.mxu0 %v455
      %v541 = vpop.f32.mrf.mxu0
      %v542 = vadd.f32 %v332, %v541
      %v543 = vpop.f32.mrf.mxu0
      %v544 = vadd.f32 %v332, %v543
      %545 = vmatmul.bf16.gmra.mxu0 %v458
      %v546 = vpop.f32.mrf.mxu0
      %v547 = vadd.f32 %v332, %v546
      %v548 = vpop.f32.mrf.mxu0
      %v549 = vadd.f32 %v332, %v548
      %550 = vmatmul.bf16.gmra.mxu0 %v461
      %v551 = vpop.f32.mrf.mxu0
      %v552 = vadd.f32 %v332, %v551
      %v553 = vpop.f32.mrf.mxu0
      %v554 = vadd.f32 %v332, %v553
      %555 = vdwg.mxu0
      %s556 = scalar_lea.vmem %s2, 4
      %v557 = vld [vmem:[%s556] sm:$0xf]
      %s558 = scalar_lea.vmem %s3, 1
      %v559 = vld [vmem:[%s558] sm:$0x1]
      %v561 = vperm.slane %v559, 0
      %v595 = vunpack.c.l.b16 %v297
      %v596 = vunpack.c.l.b16 %v298
      %v597 = vunpack.c.l.b16 %v299
      %v598 = vunpack.c.l.b16 %v300
      %v599 = vunpack.c.l.b16 %v301
      %v600 = vunpack.c.l.b16 %v302
      %v601 = vunpack.c.l.b16 %v303
      %v602 = vunpack.c.l.b16 %v304
      %v603 = vunpack.c.l.b16 %v305
      %v604 = vunpack.c.l.b16 %v306
      %v605 = vunpack.c.l.b16 %v307
      %v606 = vunpack.c.l.b16 %v308
      %v607 = vunpack.c.l.b16 %v309
      %v608 = vunpack.c.l.b16 %v310
      %v609 = vunpack.c.l.b16 %v311
      %v610 = vunpack.c.l.b16 %v312
      %v611 = vunpack.c.l.b16 %v313
      %v612 = vunpack.c.l.b16 %v314
      %v613 = vunpack.c.l.b16 %v315
      %v614 = vunpack.c.l.b16 %v316
      %v615 = vunpack.c.l.b16 %v317
      %v616 = vunpack.c.l.b16 %v318
      %v617 = vunpack.c.l.b16 %v319
      %v618 = vunpack.c.l.b16 %v320
      %v619 = vunpack.c.l.b16 %v321
      %v620 = vunpack.c.l.b16 %v322
      %v621 = vunpack.c.l.b16 %v323
      %v622 = vunpack.c.l.b16 %v324
      %v623 = vunpack.c.l.b16 %v325
      %v624 = vunpack.c.l.b16 %v326
      %v625 = vunpack.c.l.b16 %v327
      %v626 = vunpack.c.l.b16 %v328
      %v627 = vpack.c.b16 %v596, %v595
      %v628 = vpack.c.b16 %v598, %v597
      %v629 = vpack.c.b16 %v600, %v599
      %v630 = vpack.c.b16 %v602, %v601
      %v631 = vpack.c.b16 %v604, %v603
      %v632 = vpack.c.b16 %v606, %v605
      %v633 = vpack.c.b16 %v608, %v607
      %v634 = vpack.c.b16 %v610, %v609
      %v635 = vpack.c.b16 %v612, %v611
      %v636 = vpack.c.b16 %v614, %v613
      %v637 = vpack.c.b16 %v616, %v615
      %v638 = vpack.c.b16 %v618, %v617
      %v639 = vpack.c.b16 %v620, %v619
      %v640 = vpack.c.b16 %v622, %v621
      %v641 = vpack.c.b16 %v624, %v623
      %v642 = vpack.c.b16 %v626, %v625
      %v644 = vsel %vm414, %v627, 0
      %v647 = vsel %vm414, %v628, 0
      %v650 = vsel %vm414, %v629, 0
      %v653 = vsel %vm414, %v630, 0
      %v656 = vsel %vm414, %v631, 0
      %v659 = vsel %vm414, %v632, 0
      %v662 = vsel %vm414, %v633, 0
      %v665 = vsel %vm414, %v634, 0
      %v668 = vsel %vm414, %v635, 0
      %v671 = vsel %vm414, %v636, 0
      %v674 = vsel %vm414, %v637, 0
      %v677 = vsel %vm414, %v638, 0
      %v680 = vsel %vm414, %v639, 0
      %v683 = vsel %vm414, %v640, 0
      %v686 = vsel %vm414, %v641, 0
      %v689 = vsel %vm414, %v642, 0
      %v692 = vsel %vm463, %v557, 0
      %694 = vmatpush.bf16.msra.mxu0 0
      %695 = vmatpush.bf16.msra.mxu0 0
      %696 = vmatpush.bf16.msra.mxu0 0
      %697 = vmatpush.bf16.msra.mxu0 0
      %698 = vmatpush.bf16.msra.mxu0 0
      %699 = vmatpush.bf16.msra.mxu0 0
      %700 = vmatpush.bf16.msra.mxu0 0
      %701 = vmatpush.bf16.msra.mxu0 %v692
      %702 = vmatmul.bf16.gmra.mxu0 %v644
      %v703 = vpop.f32.mrf.mxu0
      %v704 = vadd.f32 %v561, %v703
      %v705 = vpop.f32.mrf.mxu0
      %v706 = vadd.f32 %v561, %v705
      %707 = vmatmul.bf16.gmra.mxu0 %v647
      %v708 = vpop.f32.mrf.mxu0
      %v709 = vadd.f32 %v561, %v708
      %v710 = vpop.f32.mrf.mxu0
      %v711 = vadd.f32 %v561, %v710
      %712 = vmatmul.bf16.gmra.mxu0 %v650
      %v713 = vpop.f32.mrf.mxu0
      %v714 = vadd.f32 %v561, %v713
      %v715 = vpop.f32.mrf.mxu0
      %v716 = vadd.f32 %v561, %v715
      %717 = vmatmul.bf16.gmra.mxu0 %v653
      %v718 = vpop.f32.mrf.mxu0
      %v719 = vadd.f32 %v561, %v718
      %v720 = vpop.f32.mrf.mxu0
      %v721 = vadd.f32 %v561, %v720
      %722 = vmatmul.bf16.gmra.mxu0 %v656
      %v723 = vpop.f32.mrf.mxu0
      %v724 = vadd.f32 %v561, %v723
      %v725 = vpop.f32.mrf.mxu0
      %v726 = vadd.f32 %v561, %v725
      %727 = vmatmul.bf16.gmra.mxu0 %v659
      %v728 = vpop.f32.mrf.mxu0
      %v729 = vadd.f32 %v561, %v728
      %v730 = vpop.f32.mrf.mxu0
      %v731 = vadd.f32 %v561, %v730
      %732 = vmatmul.bf16.gmra.mxu0 %v662
      %v733 = vpop.f32.mrf.mxu0
      %v734 = vadd.f32 %v561, %v733
      %v735 = vpop.f32.mrf.mxu0
      %v736 = vadd.f32 %v561, %v735
      %737 = vmatmul.bf16.gmra.mxu0 %v665
      %v738 = vpop.f32.mrf.mxu0
      %v739 = vadd.f32 %v561, %v738
      %v740 = vpop.f32.mrf.mxu0
      %v741 = vadd.f32 %v561, %v740
      %742 = vmatmul.bf16.gmra.mxu0 %v668
      %v743 = vpop.f32.mrf.mxu0
      %v744 = vadd.f32 %v561, %v743
      %v745 = vpop.f32.mrf.mxu0
      %v746 = vadd.f32 %v561, %v745
      %747 = vmatmul.bf16.gmra.mxu0 %v671
      %v748 = vpop.f32.mrf.mxu0
      %v749 = vadd.f32 %v561, %v748
      %v750 = vpop.f32.mrf.mxu0
      %v751 = vadd.f32 %v561, %v750
      %752 = vmatmul.bf16.gmra.mxu0 %v674
      %v753 = vpop.f32.mrf.mxu0
      %v754 = vadd.f32 %v561, %v753
      %v755 = vpop.f32.mrf.mxu0
      %v756 = vadd.f32 %v561, %v755
      %757 = vmatmul.bf16.gmra.mxu0 %v677
      %v758 = vpop.f32.mrf.mxu0
      %v759 = vadd.f32 %v561, %v758
      %v760 = vpop.f32.mrf.mxu0
      %v761 = vadd.f32 %v561, %v760
      %762 = vmatmul.bf16.gmra.mxu0 %v680
      %v763 = vpop.f32.mrf.mxu0
      %v764 = vadd.f32 %v561, %v763
      %v765 = vpop.f32.mrf.mxu0
      %v766 = vadd.f32 %v561, %v765
      %767 = vmatmul.bf16.gmra.mxu0 %v683
      %v768 = vpop.f32.mrf.mxu0
      %v769 = vadd.f32 %v561, %v768
      %v770 = vpop.f32.mrf.mxu0
      %v771 = vadd.f32 %v561, %v770
      %772 = vmatmul.bf16.gmra.mxu0 %v686
      %v773 = vpop.f32.mrf.mxu0
      %v774 = vadd.f32 %v561, %v773
      %v775 = vpop.f32.mrf.mxu0
      %v776 = vadd.f32 %v561, %v775
      %777 = vmatmul.bf16.gmra.mxu0 %v689
      %v778 = vpop.f32.mrf.mxu0
      %v779 = vadd.f32 %v561, %v778
      %v780 = vpop.f32.mrf.mxu0
      %v781 = vadd.f32 %v561, %v780
      %782 = vdwg.mxu0
      %v783 = vmax.f32 %v477, 0.0
      %v784 = vmax.f32 %v479, 0.0
      %v785 = vmax.f32 %v482, 0.0
      %v786 = vmax.f32 %v484, 0.0
      %v787 = vmax.f32 %v487, 0.0
      %v788 = vmax.f32 %v489, 0.0
      %v789 = vmax.f32 %v492, 0.0
      %v790 = vmax.f32 %v494, 0.0
      %v791 = vmax.f32 %v497, 0.0
      %v792 = vmax.f32 %v499, 0.0
      %v793 = vmax.f32 %v502, 0.0
      %v794 = vmax.f32 %v504, 0.0
      %v795 = vmax.f32 %v507, 0.0
      %v796 = vmax.f32 %v509, 0.0
      %v797 = vmax.f32 %v512, 0.0
      %v798 = vmax.f32 %v514, 0.0
      %v799 = vmax.f32 %v517, 0.0
      %v800 = vmax.f32 %v519, 0.0
      %v801 = vmax.f32 %v522, 0.0
      %v802 = vmax.f32 %v524, 0.0
      %v803 = vmax.f32 %v527, 0.0
      %v804 = vmax.f32 %v529, 0.0
      %v805 = vmax.f32 %v532, 0.0
      %v806 = vmax.f32 %v534, 0.0
      %v807 = vmax.f32 %v537, 0.0
      %v808 = vmax.f32 %v539, 0.0
      %v809 = vmax.f32 %v542, 0.0
      %v810 = vmax.f32 %v544, 0.0
      %v811 = vmax.f32 %v547, 0.0
      %v812 = vmax.f32 %v549, 0.0
      %v813 = vmax.f32 %v552, 0.0
      %v814 = vmax.f32 %v554, 0.0
      %v815 = vpack.c.bf16 %v783, %v783
      %v816 = vpack.c.bf16 %v784, %v784
      %v817 = vpack.c.bf16 %v785, %v785
      %v818 = vpack.c.bf16 %v786, %v786
      %v819 = vpack.c.bf16 %v787, %v787
      %v820 = vpack.c.bf16 %v788, %v788
      %v821 = vpack.c.bf16 %v789, %v789
      %v822 = vpack.c.bf16 %v790, %v790
      %v823 = vpack.c.bf16 %v791, %v791
      %v824 = vpack.c.bf16 %v792, %v792
      %v825 = vpack.c.bf16 %v793, %v793
      %v826 = vpack.c.bf16 %v794, %v794
      %v827 = vpack.c.bf16 %v795, %v795
      %v828 = vpack.c.bf16 %v796, %v796
      %v829 = vpack.c.bf16 %v797, %v797
      %v830 = vpack.c.bf16 %v798, %v798
      %v831 = vpack.c.bf16 %v799, %v799
      %v832 = vpack.c.bf16 %v800, %v800
      %v833 = vpack.c.bf16 %v801, %v801
      %v834 = vpack.c.bf16 %v802, %v802
      %v835 = vpack.c.bf16 %v803, %v803
      %v836 = vpack.c.bf16 %v804, %v804
      %v837 = vpack.c.bf16 %v805, %v805
      %v838 = vpack.c.bf16 %v806, %v806
      %v839 = vpack.c.bf16 %v807, %v807
      %v840 = vpack.c.bf16 %v808, %v808
      %v841 = vpack.c.bf16 %v809, %v809
      %v842 = vpack.c.bf16 %v810, %v810
      %v843 = vpack.c.bf16 %v811, %v811
      %v844 = vpack.c.bf16 %v812, %v812
      %v845 = vpack.c.bf16 %v813, %v813
      %v846 = vpack.c.bf16 %v814, %v814
      %vm847 = vcmask 125952
      %848 = vst.msk [vmem:[%s256] sm:$0xf] %vm847, %v815
      %849 = vst.msk [vmem:[%s256 + $0x4] sm:$0xf] %vm847, %v816
      %850 = vst.msk [vmem:[%s256 + $0x8] sm:$0xf] %vm847, %v817
      %851 = vst.msk [vmem:[%s256 + $0xc] sm:$0xf] %vm847, %v818
      %852 = vst.msk [vmem:[%s256 + $0x10] sm:$0xf] %vm847, %v819
      %853 = vst.msk [vmem:[%s256 + $0x14] sm:$0xf] %vm847, %v820
      %854 = vst.msk [vmem:[%s256 + $0x18] sm:$0xf] %vm847, %v821
      %855 = vst.msk [vmem:[%s256 + $0x1c] sm:$0xf] %vm847, %v822
      %856 = vst.msk [vmem:[%s256 + $0x20] sm:$0xf] %vm847, %v823
      %857 = vst.msk [vmem:[%s256 + $0x24] sm:$0xf] %vm847, %v824
      %858 = vst.msk [vmem:[%s256 + $0x28] sm:$0xf] %vm847, %v825
      %859 = vst.msk [vmem:[%s256 + $0x2c] sm:$0xf] %vm847, %v826
      %860 = vst.msk [vmem:[%s256 + $0x30] sm:$0xf] %vm847, %v827
      %861 = vst.msk [vmem:[%s256 + $0x34] sm:$0xf] %vm847, %v828
      %862 = vst.msk [vmem:[%s256 + $0x38] sm:$0xf] %vm847, %v829
      %863 = vst.msk [vmem:[%s256 + $0x3c] sm:$0xf] %vm847, %v830
      %864 = vst.msk [vmem:[%s256 + $0x40] sm:$0xf] %vm847, %v831
      %865 = vst.msk [vmem:[%s256 + $0x44] sm:$0xf] %vm847, %v832
      %866 = vst.msk [vmem:[%s256 + $0x48] sm:$0xf] %vm847, %v833
      %867 = vst.msk [vmem:[%s256 + $0x4c] sm:$0xf] %vm847, %v834
      %868 = vst.msk [vmem:[%s256 + $0x50] sm:$0xf] %vm847, %v835
      %869 = vst.msk [vmem:[%s256 + $0x54] sm:$0xf] %vm847, %v836
      %870 = vst.msk [vmem:[%s256 + $0x58] sm:$0xf] %vm847, %v837
      %871 = vst.msk [vmem:[%s256 + $0x5c] sm:$0xf] %vm847, %v838
      %872 = vst.msk [vmem:[%s256 + $0x60] sm:$0xf] %vm847, %v839
      %873 = vst.msk [vmem:[%s256 + $0x64] sm:$0xf] %vm847, %v840
      %874 = vst.msk [vmem:[%s256 + $0x68] sm:$0xf] %vm847, %v841
      %875 = vst.msk [vmem:[%s256 + $0x6c] sm:$0xf] %vm847, %v842
      %876 = vst.msk [vmem:[%s256 + $0x70] sm:$0xf] %vm847, %v843
      %877 = vst.msk [vmem:[%s256 + $0x74] sm:$0xf] %vm847, %v844
      %878 = vst.msk [vmem:[%s256 + $0x78] sm:$0xf] %vm847, %v845
      %879 = vst.msk [vmem:[%s256 + $0x7c] sm:$0xf] %vm847, %v846
      %v880 = vmax.f32 %v704, 0.0
      %v881 = vmax.f32 %v706, 0.0
      %v882 = vmax.f32 %v709, 0.0
      %v883 = vmax.f32 %v711, 0.0
      %v884 = vmax.f32 %v714, 0.0
      %v885 = vmax.f32 %v716, 0.0
      %v886 = vmax.f32 %v719, 0.0
      %v887 = vmax.f32 %v721, 0.0
      %v888 = vmax.f32 %v724, 0.0
      %v889 = vmax.f32 %v726, 0.0
      %v890 = vmax.f32 %v729, 0.0
      %v891 = vmax.f32 %v731, 0.0
      %v892 = vmax.f32 %v734, 0.0
      %v893 = vmax.f32 %v736, 0.0
      %v894 = vmax.f32 %v739, 0.0
      %v895 = vmax.f32 %v741, 0.0
      %v896 = vmax.f32 %v744, 0.0
      %v897 = vmax.f32 %v746, 0.0
      %v898 = vmax.f32 %v749, 0.0
      %v899 = vmax.f32 %v751, 0.0
      %v900 = vmax.f32 %v754, 0.0
      %v901 = vmax.f32 %v756, 0.0
      %v902 = vmax.f32 %v759, 0.0
      %v903 = vmax.f32 %v761, 0.0
      %v904 = vmax.f32 %v764, 0.0
      %v905 = vmax.f32 %v766, 0.0
      %v906 = vmax.f32 %v769, 0.0
      %v907 = vmax.f32 %v771, 0.0
      %v908 = vmax.f32 %v774, 0.0
      %v909 = vmax.f32 %v776, 0.0
      %v910 = vmax.f32 %v779, 0.0
      %v911 = vmax.f32 %v781, 0.0
      %v912 = vpack.c.bf16 %v880, %v880
      %v913 = vpack.c.bf16 %v881, %v881
      %v914 = vpack.c.bf16 %v882, %v882
      %v915 = vpack.c.bf16 %v883, %v883
      %v916 = vpack.c.bf16 %v884, %v884
      %v917 = vpack.c.bf16 %v885, %v885
      %v918 = vpack.c.bf16 %v886, %v886
      %v919 = vpack.c.bf16 %v887, %v887
      %v920 = vpack.c.bf16 %v888, %v888
      %v921 = vpack.c.bf16 %v889, %v889
      %v922 = vpack.c.bf16 %v890, %v890
      %v923 = vpack.c.bf16 %v891, %v891
      %v924 = vpack.c.bf16 %v892, %v892
      %v925 = vpack.c.bf16 %v893, %v893
      %v926 = vpack.c.bf16 %v894, %v894
      %v927 = vpack.c.bf16 %v895, %v895
      %v928 = vpack.c.bf16 %v896, %v896
      %v929 = vpack.c.bf16 %v897, %v897
      %v930 = vpack.c.bf16 %v898, %v898
      %v931 = vpack.c.bf16 %v899, %v899
      %v932 = vpack.c.bf16 %v900, %v900
      %v933 = vpack.c.bf16 %v901, %v901
      %v934 = vpack.c.bf16 %v902, %v902
      %v935 = vpack.c.bf16 %v903, %v903
      %v936 = vpack.c.bf16 %v904, %v904
      %v937 = vpack.c.bf16 %v905, %v905
      %v938 = vpack.c.bf16 %v906, %v906
      %v939 = vpack.c.bf16 %v907, %v907
      %v940 = vpack.c.bf16 %v908, %v908
      %v941 = vpack.c.bf16 %v909, %v909
      %v942 = vpack.c.bf16 %v910, %v910
      %v943 = vpack.c.bf16 %v911, %v911
      %944 = vst.msk [vmem:[%s262] sm:$0xf] %vm847, %v912
      %945 = vst.msk [vmem:[%s262 + $0x4] sm:$0xf] %vm847, %v913
      %946 = vst.msk [vmem:[%s262 + $0x8] sm:$0xf] %vm847, %v914
      %947 = vst.msk [vmem:[%s262 + $0xc] sm:$0xf] %vm847, %v915
      %948 = vst.msk [vmem:[%s262 + $0x10] sm:$0xf] %vm847, %v916
      %949 = vst.msk [vmem:[%s262 + $0x14] sm:$0xf] %vm847, %v917
      %950 = vst.msk [vmem:[%s262 + $0x18] sm:$0xf] %vm847, %v918
      %951 = vst.msk [vmem:[%s262 + $0x1c] sm:$0xf] %vm847, %v919
      %952 = vst.msk [vmem:[%s262 + $0x20] sm:$0xf] %vm847, %v920
      %953 = vst.msk [vmem:[%s262 + $0x24] sm:$0xf] %vm847, %v921
      %954 = vst.msk [vmem:[%s262 + $0x28] sm:$0xf] %vm847, %v922
      %955 = vst.msk [vmem:[%s262 + $0x2c] sm:$0xf] %vm847, %v923
      %956 = vst.msk [vmem:[%s262 + $0x30] sm:$0xf] %vm847, %v924
      %957 = vst.msk [vmem:[%s262 + $0x34] sm:$0xf] %vm847, %v925
      %958 = vst.msk [vmem:[%s262 + $0x38] sm:$0xf] %vm847, %v926
      %959 = vst.msk [vmem:[%s262 + $0x3c] sm:$0xf] %vm847, %v927
      %960 = vst.msk [vmem:[%s262 + $0x40] sm:$0xf] %vm847, %v928
      %961 = vst.msk [vmem:[%s262 + $0x44] sm:$0xf] %vm847, %v929
      %962 = vst.msk [vmem:[%s262 + $0x48] sm:$0xf] %vm847, %v930
      %963 = vst.msk [vmem:[%s262 + $0x4c] sm:$0xf] %vm847, %v931
      %964 = vst.msk [vmem:[%s262 + $0x50] sm:$0xf] %vm847, %v932
      %965 = vst.msk [vmem:[%s262 + $0x54] sm:$0xf] %vm847, %v933
      %966 = vst.msk [vmem:[%s262 + $0x58] sm:$0xf] %vm847, %v934
      %967 = vst.msk [vmem:[%s262 + $0x5c] sm:$0xf] %vm847, %v935
      %968 = vst.msk [vmem:[%s262 + $0x60] sm:$0xf] %vm847, %v936
      %969 = vst.msk [vmem:[%s262 + $0x64] sm:$0xf] %vm847, %v937
      %970 = vst.msk [vmem:[%s262 + $0x68] sm:$0xf] %vm847, %v938
      %971 = vst.msk [vmem:[%s262 + $0x6c] sm:$0xf] %vm847, %v939
      %972 = vst.msk [vmem:[%s262 + $0x70] sm:$0xf] %vm847, %v940
      %973 = vst.msk [vmem:[%s262 + $0x74] sm:$0xf] %vm847, %v941
      %974 = vst.msk [vmem:[%s262 + $0x78] sm:$0xf] %vm847, %v942
      %975 = vst.msk [vmem:[%s262 + $0x7c] sm:$0xf] %vm847, %v943
      %s976 = smul.u32 32, %s17
      %p977 = scmp.lt.s32.totalorder %s976, 63
      %s978 = scalar_select %p977, %s976, 63
      %s979 = smul.addr %s978, 4
      %s980 = scalar_lea.vmem %s4, %s979
      %s981 = smul.u32 32, %s17
      %p982 = scmp.lt.s32.totalorder %s981, 63
      %s983 = scalar_select %p982, %s981, 63
      %s984 = smul.addr %s983, 4
      %s985 = scalar_lea.vmem %s5, %s984
      // Predicated region
      $region37: #{rpn_forward.8} parent=35 // pred_check
        %p986 = pneg %p129
      $region38: #{rpn_forward.8} parent=35 // pred_check_branch
        %988 = sbr.rel (%p986) target = $region40
      $region39: #{rpn_forward.8} parent=35 // pred_region
        %s989 = smul.u32 32, %s17
      $region40: #{rpn_forward.8} parent=35 // pred_fallthru
        _
      // Predicated region
      $region41: #{rpn_forward.8} parent=35 // pred_check
        %p990 = pneg %p155
      $region42: #{rpn_forward.8} parent=35 // pred_check_branch
        %992 = sbr.rel (%p990) target = $region44
      $region43: #{rpn_forward.8} parent=35 // pred_region
        %s993 = smul.u32 32, %s17
      $region44: #{rpn_forward.8} parent=35 // pred_fallthru
        _
    $region36: #{rpn_forward.8} parent=5 // pred_fallthru
      _
    %p994 = scmp.le.s32.totalorder 2, %s12
    // Predicated region
    $region45: #{rpn_forward.8} parent=5 // pred_check
      %p995 = pneg %p994
    $region46: #{rpn_forward.8} parent=5 // pred_check_branch
      %997 = sbr.rel (%p995) target = $region48
    $region47: #{rpn_forward.8} parent=5 // pred_region
      %s998 = ssub.s32 %s12, 2
      // Predicated region
      $region49: #{rpn_forward.8} parent=47 // pred_check
        %p999 = pneg %p135
      $region50: #{rpn_forward.8} parent=47 // pred_check_branch
        %1001 = sbr.rel (%p999) target = $region52
      $region51: #{rpn_forward.8} parent=47 // pred_region
        %s1002 = smul.u32 32, %s18
        %p1003 = scmp.lt.s32.totalorder %s1002, 63
        %s1004 = scalar_select %p1003, %s1002, 63
        %s1005 = smul.addr %s1004, 4
        %s1006 = scalar_lea.vmem %s4, %s1005
      $region52: #{rpn_forward.8} parent=47 // pred_fallthru
        _
      // Predicated region
      $region53: #{rpn_forward.8} parent=47 // pred_check
        %p1007 = pneg %p161
      $region54: #{rpn_forward.8} parent=47 // pred_check_branch
        %1009 = sbr.rel (%p1007) target = $region56
      $region55: #{rpn_forward.8} parent=47 // pred_region
        %s1010 = smul.u32 32, %s18
        %p1011 = scmp.lt.s32.totalorder %s1010, 63
        %s1012 = scalar_select %p1011, %s1010, 63
        %s1013 = smul.addr %s1012, 4
        %s1014 = scalar_lea.vmem %s5, %s1013
      $region56: #{rpn_forward.8} parent=47 // pred_fallthru
        _
    $region48: #{rpn_forward.8} parent=5 // pred_fallthru
      _
  $region6: #{rpn_forward.8} parent=0 // loop_footer
    %s16 = sadd.s32 1, %s12
  $region7: #{rpn_forward.8} parent=0 // loop_footer_branch
    %11 = sbr.rel target = $region3
  $region8: #{rpn_forward.8} parent=0 // loop_exit
    _

// kernel: rpn_forward.9
$region0: #{rpn_forward.9}
  #allocation0 [shape = 'u32[]', space=smem, size = 0x4, offset = 0x4, fixed_abs, tag = 'smem constant byte address 0x4 - core index']
  #allocation1 [shape = 'u32[72,128]{1,0:T(1,128)}', space=vmem, size = 0x9000, scoped, tag = 'internal scratch']
  %s0 = inlined_call_operand.vmem [shape: bf16[512,16], index: 0, kind: input, shape index: {}]
  %s1 = inlined_call_operand.vmem [shape: bf16[512,16], index: 1, kind: input, shape index: {}]
  %s2 = inlined_call_operand.vmem [shape: bf16[2,16,16], index: 2, kind: input, shape index: {}]
  %s3 = inlined_call_operand.vmem [shape: f32[2,1,16], index: 3, kind: input, shape index: {}]
  %s4 = inlined_call_operand.vmem [shape: bf16[512,16], index: 4, kind: output, shape index: {0}]
  %s5 = inlined_call_operand.vmem [shape: bf16[512,16], index: 5, kind: output, shape index: {1}]
  %6 = xla_tuple %s4, %s5
  %s7 = sld [smem:[#allocation0]]
  $region57: #{rpn_forward.9} parent=0
    _
  %s9 = ssub.s32 1, %s7
  %s10 = scalar_select 0, %s9, %s7
  loop: start=0, step=1, limit=4
  $region2: #{rpn_forward.9} parent=0 // loop_pre_header
    _
  $region3: #{rpn_forward.9} parent=0 // loop_header
    %s12 = sphi 0, %s16
    %p13 = scmp.ge.s32.totalorder %s12, 4
    %s22 = sphi 0, %s24
    %s25 = sphi 0, %s22
    %s26 = sphi 0, %s25
    %s42 = sphi 0, %s26
    %s48 = sphi 0, %s50
    %s51 = sphi 0, %s48
    %s52 = sphi 0, %s51
    %s68 = sphi 0, %s52
    %s72 = sphi 0, %s72
    %s74 = sphi 0, %s72
    %s75 = sphi 0, %s74
    %s89 = sphi 0, %s75
    %s93 = sphi 0, %s93
    %s95 = sphi 0, %s93
    %s96 = sphi 0, %s95
    %s110 = sphi 0, %s96
    %s116 = sphi 0, %s118
    %s119 = sphi 0, %s116
    %s120 = sphi 0, %s119
    %s136 = sphi 0, %s120
    %s142 = sphi 0, %s144
    %s145 = sphi 0, %s142
    %s146 = sphi 0, %s145
    %s162 = sphi 0, %s146
  $region4: #{rpn_forward.9} parent=0 // loop_header_branch
    %15 = sbr.rel (%p13) target = $region8
  $region5: #{rpn_forward.9} parent=0 // loop_body
    %s17 = ssub.s32 %s12, 1
    %s18 = ssub.s32 %s12, 2
    %s19 = sadd.s32 %s12, 1
    %s20 = ssub.s32 %s12, %s19
    %p21 = scmp.eq.s32.totalorder %s20, 0
    %s23 = sadd.s32 %s22, 1
    %s24 = scalar_select %p21, %s22, %s23
    %p27 = pneg %p21
    %p28 = scmp.eq.s32.totalorder %s12, 1
    %p29 = por %p27, %p28
    %p30 = scmp.ne.s32.totalorder %s22, %s25
    %p31 = scmp.eq.s32.totalorder %s12, 0
    %p32 = por %p30, %p31
    %p33 = scmp.ne.s32.totalorder %s22, %s25
    %p34 = scmp.eq.s32.totalorder %s17, 1
    %p35 = por %p33, %p34
    %p36 = scmp.ne.s32.totalorder %s25, %s26
    %p37 = scmp.eq.s32.totalorder %s17, 0
    %p38 = por %p36, %p37
    %p39 = scmp.ne.s32.totalorder %s25, %s26
    %p40 = scmp.eq.s32.totalorder %s18, 1
    %p41 = por %p39, %p40
    %p43 = scmp.ne.s32.totalorder %s26, %s42
    %p44 = scmp.eq.s32.totalorder %s18, 0
    %p45 = por %p43, %p44
    %s46 = ssub.s32 %s12, %s19
    %p47 = scmp.eq.s32.totalorder %s46, 0
    %s49 = sadd.s32 %s48, 1
    %s50 = scalar_select %p47, %s48, %s49
    %p53 = pneg %p47
    %p54 = scmp.eq.s32.totalorder %s12, 1
    %p55 = por %p53, %p54
    %p56 = scmp.ne.s32.totalorder %s48, %s51
    %p57 = scmp.eq.s32.totalorder %s12, 0
    %p58 = por %p56, %p57
    %p59 = scmp.ne.s32.totalorder %s48, %s51
    %p60 = scmp.eq.s32.totalorder %s17, 1
    %p61 = por %p59, %p60
    %p62 = scmp.ne.s32.totalorder %s51, %s52
    %p63 = scmp.eq.s32.totalorder %s17, 0
    %p64 = por %p62, %p63
    %p65 = scmp.ne.s32.totalorder %s51, %s52
    %p66 = scmp.eq.s32.totalorder %s18, 1
    %p67 = por %p65, %p66
    %p69 = scmp.ne.s32.totalorder %s52, %s68
    %p70 = scmp.eq.s32.totalorder %s18, 0
    %p71 = por %p69, %p70
    %s73 = sadd.s32 %s72, 1
    %p76 = scmp.eq.s32.totalorder %s12, 1
    %p77 = scmp.ne.s32.totalorder %s72, %s74
    %p78 = scmp.eq.s32.totalorder %s12, 0
    %p79 = por %p77, %p78
    %p80 = scmp.ne.s32.totalorder %s72, %s74
    %p81 = scmp.eq.s32.totalorder %s17, 1
    %p82 = por %p80, %p81
    %p83 = scmp.ne.s32.totalorder %s74, %s75
    %p84 = scmp.eq.s32.totalorder %s17, 0
    %p85 = por %p83, %p84
    %p86 = scmp.ne.s32.totalorder %s74, %s75
    %p87 = scmp.eq.s32.totalorder %s18, 1
    %p88 = por %p86, %p87
    %p90 = scmp.ne.s32.totalorder %s75, %s89
    %p91 = scmp.eq.s32.totalorder %s18, 0
    %p92 = por %p90, %p91
    %s94 = sadd.s32 %s93, 1
    %p97 = scmp.eq.s32.totalorder %s12, 1
    %p98 = scmp.ne.s32.totalorder %s93, %s95
    %p99 = scmp.eq.s32.totalorder %s12, 0
    %p100 = por %p98, %p99
    %p101 = scmp.ne.s32.totalorder %s93, %s95
    %p102 = scmp.eq.s32.totalorder %s17, 1
    %p103 = por %p101, %p102
    %p104 = scmp.ne.s32.totalorder %s95, %s96
    %p105 = scmp.eq.s32.totalorder %s17, 0
    %p106 = por %p104, %p105
    %p107 = scmp.ne.s32.totalorder %s95, %s96
    %p108 = scmp.eq.s32.totalorder %s18, 1
    %p109 = por %p107, %p108
    %p111 = scmp.ne.s32.totalorder %s96, %s110
    %p112 = scmp.eq.s32.totalorder %s18, 0
    %p113 = por %p111, %p112
    %s114 = ssub.s32 %s12, %s19
    %p115 = scmp.eq.s32.totalorder %s114, 0
    %s117 = sadd.s32 %s116, 1
    %s118 = scalar_select %p115, %s116, %s117
    %p121 = pneg %p115
    %p122 = scmp.eq.s32.totalorder %s12, 1
    %p123 = por %p121, %p122
    %p124 = scmp.ne.s32.totalorder %s116, %s119
    %p125 = scmp.eq.s32.totalorder %s12, 0
    %p126 = por %p124, %p125
    %p127 = scmp.ne.s32.totalorder %s116, %s119
    %p128 = scmp.eq.s32.totalorder %s17, 1
    %p129 = por %p127, %p128
    %p130 = scmp.ne.s32.totalorder %s119, %s120
    %p131 = scmp.eq.s32.totalorder %s17, 0
    %p132 = por %p130, %p131
    %p133 = scmp.ne.s32.totalorder %s119, %s120
    %p134 = scmp.eq.s32.totalorder %s18, 1
    %p135 = por %p133, %p134
    %p137 = scmp.ne.s32.totalorder %s120, %s136
    %p138 = scmp.eq.s32.totalorder %s18, 0
    %p139 = por %p137, %p138
    %s140 = ssub.s32 %s12, %s19
    %p141 = scmp.eq.s32.totalorder %s140, 0
    %s143 = sadd.s32 %s142, 1
    %s144 = scalar_select %p141, %s142, %s143
    %p147 = pneg %p141
    %p148 = scmp.eq.s32.totalorder %s12, 1
    %p149 = por %p147, %p148
    %p150 = scmp.ne.s32.totalorder %s142, %s145
    %p151 = scmp.eq.s32.totalorder %s12, 0
    %p152 = por %p150, %p151
    %p153 = scmp.ne.s32.totalorder %s142, %s145
    %p154 = scmp.eq.s32.totalorder %s17, 1
    %p155 = por %p153, %p154
    %p156 = scmp.ne.s32.totalorder %s145, %s146
    %p157 = scmp.eq.s32.totalorder %s17, 0
    %p158 = por %p156, %p157
    %p159 = scmp.ne.s32.totalorder %s145, %s146
    %p160 = scmp.eq.s32.totalorder %s18, 1
    %p161 = por %p159, %p160
    %p163 = scmp.ne.s32.totalorder %s146, %s162
    %p164 = scmp.eq.s32.totalorder %s18, 0
    %p165 = por %p163, %p164
    %p166 = scmp.le.s32.totalorder 1, %s12
    %p167 = scmp.lt.s32.totalorder %s12, 3
    %p168 = pnand %p166, %p167
    %p169 = pneg %p168
    // Predicated region
    $region9: #{rpn_forward.9} parent=5 // pred_check
      _
    $region10: #{rpn_forward.9} parent=5 // pred_check_branch
      %171 = sbr.rel (%p168) target = $region12
    $region11: #{rpn_forward.9} parent=5 // pred_region
      %s172 = ssub.s32 %s12, 1
      // Predicated region
      $region13: #{rpn_forward.9} parent=11 // pred_check
        %p173 = pneg %p85
      $region14: #{rpn_forward.9} parent=11 // pred_check_branch
        %175 = sbr.rel (%p173) target = $region16
      $region15: #{rpn_forward.9} parent=11 // pred_region
        _
      $region16: #{rpn_forward.9} parent=11 // pred_fallthru
        _
      // Predicated region
      $region17: #{rpn_forward.9} parent=11 // pred_check
        %p176 = pneg %p106
      $region18: #{rpn_forward.9} parent=11 // pred_check_branch
        %178 = sbr.rel (%p176) target = $region20
      $region19: #{rpn_forward.9} parent=11 // pred_region
        _
      $region20: #{rpn_forward.9} parent=11 // pred_fallthru
        _
    $region12: #{rpn_forward.9} parent=5 // pred_fallthru
      _
    %p179 = scmp.lt.s32.totalorder %s12, 2
    // Predicated region
    $region21: #{rpn_forward.9} parent=5 // pred_check
      %p180 = pneg %p179
    $region22: #{rpn_forward.9} parent=5 // pred_check_branch
      %182 = sbr.rel (%p180) target = $region24
    $region23: #{rpn_forward.9} parent=5 // pred_region
      // Predicated region
      $region25: #{rpn_forward.9} parent=23 // pred_check
        %p183 = pneg %p32
      $region26: #{rpn_forward.9} parent=23 // pred_check_branch
        %185 = sbr.rel (%p183) target = $region28
      $region27: #{rpn_forward.9} parent=23 // pred_region
        %s186 = smul.u32 32, %s12
        %p187 = scmp.lt.s32.totalorder %s186, 63
        %s188 = scalar_select %p187, %s186, 63
        %s189 = smul.addr %s188, 4
        %s190 = scalar_lea.vmem %s0, %s189
        %s191 = smul.u32 32, %s12
      $region28: #{rpn_forward.9} parent=23 // pred_fallthru
        _
      // Predicated region
      $region29: #{rpn_forward.9} parent=23 // pred_check
        %p192 = pneg %p58
      $region30: #{rpn_forward.9} parent=23 // pred_check_branch
        %194 = sbr.rel (%p192) target = $region32
      $region31: #{rpn_forward.9} parent=23 // pred_region
        %s195 = smul.u32 32, %s12
        %p196 = scmp.lt.s32.totalorder %s195, 63
        %s197 = scalar_select %p196, %s195, 63
        %s198 = smul.addr %s197, 4
        %s199 = scalar_lea.vmem %s1, %s198
        %s200 = smul.u32 32, %s12
      $region32: #{rpn_forward.9} parent=23 // pred_fallthru
        _
    $region24: #{rpn_forward.9} parent=5 // pred_fallthru
      _
    %p201 = scmp.le.s32.totalorder 1, %s12
    %p202 = scmp.lt.s32.totalorder %s12, 3
    %p203 = pnand %p201, %p202
    %p204 = pneg %p203
    // Predicated region
    $region33: #{rpn_forward.9} parent=5 // pred_check
      _
    $region34: #{rpn_forward.9} parent=5 // pred_check_branch
      %206 = sbr.rel (%p203) target = $region36
    $region35: #{rpn_forward.9} parent=5 // pred_region
      %s207 = ssub.s32 %s12, 1
      %s208 = smul.u32 32, %s17
      %p209 = scmp.lt.s32.totalorder %s208, 63
      %s210 = scalar_select %p209, %s208, 63
      %s211 = smul.addr %s210, 4
      %s212 = scalar_lea.vmem %s0, %s211
      %p213 = pneg %p38
      %p214 = pneg %p35
      %s215 = smul.u32 32, %s17
      %p216 = scmp.lt.s32.totalorder %s215, 63
      %s217 = scalar_select %p216, %s215, 63
      %s218 = smul.addr %s217, 4
      %s219 = scalar_lea.vmem %s1, %s218
      %p220 = pneg %p64
      %p221 = pneg %p61
      %p222 = pneg %p85
      %p223 = pneg %p82
      %p224 = pneg %p106
      %p225 = pneg %p103
      %p226 = pneg %p132
      %p227 = pneg %p129
      %s228 = smul.u32 32, %s17
      %p229 = scmp.lt.s32.totalorder %s228, 63
      %s230 = scalar_select %p229, %s228, 63
      %s231 = smul.addr %s230, 4
      %s232 = scalar_lea.vmem %s4, %s231
      %p233 = pneg %p158
      %p234 = pneg %p155
      %s235 = smul.u32 32, %s17
      %p236 = scmp.lt.s32.totalorder %s235, 63
      %s237 = scalar_select %p236, %s235, 63
      %s238 = smul.addr %s237, 4
      %s239 = scalar_lea.vmem %s5, %s238
      %s240 = smul.u32 32, %s17
      %p241 = scmp.lt.s32.totalorder %s240, 63
      %s242 = scalar_select %p241, %s240, 63
      %s243 = smul.addr %s242, 4
      %s244 = scalar_lea.vmem %s0, %s243
      %s245 = smul.u32 32, %s17
      %s246 = smul.u32 32, %s17
      %p247 = scmp.lt.s32.totalorder %s246, 63
      %s248 = scalar_select %p247, %s246, 63
      %s249 = smul.addr %s248, 4
      %s250 = scalar_lea.vmem %s1, %s249
      %s251 = smul.u32 32, %s17
      %s252 = smul.u32 32, %s17
      %p253 = scmp.lt.s32.totalorder %s252, 63
      %s254 = scalar_select %p253, %s252, 63
      %s255 = smul.addr %s254, 4
      %s256 = scalar_lea.vmem %s4, %s255
      %s257 = smul.u32 32, %s17
      %s258 = smul.u32 32, %s17
      %p259 = scmp.lt.s32.totalorder %s258, 63
      %s260 = scalar_select %p259, %s258, 63
      %s261 = smul.addr %s260, 4
      %s262 = scalar_lea.vmem %s5, %s261
      %s263 = smul.u32 32, %s17
      %v265 = vld [vmem:[%s244] sm:$0xf]
      %v266 = vld [vmem:[%s244 + $0x4] sm:$0xf]
      %v267 = vld [vmem:[%s244 + $0x8] sm:$0xf]
      %v268 = vld [vmem:[%s244 + $0xc] sm:$0xf]
      %v269 = vld [vmem:[%s244 + $0x10] sm:$0xf]
      %v270 = vld [vmem:[%s244 + $0x14] sm:$0xf]
      %v271 = vld [vmem:[%s244 + $0x18] sm:$0xf]
      %v272 = vld [vmem:[%s244 + $0x1c] sm:$0xf]
      %v273 = vld [vmem:[%s244 + $0x20] sm:$0xf]
      %v274 = vld [vmem:[%s244 + $0x24] sm:$0xf]
      %v275 = vld [vmem:[%s244 + $0x28] sm:$0xf]
      %v276 = vld [vmem:[%s244 + $0x2c] sm:$0xf]
      %v277 = vld [vmem:[%s244 + $0x30] sm:$0xf]
      %v278 = vld [vmem:[%s244 + $0x34] sm:$0xf]
      %v279 = vld [vmem:[%s244 + $0x38] sm:$0xf]
      %v280 = vld [vmem:[%s244 + $0x3c] sm:$0xf]
      %v281 = vld [vmem:[%s244 + $0x40] sm:$0xf]
      %v282 = vld [vmem:[%s244 + $0x44] sm:$0xf]
      %v283 = vld [vmem:[%s244 + $0x48] sm:$0xf]
      %v284 = vld [vmem:[%s244 + $0x4c] sm:$0xf]
      %v285 = vld [vmem:[%s244 + $0x50] sm:$0xf]
      %v286 = vld [vmem:[%s244 + $0x54] sm:$0xf]
      %v287 = vld [vmem:[%s244 + $0x58] sm:$0xf]
      %v288 = vld [vmem:[%s244 + $0x5c] sm:$0xf]
      %v289 = vld [vmem:[%s244 + $0x60] sm:$0xf]
      %v290 = vld [vmem:[%s244 + $0x64] sm:$0xf]
      %v291 = vld [vmem:[%s244 + $0x68] sm:$0xf]
      %v292 = vld [vmem:[%s244 + $0x6c] sm:$0xf]
      %v293 = vld [vmem:[%s244 + $0x70] sm:$0xf]
      %v294 = vld [vmem:[%s244 + $0x74] sm:$0xf]
      %v295 = vld [vmem:[%s244 + $0x78] sm:$0xf]
      %v296 = vld [vmem:[%s244 + $0x7c] sm:$0xf]
      %v297 = vld [vmem:[%s250] sm:$0xf]
      %v298 = vld [vmem:[%s250 + $0x4] sm:$0xf]
      %v299 = vld [vmem:[%s250 + $0x8] sm:$0xf]
      %v300 = vld [vmem:[%s250 + $0xc] sm:$0xf]
      %v301 = vld [vmem:[%s250 + $0x10] sm:$0xf]
      %v302 = vld [vmem:[%s250 + $0x14] sm:$0xf]
      %v303 = vld [vmem:[%s250 + $0x18] sm:$0xf]
      %v304 = vld [vmem:[%s250 + $0x1c] sm:$0xf]
      %v305 = vld [vmem:[%s250 + $0x20] sm:$0xf]
      %v306 = vld [vmem:[%s250 + $0x24] sm:$0xf]
      %v307 = vld [vmem:[%s250 + $0x28] sm:$0xf]
      %v308 = vld [vmem:[%s250 + $0x2c] sm:$0xf]
      %v309 = vld [vmem:[%s250 + $0x30] sm:$0xf]
      %v310 = vld [vmem:[%s250 + $0x34] sm:$0xf]
      %v311 = vld [vmem:[%s250 + $0x38] sm:$0xf]
      %v312 = vld [vmem:[%s250 + $0x3c] sm:$0xf]
      %v313 = vld [vmem:[%s250 + $0x40] sm:$0xf]
      %v314 = vld [vmem:[%s250 + $0x44] sm:$0xf]
      %v315 = vld [vmem:[%s250 + $0x48] sm:$0xf]
      %v316 = vld [vmem:[%s250 + $0x4c] sm:$0xf]
      %v317 = vld [vmem:[%s250 + $0x50] sm:$0xf]
      %v318 = vld [vmem:[%s250 + $0x54] sm:$0xf]
      %v319 = vld [vmem:[%s250 + $0x58] sm:$0xf]
      %v320 = vld [vmem:[%s250 + $0x5c] sm:$0xf]
      %v321 = vld [vmem:[%s250 + $0x60] sm:$0xf]
      %v322 = vld [vmem:[%s250 + $0x64] sm:$0xf]
      %v323 = vld [vmem:[%s250 + $0x68] sm:$0xf]
      %v324 = vld [vmem:[%s250 + $0x6c] sm:$0xf]
      %v325 = vld [vmem:[%s250 + $0x70] sm:$0xf]
      %v326 = vld [vmem:[%s250 + $0x74] sm:$0xf]
      %v327 = vld [vmem:[%s250 + $0x78] sm:$0xf]
      %v328 = vld [vmem:[%s250 + $0x7c] sm:$0xf]
      %v329 = vld [vmem:[%s2] sm:$0xf]
      %v330 = vld [vmem:[%s2 + $0x4] sm:$0xf]
      %v331 = vld [vmem:[%s3] sm:$0x1]
      %v333 = vperm.slane %v331, 0
      %v367 = vunpack.c.l.b16 %v265
      %v368 = vunpack.c.l.b16 %v266
      %v369 = vunpack.c.l.b16 %v267
      %v370 = vunpack.c.l.b16 %v268
      %v371 = vunpack.c.l.b16 %v269
      %v372 = vunpack.c.l.b16 %v270
      %v373 = vunpack.c.l.b16 %v271
      %v374 = vunpack.c.l.b16 %v272
      %v375 = vunpack.c.l.b16 %v273
      %v376 = vunpack.c.l.b16 %v274
      %v377 = vunpack.c.l.b16 %v275
      %v378 = vunpack.c.l.b16 %v276
      %v379 = vunpack.c.l.b16 %v277
      %v380 = vunpack.c.l.b16 %v278
      %v381 = vunpack.c.l.b16 %v279
      %v382 = vunpack.c.l.b16 %v280
      %v383 = vunpack.c.l.b16 %v281
      %v384 = vunpack.c.l.b16 %v282
      %v385 = vunpack.c.l.b16 %v283
      %v386 = vunpack.c.l.b16 %v284
      %v387 = vunpack.c.l.b16 %v285
      %v388 = vunpack.c.l.b16 %v286
      %v389 = vunpack.c.l.b16 %v287
      %v390 = vunpack.c.l.b16 %v288
      %v391 = vunpack.c.l.b16 %v289
      %v392 = vunpack.c.l.b16 %v290
      %v393 = vunpack.c.l.b16 %v291
      %v394 = vunpack.c.l.b16 %v292
      %v395 = vunpack.c.l.b16 %v293
      %v396 = vunpack.c.l.b16 %v294
      %v397 = vunpack.c.l.b16 %v295
      %v398 = vunpack.c.l.b16 %v296
      %v399 = vpack.c.b16 %v368, %v367
      %v400 = vpack.c.b16 %v370, %v369
      %v401 = vpack.c.b16 %v372, %v371
      %v402 = vpack.c.b16 %v374, %v373
      %v403 = vpack.c.b16 %v376, %v375
      %v404 = vpack.c.b16 %v378, %v377
      %v405 = vpack.c.b16 %v380, %v379
      %v406 = vpack.c.b16 %v382, %v381
      %v407 = vpack.c.b16 %v384, %v383
      %v408 = vpack.c.b16 %v386, %v385
      %v409 = vpack.c.b16 %v388, %v387
      %v410 = vpack.c.b16 %v390, %v389
      %v411 = vpack.c.b16 %v392, %v391
      %v412 = vpack.c.b16 %v394, %v393
      %v413 = vpack.c.b16 %v396, %v395
      %v414 = vpack.c.b16 %v398, %v397
      %v417 = vunpack.c.l.b16 %v329
      %v418 = vunpack.c.l.b16 %v330
      %v419 = vpack.c.b16 %v418, %v417
      %vm421 = vcmask 130048
      %v423 = vsel %vm421, %v399, 0
      %v426 = vsel %vm421, %v400, 0
      %v429 = vsel %vm421, %v401, 0
      %v432 = vsel %vm421, %v402, 0
      %v435 = vsel %vm421, %v403, 0
      %v438 = vsel %vm421, %v404, 0
      %v441 = vsel %vm421, %v405, 0
      %v444 = vsel %vm421, %v406, 0
      %v447 = vsel %vm421, %v407, 0
      %v450 = vsel %vm421, %v408, 0
      %v453 = vsel %vm421, %v409, 0
      %v456 = vsel %vm421, %v410, 0
      %v459 = vsel %vm421, %v411, 0
      %v462 = vsel %vm421, %v412, 0
      %v465 = vsel %vm421, %v413, 0
      %v468 = vsel %vm421, %v414, 0
      %470 = vmatpush.bf16.msra.mxu0 0
      %471 = vmatpush.bf16.msra.mxu0 0
      %472 = vmatpush.bf16.msra.mxu0 0
      %473 = vmatpush.bf16.msra.mxu0 0
      %474 = vmatpush.bf16.msra.mxu0 0
      %475 = vmatpush.bf16.msra.mxu0 0
      %476 = vmatpush.bf16.msra.mxu0 0
      %477 = vmatpush.bf16.msra.mxu0 %v419
      %478 = vmatmul.bf16.gmra.mxu0 %v423
      %v479 = vpop.f32.mrf.mxu0
      %v480 = vadd.f32 %v333, %v479
      %v481 = vpop.f32.mrf.mxu0
      %v482 = vadd.f32 %v333, %v481
      %483 = vmatmul.bf16.gmra.mxu0 %v426
      %v484 = vpop.f32.mrf.mxu0
      %v485 = vadd.f32 %v333, %v484
      %v486 = vpop.f32.mrf.mxu0
      %v487 = vadd.f32 %v333, %v486
      %488 = vmatmul.bf16.gmra.mxu0 %v429
      %v489 = vpop.f32.mrf.mxu0
      %v490 = vadd.f32 %v333, %v489
      %v491 = vpop.f32.mrf.mxu0
      %v492 = vadd.f32 %v333, %v491
      %493 = vmatmul.bf16.gmra.mxu0 %v432
      %v494 = vpop.f32.mrf.mxu0
      %v495 = vadd.f32 %v333, %v494
      %v496 = vpop.f32.mrf.mxu0
      %v497 = vadd.f32 %v333, %v496
      %498 = vmatmul.bf16.gmra.mxu0 %v435
      %v499 = vpop.f32.mrf.mxu0
      %v500 = vadd.f32 %v333, %v499
      %v501 = vpop.f32.mrf.mxu0
      %v502 = vadd.f32 %v333, %v501
      %503 = vmatmul.bf16.gmra.mxu0 %v438
      %v504 = vpop.f32.mrf.mxu0
      %v505 = vadd.f32 %v333, %v504
      %v506 = vpop.f32.mrf.mxu0
      %v507 = vadd.f32 %v333, %v506
      %508 = vmatmul.bf16.gmra.mxu0 %v441
      %v509 = vpop.f32.mrf.mxu0
      %v510 = vadd.f32 %v333, %v509
      %v511 = vpop.f32.mrf.mxu0
      %v512 = vadd.f32 %v333, %v511
      %513 = vmatmul.bf16.gmra.mxu0 %v444
      %v514 = vpop.f32.mrf.mxu0
      %v515 = vadd.f32 %v333, %v514
      %v516 = vpop.f32.mrf.mxu0
      %v517 = vadd.f32 %v333, %v516
      %518 = vmatmul.bf16.gmra.mxu0 %v447
      %v519 = vpop.f32.mrf.mxu0
      %v520 = vadd.f32 %v333, %v519
      %v521 = vpop.f32.mrf.mxu0
      %v522 = vadd.f32 %v333, %v521
      %523 = vmatmul.bf16.gmra.mxu0 %v450
      %v524 = vpop.f32.mrf.mxu0
      %v525 = vadd.f32 %v333, %v524
      %v526 = vpop.f32.mrf.mxu0
      %v527 = vadd.f32 %v333, %v526
      %528 = vmatmul.bf16.gmra.mxu0 %v453
      %v529 = vpop.f32.mrf.mxu0
      %v530 = vadd.f32 %v333, %v529
      %v531 = vpop.f32.mrf.mxu0
      %v532 = vadd.f32 %v333, %v531
      %533 = vmatmul.bf16.gmra.mxu0 %v456
      %v534 = vpop.f32.mrf.mxu0
      %v535 = vadd.f32 %v333, %v534
      %v536 = vpop.f32.mrf.mxu0
      %v537 = vadd.f32 %v333, %v536
      %538 = vmatmul.bf16.gmra.mxu0 %v459
      %v539 = vpop.f32.mrf.mxu0
      %v540 = vadd.f32 %v333, %v539
      %v541 = vpop.f32.mrf.mxu0
      %v542 = vadd.f32 %v333, %v541
      %543 = vmatmul.bf16.gmra.mxu0 %v462
      %v544 = vpop.f32.mrf.mxu0
      %v545 = vadd.f32 %v333, %v544
      %v546 = vpop.f32.mrf.mxu0
      %v547 = vadd.f32 %v333, %v546
      %548 = vmatmul.bf16.gmra.mxu0 %v465
      %v549 = vpop.f32.mrf.mxu0
      %v550 = vadd.f32 %v333, %v549
      %v551 = vpop.f32.mrf.mxu0
      %v552 = vadd.f32 %v333, %v551
      %553 = vmatmul.bf16.gmra.mxu0 %v468
      %v554 = vpop.f32.mrf.mxu0
      %v555 = vadd.f32 %v333, %v554
      %v556 = vpop.f32.mrf.mxu0
      %v557 = vadd.f32 %v333, %v556
      %558 = vdwg.mxu0
      %s559 = scalar_lea.vmem %s2, 8
      %v560 = vld [vmem:[%s559] sm:$0xf]
      %v561 = vld [vmem:[%s559 + $0x4] sm:$0xf]
      %s562 = scalar_lea.vmem %s3, 1
      %v563 = vld [vmem:[%s562] sm:$0x1]
      %v565 = vperm.slane %v563, 0
      %v599 = vunpack.c.l.b16 %v297
      %v600 = vunpack.c.l.b16 %v298
      %v601 = vunpack.c.l.b16 %v299
      %v602 = vunpack.c.l.b16 %v300
      %v603 = vunpack.c.l.b16 %v301
      %v604 = vunpack.c.l.b16 %v302
      %v605 = vunpack.c.l.b16 %v303
      %v606 = vunpack.c.l.b16 %v304
      %v607 = vunpack.c.l.b16 %v305
      %v608 = vunpack.c.l.b16 %v306
      %v609 = vunpack.c.l.b16 %v307
      %v610 = vunpack.c.l.b16 %v308
      %v611 = vunpack.c.l.b16 %v309
      %v612 = vunpack.c.l.b16 %v310
      %v613 = vunpack.c.l.b16 %v311
      %v614 = vunpack.c.l.b16 %v312
      %v615 = vunpack.c.l.b16 %v313
      %v616 = vunpack.c.l.b16 %v314
      %v617 = vunpack.c.l.b16 %v315
      %v618 = vunpack.c.l.b16 %v316
      %v619 = vunpack.c.l.b16 %v317
      %v620 = vunpack.c.l.b16 %v318
      %v621 = vunpack.c.l.b16 %v319
      %v622 = vunpack.c.l.b16 %v320
      %v623 = vunpack.c.l.b16 %v321
      %v624 = vunpack.c.l.b16 %v322
      %v625 = vunpack.c.l.b16 %v323
      %v626 = vunpack.c.l.b16 %v324
      %v627 = vunpack.c.l.b16 %v325
      %v628 = vunpack.c.l.b16 %v326
      %v629 = vunpack.c.l.b16 %v327
      %v630 = vunpack.c.l.b16 %v328
      %v631 = vpack.c.b16 %v600, %v599
      %v632 = vpack.c.b16 %v602, %v601
      %v633 = vpack.c.b16 %v604, %v603
      %v634 = vpack.c.b16 %v606, %v605
      %v635 = vpack.c.b16 %v608, %v607
      %v636 = vpack.c.b16 %v610, %v609
      %v637 = vpack.c.b16 %v612, %v611
      %v638 = vpack.c.b16 %v614, %v613
      %v639 = vpack.c.b16 %v616, %v615
      %v640 = vpack.c.b16 %v618, %v617
      %v641 = vpack.c.b16 %v620, %v619
      %v642 = vpack.c.b16 %v622, %v621
      %v643 = vpack.c.b16 %v624, %v623
      %v644 = vpack.c.b16 %v626, %v625
      %v645 = vpack.c.b16 %v628, %v627
      %v646 = vpack.c.b16 %v630, %v629
      %v649 = vunpack.c.l.b16 %v560
      %v650 = vunpack.c.l.b16 %v561
      %v651 = vpack.c.b16 %v650, %v649
      %v654 = vsel %vm421, %v631, 0
      %v657 = vsel %vm421, %v632, 0
      %v660 = vsel %vm421, %v633, 0
      %v663 = vsel %vm421, %v634, 0
      %v666 = vsel %vm421, %v635, 0
      %v669 = vsel %vm421, %v636, 0
      %v672 = vsel %vm421, %v637, 0
      %v675 = vsel %vm421, %v638, 0
      %v678 = vsel %vm421, %v639, 0
      %v681 = vsel %vm421, %v640, 0
      %v684 = vsel %vm421, %v641, 0
      %v687 = vsel %vm421, %v642, 0
      %v690 = vsel %vm421, %v643, 0
      %v693 = vsel %vm421, %v644, 0
      %v696 = vsel %vm421, %v645, 0
      %v699 = vsel %vm421, %v646, 0
      %701 = vmatpush.bf16.msra.mxu0 0
      %702 = vmatpush.bf16.msra.mxu0 0
      %703 = vmatpush.bf16.msra.mxu0 0
      %704 = vmatpush.bf16.msra.mxu0 0
      %705 = vmatpush.bf16.msra.mxu0 0
      %706 = vmatpush.bf16.msra.mxu0 0
      %707 = vmatpush.bf16.msra.mxu0 0
      %708 = vmatpush.bf16.msra.mxu0 %v651
      %709 = vmatmul.bf16.gmra.mxu0 %v654
      %v710 = vpop.f32.mrf.mxu0
      %v711 = vadd.f32 %v565, %v710
      %v712 = vpop.f32.mrf.mxu0
      %v713 = vadd.f32 %v565, %v712
      %714 = vmatmul.bf16.gmra.mxu0 %v657
      %v715 = vpop.f32.mrf.mxu0
      %v716 = vadd.f32 %v565, %v715
      %v717 = vpop.f32.mrf.mxu0
      %v718 = vadd.f32 %v565, %v717
      %719 = vmatmul.bf16.gmra.mxu0 %v660
      %v720 = vpop.f32.mrf.mxu0
      %v721 = vadd.f32 %v565, %v720
      %v722 = vpop.f32.mrf.mxu0
      %v723 = vadd.f32 %v565, %v722
      %724 = vmatmul.bf16.gmra.mxu0 %v663
      %v725 = vpop.f32.mrf.mxu0
      %v726 = vadd.f32 %v565, %v725
      %v727 = vpop.f32.mrf.mxu0
      %v728 = vadd.f32 %v565, %v727
      %729 = vmatmul.bf16.gmra.mxu0 %v666
      %v730 = vpop.f32.mrf.mxu0
      %v731 = vadd.f32 %v565, %v730
      %v732 = vpop.f32.mrf.mxu0
      %v733 = vadd.f32 %v565, %v732
      %734 = vmatmul.bf16.gmra.mxu0 %v669
      %v735 = vpop.f32.mrf.mxu0
      %v736 = vadd.f32 %v565, %v735
      %v737 = vpop.f32.mrf.mxu0
      %v738 = vadd.f32 %v565, %v737
      %739 = vmatmul.bf16.gmra.mxu0 %v672
      %v740 = vpop.f32.mrf.mxu0
      %v741 = vadd.f32 %v565, %v740
      %v742 = vpop.f32.mrf.mxu0
      %v743 = vadd.f32 %v565, %v742
      %744 = vmatmul.bf16.gmra.mxu0 %v675
      %v745 = vpop.f32.mrf.mxu0
      %v746 = vadd.f32 %v565, %v745
      %v747 = vpop.f32.mrf.mxu0
      %v748 = vadd.f32 %v565, %v747
      %749 = vmatmul.bf16.gmra.mxu0 %v678
      %v750 = vpop.f32.mrf.mxu0
      %v751 = vadd.f32 %v565, %v750
      %v752 = vpop.f32.mrf.mxu0
      %v753 = vadd.f32 %v565, %v752
      %754 = vmatmul.bf16.gmra.mxu0 %v681
      %v755 = vpop.f32.mrf.mxu0
      %v756 = vadd.f32 %v565, %v755
      %v757 = vpop.f32.mrf.mxu0
      %v758 = vadd.f32 %v565, %v757
      %759 = vmatmul.bf16.gmra.mxu0 %v684
      %v760 = vpop.f32.mrf.mxu0
      %v761 = vadd.f32 %v565, %v760
      %v762 = vpop.f32.mrf.mxu0
      %v763 = vadd.f32 %v565, %v762
      %764 = vmatmul.bf16.gmra.mxu0 %v687
      %v765 = vpop.f32.mrf.mxu0
      %v766 = vadd.f32 %v565, %v765
      %v767 = vpop.f32.mrf.mxu0
      %v768 = vadd.f32 %v565, %v767
      %769 = vmatmul.bf16.gmra.mxu0 %v690
      %v770 = vpop.f32.mrf.mxu0
      %v771 = vadd.f32 %v565, %v770
      %v772 = vpop.f32.mrf.mxu0
      %v773 = vadd.f32 %v565, %v772
      %774 = vmatmul.bf16.gmra.mxu0 %v693
      %v775 = vpop.f32.mrf.mxu0
      %v776 = vadd.f32 %v565, %v775
      %v777 = vpop.f32.mrf.mxu0
      %v778 = vadd.f32 %v565, %v777
      %779 = vmatmul.bf16.gmra.mxu0 %v696
      %v780 = vpop.f32.mrf.mxu0
      %v781 = vadd.f32 %v565, %v780
      %v782 = vpop.f32.mrf.mxu0
      %v783 = vadd.f32 %v565, %v782
      %784 = vmatmul.bf16.gmra.mxu0 %v699
      %v785 = vpop.f32.mrf.mxu0
      %v786 = vadd.f32 %v565, %v785
      %v787 = vpop.f32.mrf.mxu0
      %v788 = vadd.f32 %v565, %v787
      %789 = vdwg.mxu0
      %v790 = vmax.f32 %v480, 0.0
      %v791 = vmax.f32 %v482, 0.0
      %v792 = vmax.f32 %v485, 0.0
      %v793 = vmax.f32 %v487, 0.0
      %v794 = vmax.f32 %v490, 0.0
      %v795 = vmax.f32 %v492, 0.0
      %v796 = vmax.f32 %v495, 0.0
      %v797 = vmax.f32 %v497, 0.0
      %v798 = vmax.f32 %v500, 0.0
      %v799 = vmax.f32 %v502, 0.0
      %v800 = vmax.f32 %v505, 0.0
      %v801 = vmax.f32 %v507, 0.0
      %v802 = vmax.f32 %v510, 0.0
      %v803 = vmax.f32 %v512, 0.0
      %v804 = vmax.f32 %v515, 0.0
      %v805 = vmax.f32 %v517, 0.0
      %v806 = vmax.f32 %v520, 0.0
      %v807 = vmax.f32 %v522, 0.0
      %v808 = vmax.f32 %v525, 0.0
      %v809 = vmax.f32 %v527, 0.0
      %v810 = vmax.f32 %v530, 0.0
      %v811 = vmax.f32 %v532, 0.0
      %v812 = vmax.f32 %v535, 0.0
      %v813 = vmax.f32 %v537, 0.0
      %v814 = vmax.f32 %v540, 0.0
      %v815 = vmax.f32 %v542, 0.0
      %v816 = vmax.f32 %v545, 0.0
      %v817 = vmax.f32 %v547, 0.0
      %v818 = vmax.f32 %v550, 0.0
      %v819 = vmax.f32 %v552, 0.0
      %v820 = vmax.f32 %v555, 0.0
      %v821 = vmax.f32 %v557, 0.0
      %v822 = vpack.c.bf16 %v790, %v790
      %v823 = vpack.c.bf16 %v791, %v791
      %v824 = vpack.c.bf16 %v792, %v792
      %v825 = vpack.c.bf16 %v793, %v793
      %v826 = vpack.c.bf16 %v794, %v794
      %v827 = vpack.c.bf16 %v795, %v795
      %v828 = vpack.c.bf16 %v796, %v796
      %v829 = vpack.c.bf16 %v797, %v797
      %v830 = vpack.c.bf16 %v798, %v798
      %v831 = vpack.c.bf16 %v799, %v799
      %v832 = vpack.c.bf16 %v800, %v800
      %v833 = vpack.c.bf16 %v801, %v801
      %v834 = vpack.c.bf16 %v802, %v802
      %v835 = vpack.c.bf16 %v803, %v803
      %v836 = vpack.c.bf16 %v804, %v804
      %v837 = vpack.c.bf16 %v805, %v805
      %v838 = vpack.c.bf16 %v806, %v806
      %v839 = vpack.c.bf16 %v807, %v807
      %v840 = vpack.c.bf16 %v808, %v808
      %v841 = vpack.c.bf16 %v809, %v809
      %v842 = vpack.c.bf16 %v810, %v810
      %v843 = vpack.c.bf16 %v811, %v811
      %v844 = vpack.c.bf16 %v812, %v812
      %v845 = vpack.c.bf16 %v813, %v813
      %v846 = vpack.c.bf16 %v814, %v814
      %v847 = vpack.c.bf16 %v815, %v815
      %v848 = vpack.c.bf16 %v816, %v816
      %v849 = vpack.c.bf16 %v817, %v817
      %v850 = vpack.c.bf16 %v818, %v818
      %v851 = vpack.c.bf16 %v819, %v819
      %v852 = vpack.c.bf16 %v820, %v820
      %v853 = vpack.c.bf16 %v821, %v821
      %vm854 = vcmask 125952
      %855 = vst.msk [vmem:[%s256] sm:$0xf] %vm854, %v822
      %856 = vst.msk [vmem:[%s256 + $0x4] sm:$0xf] %vm854, %v823
      %857 = vst.msk [vmem:[%s256 + $0x8] sm:$0xf] %vm854, %v824
      %858 = vst.msk [vmem:[%s256 + $0xc] sm:$0xf] %vm854, %v825
      %859 = vst.msk [vmem:[%s256 + $0x10] sm:$0xf] %vm854, %v826
      %860 = vst.msk [vmem:[%s256 + $0x14] sm:$0xf] %vm854, %v827
      %861 = vst.msk [vmem:[%s256 + $0x18] sm:$0xf] %vm854, %v828
      %862 = vst.msk [vmem:[%s256 + $0x1c] sm:$0xf] %vm854, %v829
      %863 = vst.msk [vmem:[%s256 + $0x20] sm:$0xf] %vm854, %v830
      %864 = vst.msk [vmem:[%s256 + $0x24] sm:$0xf] %vm854, %v831
      %865 = vst.msk [vmem:[%s256 + $0x28] sm:$0xf] %vm854, %v832
      %866 = vst.msk [vmem:[%s256 + $0x2c] sm:$0xf] %vm854, %v833
      %867 = vst.msk [vmem:[%s256 + $0x30] sm:$0xf] %vm854, %v834
      %868 = vst.msk [vmem:[%s256 + $0x34] sm:$0xf] %vm854, %v835
      %869 = vst.msk [vmem:[%s256 + $0x38] sm:$0xf] %vm854, %v836
      %870 = vst.msk [vmem:[%s256 + $0x3c] sm:$0xf] %vm854, %v837
      %871 = vst.msk [vmem:[%s256 + $0x40] sm:$0xf] %vm854, %v838
      %872 = vst.msk [vmem:[%s256 + $0x44] sm:$0xf] %vm854, %v839
      %873 = vst.msk [vmem:[%s256 + $0x48] sm:$0xf] %vm854, %v840
      %874 = vst.msk [vmem:[%s256 + $0x4c] sm:$0xf] %vm854, %v841
      %875 = vst.msk [vmem:[%s256 + $0x50] sm:$0xf] %vm854, %v842
      %876 = vst.msk [vmem:[%s256 + $0x54] sm:$0xf] %vm854, %v843
      %877 = vst.msk [vmem:[%s256 + $0x58] sm:$0xf] %vm854, %v844
      %878 = vst.msk [vmem:[%s256 + $0x5c] sm:$0xf] %vm854, %v845
      %879 = vst.msk [vmem:[%s256 + $0x60] sm:$0xf] %vm854, %v846
      %880 = vst.msk [vmem:[%s256 + $0x64] sm:$0xf] %vm854, %v847
      %881 = vst.msk [vmem:[%s256 + $0x68] sm:$0xf] %vm854, %v848
      %882 = vst.msk [vmem:[%s256 + $0x6c] sm:$0xf] %vm854, %v849
      %883 = vst.msk [vmem:[%s256 + $0x70] sm:$0xf] %vm854, %v850
      %884 = vst.msk [vmem:[%s256 + $0x74] sm:$0xf] %vm854, %v851
      %885 = vst.msk [vmem:[%s256 + $0x78] sm:$0xf] %vm854, %v852
      %886 = vst.msk [vmem:[%s256 + $0x7c] sm:$0xf] %vm854, %v853
      %v887 = vmax.f32 %v711, 0.0
      %v888 = vmax.f32 %v713, 0.0
      %v889 = vmax.f32 %v716, 0.0
      %v890 = vmax.f32 %v718, 0.0
      %v891 = vmax.f32 %v721, 0.0
      %v892 = vmax.f32 %v723, 0.0
      %v893 = vmax.f32 %v726, 0.0
      %v894 = vmax.f32 %v728, 0.0
      %v895 = vmax.f32 %v731, 0.0
      %v896 = vmax.f32 %v733, 0.0
      %v897 = vmax.f32 %v736, 0.0
      %v898 = vmax.f32 %v738, 0.0
      %v899 = vmax.f32 %v741, 0.0
      %v900 = vmax.f32 %v743, 0.0
      %v901 = vmax.f32 %v746, 0.0
      %v902 = vmax.f32 %v748, 0.0
      %v903 = vmax.f32 %v751, 0.0
      %v904 = vmax.f32 %v753, 0.0
      %v905 = vmax.f32 %v756, 0.0
      %v906 = vmax.f32 %v758, 0.0
      %v907 = vmax.f32 %v761, 0.0
      %v908 = vmax.f32 %v763, 0.0
      %v909 = vmax.f32 %v766, 0.0
      %v910 = vmax.f32 %v768, 0.0
      %v911 = vmax.f32 %v771, 0.0
      %v912 = vmax.f32 %v773, 0.0
      %v913 = vmax.f32 %v776, 0.0
      %v914 = vmax.f32 %v778, 0.0
      %v915 = vmax.f32 %v781, 0.0
      %v916 = vmax.f32 %v783, 0.0
      %v917 = vmax.f32 %v786, 0.0
      %v918 = vmax.f32 %v788, 0.0
      %v919 = vpack.c.bf16 %v887, %v887
      %v920 = vpack.c.bf16 %v888, %v888
      %v921 = vpack.c.bf16 %v889, %v889
      %v922 = vpack.c.bf16 %v890, %v890
      %v923 = vpack.c.bf16 %v891, %v891
      %v924 = vpack.c.bf16 %v892, %v892
      %v925 = vpack.c.bf16 %v893, %v893
      %v926 = vpack.c.bf16 %v894, %v894
      %v927 = vpack.c.bf16 %v895, %v895
      %v928 = vpack.c.bf16 %v896, %v896
      %v929 = vpack.c.bf16 %v897, %v897
      %v930 = vpack.c.bf16 %v898, %v898
      %v931 = vpack.c.bf16 %v899, %v899
      %v932 = vpack.c.bf16 %v900, %v900
      %v933 = vpack.c.bf16 %v901, %v901
      %v934 = vpack.c.bf16 %v902, %v902
      %v935 = vpack.c.bf16 %v903, %v903
      %v936 = vpack.c.bf16 %v904, %v904
      %v937 = vpack.c.bf16 %v905, %v905
      %v938 = vpack.c.bf16 %v906, %v906
      %v939 = vpack.c.bf16 %v907, %v907
      %v940 = vpack.c.bf16 %v908, %v908
      %v941 = vpack.c.bf16 %v909, %v909
      %v942 = vpack.c.bf16 %v910, %v910
      %v943 = vpack.c.bf16 %v911, %v911
      %v944 = vpack.c.bf16 %v912, %v912
      %v945 = vpack.c.bf16 %v913, %v913
      %v946 = vpack.c.bf16 %v914, %v914
      %v947 = vpack.c.bf16 %v915, %v915
      %v948 = vpack.c.bf16 %v916, %v916
      %v949 = vpack.c.bf16 %v917, %v917
      %v950 = vpack.c.bf16 %v918, %v918
      %951 = vst.msk [vmem:[%s262] sm:$0xf] %vm854, %v919
      %952 = vst.msk [vmem:[%s262 + $0x4] sm:$0xf] %vm854, %v920
      %953 = vst.msk [vmem:[%s262 + $0x8] sm:$0xf] %vm854, %v921
      %954 = vst.msk [vmem:[%s262 + $0xc] sm:$0xf] %vm854, %v922
      %955 = vst.msk [vmem:[%s262 + $0x10] sm:$0xf] %vm854, %v923
      %956 = vst.msk [vmem:[%s262 + $0x14] sm:$0xf] %vm854, %v924
      %957 = vst.msk [vmem:[%s262 + $0x18] sm:$0xf] %vm854, %v925
      %958 = vst.msk [vmem:[%s262 + $0x1c] sm:$0xf] %vm854, %v926
      %959 = vst.msk [vmem:[%s262 + $0x20] sm:$0xf] %vm854, %v927
      %960 = vst.msk [vmem:[%s262 + $0x24] sm:$0xf] %vm854, %v928
      %961 = vst.msk [vmem:[%s262 + $0x28] sm:$0xf] %vm854, %v929
      %962 = vst.msk [vmem:[%s262 + $0x2c] sm:$0xf] %vm854, %v930
      %963 = vst.msk [vmem:[%s262 + $0x30] sm:$0xf] %vm854, %v931
      %964 = vst.msk [vmem:[%s262 + $0x34] sm:$0xf] %vm854, %v932
      %965 = vst.msk [vmem:[%s262 + $0x38] sm:$0xf] %vm854, %v933
      %966 = vst.msk [vmem:[%s262 + $0x3c] sm:$0xf] %vm854, %v934
      %967 = vst.msk [vmem:[%s262 + $0x40] sm:$0xf] %vm854, %v935
      %968 = vst.msk [vmem:[%s262 + $0x44] sm:$0xf] %vm854, %v936
      %969 = vst.msk [vmem:[%s262 + $0x48] sm:$0xf] %vm854, %v937
      %970 = vst.msk [vmem:[%s262 + $0x4c] sm:$0xf] %vm854, %v938
      %971 = vst.msk [vmem:[%s262 + $0x50] sm:$0xf] %vm854, %v939
      %972 = vst.msk [vmem:[%s262 + $0x54] sm:$0xf] %vm854, %v940
      %973 = vst.msk [vmem:[%s262 + $0x58] sm:$0xf] %vm854, %v941
      %974 = vst.msk [vmem:[%s262 + $0x5c] sm:$0xf] %vm854, %v942
      %975 = vst.msk [vmem:[%s262 + $0x60] sm:$0xf] %vm854, %v943
      %976 = vst.msk [vmem:[%s262 + $0x64] sm:$0xf] %vm854, %v944
      %977 = vst.msk [vmem:[%s262 + $0x68] sm:$0xf] %vm854, %v945
      %978 = vst.msk [vmem:[%s262 + $0x6c] sm:$0xf] %vm854, %v946
      %979 = vst.msk [vmem:[%s262 + $0x70] sm:$0xf] %vm854, %v947
      %980 = vst.msk [vmem:[%s262 + $0x74] sm:$0xf] %vm854, %v948
      %981 = vst.msk [vmem:[%s262 + $0x78] sm:$0xf] %vm854, %v949
      %982 = vst.msk [vmem:[%s262 + $0x7c] sm:$0xf] %vm854, %v950
      %s983 = smul.u32 32, %s17
      %p984 = scmp.lt.s32.totalorder %s983, 63
      %s985 = scalar_select %p984, %s983, 63
      %s986 = smul.addr %s985, 4
      %s987 = scalar_lea.vmem %s4, %s986
      %s988 = smul.u32 32, %s17
      %p989 = scmp.lt.s32.totalorder %s988, 63
      %s990 = scalar_select %p989, %s988, 63
      %s991 = smul.addr %s990, 4
      %s992 = scalar_lea.vmem %s5, %s991
      // Predicated region
      $region37: #{rpn_forward.9} parent=35 // pred_check
        %p993 = pneg %p129
      $region38: #{rpn_forward.9} parent=35 // pred_check_branch
        %995 = sbr.rel (%p993) target = $region40
      $region39: #{rpn_forward.9} parent=35 // pred_region
        %s996 = smul.u32 32, %s17
      $region40: #{rpn_forward.9} parent=35 // pred_fallthru
        _
      // Predicated region
      $region41: #{rpn_forward.9} parent=35 // pred_check
        %p997 = pneg %p155
      $region42: #{rpn_forward.9} parent=35 // pred_check_branch
        %999 = sbr.rel (%p997) target = $region44
      $region43: #{rpn_forward.9} parent=35 // pred_region
        %s1000 = smul.u32 32, %s17
      $region44: #{rpn_forward.9} parent=35 // pred_fallthru
        _
    $region36: #{rpn_forward.9} parent=5 // pred_fallthru
      _
    %p1001 = scmp.le.s32.totalorder 2, %s12
    // Predicated region
    $region45: #{rpn_forward.9} parent=5 // pred_check
      %p1002 = pneg %p1001
    $region46: #{rpn_forward.9} parent=5 // pred_check_branch
      %1004 = sbr.rel (%p1002) target = $region48
    $region47: #{rpn_forward.9} parent=5 // pred_region
      %s1005 = ssub.s32 %s12, 2
      // Predicated region
      $region49: #{rpn_forward.9} parent=47 // pred_check
        %p1006 = pneg %p135
      $region50: #{rpn_forward.9} parent=47 // pred_check_branch
        %1008 = sbr.rel (%p1006) target = $region52
      $region51: #{rpn_forward.9} parent=47 // pred_region
        %s1009 = smul.u32 32, %s18
        %p1010 = scmp.lt.s32.totalorder %s1009, 63
        %s1011 = scalar_select %p1010, %s1009, 63
        %s1012 = smul.addr %s1011, 4
        %s1013 = scalar_lea.vmem %s4, %s1012
      $region52: #{rpn_forward.9} parent=47 // pred_fallthru
        _
      // Predicated region
      $region53: #{rpn_forward.9} parent=47 // pred_check
        %p1014 = pneg %p161
      $region54: #{rpn_forward.9} parent=47 // pred_check_branch
        %1016 = sbr.rel (%p1014) target = $region56
      $region55: #{rpn_forward.9} parent=47 // pred_region
        %s1017 = smul.u32 32, %s18
        %p1018 = scmp.lt.s32.totalorder %s1017, 63
        %s1019 = scalar_select %p1018, %s1017, 63
        %s1020 = smul.addr %s1019, 4
        %s1021 = scalar_lea.vmem %s5, %s1020
      $region56: #{rpn_forward.9} parent=47 // pred_fallthru
        _
    $region48: #{rpn_forward.9} parent=5 // pred_fallthru
      _
  $region6: #{rpn_forward.9} parent=0 // loop_footer
    %s16 = sadd.s32 1, %s12
  $region7: #{rpn_forward.9} parent=0 // loop_footer_branch
    %11 = sbr.rel target = $region3
  $region8: #{rpn_forward.9} parent=0 // loop_exit
    _

// kernel: rpn_forward.13
$region0: #{rpn_forward.13}
  #allocation0 [shape = 'u32[]', space=smem, size = 0x4, offset = 0x4, fixed_abs, tag = 'smem constant byte address 0x4 - core index']
  #allocation1 [shape = 'u32[72,128]{1,0:T(1,128)}', space=vmem, size = 0x9000, scoped, tag = 'internal scratch']
  %s0 = inlined_call_operand.vmem [shape: bf16[32,64], index: 0, kind: input, shape index: {}]
  %s1 = inlined_call_operand.vmem [shape: bf16[32,64], index: 1, kind: input, shape index: {}]
  %s2 = inlined_call_operand.vmem [shape: bf16[64,128], index: 2, kind: input, shape index: {}]
  %s3 = inlined_call_operand.vmem [shape: f32[1,128], index: 3, kind: input, shape index: {}]
  %s4 = inlined_call_operand.vmem [shape: bf16[32,128], index: 4, kind: output, shape index: {}]
  %s5 = sld [smem:[#allocation0]]
  $region49: #{rpn_forward.13} parent=0
    _
  %s7 = ssub.s32 1, %s5
  %s8 = scalar_select 0, %s7, %s5
  loop: start=0, step=1, limit=4
  $region2: #{rpn_forward.13} parent=0 // loop_pre_header
    _
  $region3: #{rpn_forward.13} parent=0 // loop_header
    %s10 = sphi 0, %s14
    %p11 = scmp.ge.s32.totalorder %s10, 4
    %s20 = sphi 0, %s22
    %s23 = sphi 0, %s20
    %s24 = sphi 0, %s23
    %s40 = sphi 0, %s24
    %s46 = sphi 0, %s48
    %s49 = sphi 0, %s46
    %s50 = sphi 0, %s49
    %s66 = sphi 0, %s50
    %s70 = sphi 0, %s70
    %s72 = sphi 0, %s70
    %s73 = sphi 0, %s72
    %s87 = sphi 0, %s73
    %s91 = sphi 0, %s91
    %s93 = sphi 0, %s91
    %s94 = sphi 0, %s93
    %s108 = sphi 0, %s94
    %s114 = sphi 0, %s116
    %s117 = sphi 0, %s114
    %s118 = sphi 0, %s117
    %s134 = sphi 0, %s118
  $region4: #{rpn_forward.13} parent=0 // loop_header_branch
    %13 = sbr.rel (%p11) target = $region8
  $region5: #{rpn_forward.13} parent=0 // loop_body
    %s15 = ssub.s32 %s10, 1
    %s16 = ssub.s32 %s10, 2
    %s17 = sadd.s32 %s10, 1
    %s18 = ssub.s32 %s10, %s17
    %p19 = scmp.eq.s32.totalorder %s18, 0
    %s21 = sadd.s32 %s20, 1
    %s22 = scalar_select %p19, %s20, %s21
    %p25 = pneg %p19
    %p26 = scmp.eq.s32.totalorder %s10, 1
    %p27 = por %p25, %p26
    %p28 = scmp.ne.s32.totalorder %s20, %s23
    %p29 = scmp.eq.s32.totalorder %s10, 0
    %p30 = por %p28, %p29
    %p31 = scmp.ne.s32.totalorder %s20, %s23
    %p32 = scmp.eq.s32.totalorder %s15, 1
    %p33 = por %p31, %p32
    %p34 = scmp.ne.s32.totalorder %s23, %s24
    %p35 = scmp.eq.s32.totalorder %s15, 0
    %p36 = por %p34, %p35
    %p37 = scmp.ne.s32.totalorder %s23, %s24
    %p38 = scmp.eq.s32.totalorder %s16, 1
    %p39 = por %p37, %p38
    %p41 = scmp.ne.s32.totalorder %s24, %s40
    %p42 = scmp.eq.s32.totalorder %s16, 0
    %p43 = por %p41, %p42
    %s44 = ssub.s32 %s10, %s17
    %p45 = scmp.eq.s32.totalorder %s44, 0
    %s47 = sadd.s32 %s46, 1
    %s48 = scalar_select %p45, %s46, %s47
    %p51 = pneg %p45
    %p52 = scmp.eq.s32.totalorder %s10, 1
    %p53 = por %p51, %p52
    %p54 = scmp.ne.s32.totalorder %s46, %s49
    %p55 = scmp.eq.s32.totalorder %s10, 0
    %p56 = por %p54, %p55
    %p57 = scmp.ne.s32.totalorder %s46, %s49
    %p58 = scmp.eq.s32.totalorder %s15, 1
    %p59 = por %p57, %p58
    %p60 = scmp.ne.s32.totalorder %s49, %s50
    %p61 = scmp.eq.s32.totalorder %s15, 0
    %p62 = por %p60, %p61
    %p63 = scmp.ne.s32.totalorder %s49, %s50
    %p64 = scmp.eq.s32.totalorder %s16, 1
    %p65 = por %p63, %p64
    %p67 = scmp.ne.s32.totalorder %s50, %s66
    %p68 = scmp.eq.s32.totalorder %s16, 0
    %p69 = por %p67, %p68
    %s71 = sadd.s32 %s70, 1
    %p74 = scmp.eq.s32.totalorder %s10, 1
    %p75 = scmp.ne.s32.totalorder %s70, %s72
    %p76 = scmp.eq.s32.totalorder %s10, 0
    %p77 = por %p75, %p76
    %p78 = scmp.ne.s32.totalorder %s70, %s72
    %p79 = scmp.eq.s32.totalorder %s15, 1
    %p80 = por %p78, %p79
    %p81 = scmp.ne.s32.totalorder %s72, %s73
    %p82 = scmp.eq.s32.totalorder %s15, 0
    %p83 = por %p81, %p82
    %p84 = scmp.ne.s32.totalorder %s72, %s73
    %p85 = scmp.eq.s32.totalorder %s16, 1
    %p86 = por %p84, %p85
    %p88 = scmp.ne.s32.totalorder %s73, %s87
    %p89 = scmp.eq.s32.totalorder %s16, 0
    %p90 = por %p88, %p89
    %s92 = sadd.s32 %s91, 1
    %p95 = scmp.eq.s32.totalorder %s10, 1
    %p96 = scmp.ne.s32.totalorder %s91, %s93
    %p97 = scmp.eq.s32.totalorder %s10, 0
    %p98 = por %p96, %p97
    %p99 = scmp.ne.s32.totalorder %s91, %s93
    %p100 = scmp.eq.s32.totalorder %s15, 1
    %p101 = por %p99, %p100
    %p102 = scmp.ne.s32.totalorder %s93, %s94
    %p103 = scmp.eq.s32.totalorder %s15, 0
    %p104 = por %p102, %p103
    %p105 = scmp.ne.s32.totalorder %s93, %s94
    %p106 = scmp.eq.s32.totalorder %s16, 1
    %p107 = por %p105, %p106
    %p109 = scmp.ne.s32.totalorder %s94, %s108
    %p110 = scmp.eq.s32.totalorder %s16, 0
    %p111 = por %p109, %p110
    %s112 = ssub.s32 %s10, %s17
    %p113 = scmp.eq.s32.totalorder %s112, 0
    %s115 = sadd.s32 %s114, 1
    %s116 = scalar_select %p113, %s114, %s115
    %p119 = pneg %p113
    %p120 = scmp.eq.s32.totalorder %s10, 1
    %p121 = por %p119, %p120
    %p122 = scmp.ne.s32.totalorder %s114, %s117
    %p123 = scmp.eq.s32.totalorder %s10, 0
    %p124 = por %p122, %p123
    %p125 = scmp.ne.s32.totalorder %s114, %s117
    %p126 = scmp.eq.s32.totalorder %s15, 1
    %p127 = por %p125, %p126
    %p128 = scmp.ne.s32.totalorder %s117, %s118
    %p129 = scmp.eq.s32.totalorder %s15, 0
    %p130 = por %p128, %p129
    %p131 = scmp.ne.s32.totalorder %s117, %s118
    %p132 = scmp.eq.s32.totalorder %s16, 1
    %p133 = por %p131, %p132
    %p135 = scmp.ne.s32.totalorder %s118, %s134
    %p136 = scmp.eq.s32.totalorder %s16, 0
    %p137 = por %p135, %p136
    %p138 = scmp.le.s32.totalorder 1, %s10
    %p139 = scmp.lt.s32.totalorder %s10, 3
    %p140 = pnand %p138, %p139
    %p141 = pneg %p140
    // Predicated region
    $region9: #{rpn_forward.13} parent=5 // pred_check
      _
    $region10: #{rpn_forward.13} parent=5 // pred_check_branch
      %143 = sbr.rel (%p140) target = $region12
    $region11: #{rpn_forward.13} parent=5 // pred_region
      %s144 = ssub.s32 %s10, 1
      // Predicated region
      $region13: #{rpn_forward.13} parent=11 // pred_check
        %p145 = pneg %p83
      $region14: #{rpn_forward.13} parent=11 // pred_check_branch
        %147 = sbr.rel (%p145) target = $region16
      $region15: #{rpn_forward.13} parent=11 // pred_region
        _
      $region16: #{rpn_forward.13} parent=11 // pred_fallthru
        _
      // Predicated region
      $region17: #{rpn_forward.13} parent=11 // pred_check
        %p148 = pneg %p104
      $region18: #{rpn_forward.13} parent=11 // pred_check_branch
        %150 = sbr.rel (%p148) target = $region20
      $region19: #{rpn_forward.13} parent=11 // pred_region
        _
      $region20: #{rpn_forward.13} parent=11 // pred_fallthru
        _
    $region12: #{rpn_forward.13} parent=5 // pred_fallthru
      _
    %p151 = scmp.lt.s32.totalorder %s10, 2
    // Predicated region
    $region21: #{rpn_forward.13} parent=5 // pred_check
      %p152 = pneg %p151
    $region22: #{rpn_forward.13} parent=5 // pred_check_branch
      %154 = sbr.rel (%p152) target = $region24
    $region23: #{rpn_forward.13} parent=5 // pred_region
      // Predicated region
      $region25: #{rpn_forward.13} parent=23 // pred_check
        %p155 = pneg %p30
      $region26: #{rpn_forward.13} parent=23 // pred_check_branch
        %157 = sbr.rel (%p155) target = $region28
      $region27: #{rpn_forward.13} parent=23 // pred_region
        %s158 = smul.u32 2, %s10
        %p159 = scmp.lt.s32.totalorder %s158, 3
        %s160 = scalar_select %p159, %s158, 3
        %s161 = smul.addr %s160, 4
        %s162 = scalar_lea.vmem %s0, %s161
        %s163 = smul.u32 2, %s10
      $region28: #{rpn_forward.13} parent=23 // pred_fallthru
        _
      // Predicated region
      $region29: #{rpn_forward.13} parent=23 // pred_check
        %p164 = pneg %p56
      $region30: #{rpn_forward.13} parent=23 // pred_check_branch
        %166 = sbr.rel (%p164) target = $region32
      $region31: #{rpn_forward.13} parent=23 // pred_region
        %s167 = smul.u32 2, %s10
        %p168 = scmp.lt.s32.totalorder %s167, 3
        %s169 = scalar_select %p168, %s167, 3
        %s170 = smul.addr %s169, 4
        %s171 = scalar_lea.vmem %s1, %s170
        %s172 = smul.u32 2, %s10
      $region32: #{rpn_forward.13} parent=23 // pred_fallthru
        _
    $region24: #{rpn_forward.13} parent=5 // pred_fallthru
      _
    %p173 = scmp.le.s32.totalorder 1, %s10
    %p174 = scmp.lt.s32.totalorder %s10, 3
    %p175 = pnand %p173, %p174
    %p176 = pneg %p175
    // Predicated region
    $region33: #{rpn_forward.13} parent=5 // pred_check
      _
    $region34: #{rpn_forward.13} parent=5 // pred_check_branch
      %178 = sbr.rel (%p175) target = $region36
    $region35: #{rpn_forward.13} parent=5 // pred_region
      %s179 = ssub.s32 %s10, 1
      %s180 = smul.u32 2, %s15
      %p181 = scmp.lt.s32.totalorder %s180, 3
      %s182 = scalar_select %p181, %s180, 3
      %s183 = smul.addr %s182, 4
      %s184 = scalar_lea.vmem %s0, %s183
      %p185 = pneg %p36
      %p186 = pneg %p33
      %s187 = smul.u32 2, %s15
      %p188 = scmp.lt.s32.totalorder %s187, 3
      %s189 = scalar_select %p188, %s187, 3
      %s190 = smul.addr %s189, 4
      %s191 = scalar_lea.vmem %s1, %s190
      %p192 = pneg %p62
      %p193 = pneg %p59
      %p194 = pneg %p83
      %p195 = pneg %p80
      %p196 = pneg %p104
      %p197 = pneg %p101
      %p198 = pneg %p130
      %p199 = pneg %p127
      %s200 = smul.u32 2, %s15
      %p201 = scmp.lt.s32.totalorder %s200, 3
      %s202 = scalar_select %p201, %s200, 3
      %s203 = smul.addr %s202, 4
      %s204 = scalar_lea.vmem %s4, %s203
      %s205 = smul.u32 2, %s15
      %p206 = scmp.lt.s32.totalorder %s205, 3
      %s207 = scalar_select %p206, %s205, 3
      %s208 = smul.addr %s207, 4
      %s209 = scalar_lea.vmem %s0, %s208
      %s210 = smul.u32 2, %s15
      %s211 = smul.u32 2, %s15
      %p212 = scmp.lt.s32.totalorder %s211, 3
      %s213 = scalar_select %p212, %s211, 3
      %s214 = smul.addr %s213, 4
      %s215 = scalar_lea.vmem %s1, %s214
      %s216 = smul.u32 2, %s15
      %s217 = smul.u32 2, %s15
      %p218 = scmp.lt.s32.totalorder %s217, 3
      %s219 = scalar_select %p218, %s217, 3
      %s220 = smul.addr %s219, 4
      %s221 = scalar_lea.vmem %s4, %s220
      %s222 = smul.u32 2, %s15
      %v224 = vld [vmem:[%s209] sm:$0xf]
      %v225 = vld [vmem:[%s209 + $0x4] sm:$0xf]
      %v226 = vunpack.c.l.bf16 %v224
      %v227 = vunpack.c.l.bf16 %v225
      %v228 = vld [vmem:[%s215] sm:$0xf]
      %v229 = vld [vmem:[%s215 + $0x4] sm:$0xf]
      %v230 = vunpack.c.l.bf16 %v228
      %v231 = vunpack.c.l.bf16 %v229
      %v232 = vmul.f32 %v226, %v230
      %v233 = vmul.f32 %v227, %v231
      %v234 = vpack.c.bf16 %v233, %v232
      %v235 = vld [vmem:[%s2] sm:$0xf]
      %v236 = vld [vmem:[%s2 + $0x4] sm:$0xf]
      %v237 = vld [vmem:[%s2 + $0x8] sm:$0xf]
      %v238 = vld [vmem:[%s2 + $0xc] sm:$0xf]
      %v239 = vld [vmem:[%s2 + $0x10] sm:$0xf]
      %v240 = vld [vmem:[%s2 + $0x14] sm:$0xf]
      %v241 = vld [vmem:[%s2 + $0x18] sm:$0xf]
      %v242 = vld [vmem:[%s2 + $0x1c] sm:$0xf]
      %v243 = vld [vmem:[%s3] sm:$0x1]
      %v245 = vperm.slane %v243, 0
      %v255 = vunpack.c.l.b16 %v235
      %v256 = vunpack.c.l.b16 %v236
      %v257 = vunpack.c.l.b16 %v237
      %v258 = vunpack.c.l.b16 %v238
      %v259 = vunpack.c.l.b16 %v239
      %v260 = vunpack.c.l.b16 %v240
      %v261 = vunpack.c.l.b16 %v241
      %v262 = vunpack.c.l.b16 %v242
      %v263 = vpack.c.b16 %v256, %v255
      %v264 = vpack.c.b16 %v258, %v257
      %v265 = vpack.c.b16 %v260, %v259
      %v266 = vpack.c.b16 %v262, %v261
      %vm271 = vcmask 523264
      %v273 = vsel %vm271, %v234, 0
      %275 = vmatpush.bf16.msra.mxu0 0
      %276 = vmatpush.bf16.msra.mxu0 0
      %277 = vmatpush.bf16.msra.mxu0 0
      %278 = vmatpush.bf16.msra.mxu0 0
      %279 = vmatpush.bf16.msra.mxu0 %v266
      %280 = vmatpush.bf16.msra.mxu0 %v265
      %281 = vmatpush.bf16.msra.mxu0 %v264
      %282 = vmatpush.bf16.msra.mxu0 %v263
      %283 = vmatmul.bf16.gmra.mxu0 %v273
      %v284 = vpop.f32.mrf.mxu0
      %v285 = vadd.f32 %v245, %v284
      %v286 = vpop.f32.mrf.mxu0
      %v287 = vadd.f32 %v245, %v286
      %288 = vdwg.mxu0
      %v289 = vmax.f32 %v285, 0.0
      %v290 = vmax.f32 %v287, 0.0
      %v291 = vpack.c.bf16 %v289, %v289
      %v292 = vpack.c.bf16 %v290, %v290
      %293 = vst [vmem:[%s221] sm:$0xf] %v291
      %294 = vst [vmem:[%s221 + $0x4] sm:$0xf] %v292
      %s295 = smul.u32 2, %s15
      %p296 = scmp.lt.s32.totalorder %s295, 3
      %s297 = scalar_select %p296, %s295, 3
      %s298 = smul.addr %s297, 4
      %s299 = scalar_lea.vmem %s4, %s298
      // Predicated region
      $region37: #{rpn_forward.13} parent=35 // pred_check
        %p300 = pneg %p127
      $region38: #{rpn_forward.13} parent=35 // pred_check_branch
        %302 = sbr.rel (%p300) target = $region40
      $region39: #{rpn_forward.13} parent=35 // pred_region
        %s303 = smul.u32 2, %s15
      $region40: #{rpn_forward.13} parent=35 // pred_fallthru
        _
    $region36: #{rpn_forward.13} parent=5 // pred_fallthru
      _
    %p304 = scmp.le.s32.totalorder 2, %s10
    // Predicated region
    $region41: #{rpn_forward.13} parent=5 // pred_check
      %p305 = pneg %p304
    $region42: #{rpn_forward.13} parent=5 // pred_check_branch
      %307 = sbr.rel (%p305) target = $region44
    $region43: #{rpn_forward.13} parent=5 // pred_region
      %s308 = ssub.s32 %s10, 2
      // Predicated region
      $region45: #{rpn_forward.13} parent=43 // pred_check
        %p309 = pneg %p133
      $region46: #{rpn_forward.13} parent=43 // pred_check_branch
        %311 = sbr.rel (%p309) target = $region48
      $region47: #{rpn_forward.13} parent=43 // pred_region
        %s312 = smul.u32 2, %s16
        %p313 = scmp.lt.s32.totalorder %s312, 3
        %s314 = scalar_select %p313, %s312, 3
        %s315 = smul.addr %s314, 4
        %s316 = scalar_lea.vmem %s4, %s315
      $region48: #{rpn_forward.13} parent=43 // pred_fallthru
        _
    $region44: #{rpn_forward.13} parent=5 // pred_fallthru
      _
  $region6: #{rpn_forward.13} parent=0 // loop_footer
    %s14 = sadd.s32 1, %s10
  $region7: #{rpn_forward.13} parent=0 // loop_footer_branch
    %9 = sbr.rel target = $region3
  $region8: #{rpn_forward.13} parent=0 // loop_exit
    _

// kernel: rpn_forward.12
$region0: #{rpn_forward.12}
  #allocation0 [shape = 'u32[]', space=smem, size = 0x4, offset = 0x4, fixed_abs, tag = 'smem constant byte address 0x4 - core index']
  #allocation1 [shape = 'u32[72,128]{1,0:T(1,128)}', space=vmem, size = 0x9000, scoped, tag = 'internal scratch']
  %s0 = inlined_call_operand.vmem [shape: bf16[32,32], index: 0, kind: input, shape index: {}]
  %s1 = inlined_call_operand.vmem [shape: bf16[32,32], index: 1, kind: input, shape index: {}]
  %s2 = inlined_call_operand.vmem [shape: bf16[2,32,64], index: 2, kind: input, shape index: {}]
  %s3 = inlined_call_operand.vmem [shape: f32[2,1,64], index: 3, kind: input, shape index: {}]
  %s4 = inlined_call_operand.vmem [shape: bf16[32,64], index: 4, kind: output, shape index: {0}]
  %s5 = inlined_call_operand.vmem [shape: bf16[32,64], index: 5, kind: output, shape index: {1}]
  %6 = xla_tuple %s4, %s5
  %s7 = sld [smem:[#allocation0]]
  $region57: #{rpn_forward.12} parent=0
    _
  %s9 = ssub.s32 1, %s7
  %s10 = scalar_select 0, %s9, %s7
  loop: start=0, step=1, limit=4
  $region2: #{rpn_forward.12} parent=0 // loop_pre_header
    _
  $region3: #{rpn_forward.12} parent=0 // loop_header
    %s12 = sphi 0, %s16
    %p13 = scmp.ge.s32.totalorder %s12, 4
    %s22 = sphi 0, %s24
    %s25 = sphi 0, %s22
    %s26 = sphi 0, %s25
    %s42 = sphi 0, %s26
    %s48 = sphi 0, %s50
    %s51 = sphi 0, %s48
    %s52 = sphi 0, %s51
    %s68 = sphi 0, %s52
    %s72 = sphi 0, %s72
    %s74 = sphi 0, %s72
    %s75 = sphi 0, %s74
    %s89 = sphi 0, %s75
    %s93 = sphi 0, %s93
    %s95 = sphi 0, %s93
    %s96 = sphi 0, %s95
    %s110 = sphi 0, %s96
    %s116 = sphi 0, %s118
    %s119 = sphi 0, %s116
    %s120 = sphi 0, %s119
    %s136 = sphi 0, %s120
    %s142 = sphi 0, %s144
    %s145 = sphi 0, %s142
    %s146 = sphi 0, %s145
    %s162 = sphi 0, %s146
  $region4: #{rpn_forward.12} parent=0 // loop_header_branch
    %15 = sbr.rel (%p13) target = $region8
  $region5: #{rpn_forward.12} parent=0 // loop_body
    %s17 = ssub.s32 %s12, 1
    %s18 = ssub.s32 %s12, 2
    %s19 = sadd.s32 %s12, 1
    %s20 = ssub.s32 %s12, %s19
    %p21 = scmp.eq.s32.totalorder %s20, 0
    %s23 = sadd.s32 %s22, 1
    %s24 = scalar_select %p21, %s22, %s23
    %p27 = pneg %p21
    %p28 = scmp.eq.s32.totalorder %s12, 1
    %p29 = por %p27, %p28
    %p30 = scmp.ne.s32.totalorder %s22, %s25
    %p31 = scmp.eq.s32.totalorder %s12, 0
    %p32 = por %p30, %p31
    %p33 = scmp.ne.s32.totalorder %s22, %s25
    %p34 = scmp.eq.s32.totalorder %s17, 1
    %p35 = por %p33, %p34
    %p36 = scmp.ne.s32.totalorder %s25, %s26
    %p37 = scmp.eq.s32.totalorder %s17, 0
    %p38 = por %p36, %p37
    %p39 = scmp.ne.s32.totalorder %s25, %s26
    %p40 = scmp.eq.s32.totalorder %s18, 1
    %p41 = por %p39, %p40
    %p43 = scmp.ne.s32.totalorder %s26, %s42
    %p44 = scmp.eq.s32.totalorder %s18, 0
    %p45 = por %p43, %p44
    %s46 = ssub.s32 %s12, %s19
    %p47 = scmp.eq.s32.totalorder %s46, 0
    %s49 = sadd.s32 %s48, 1
    %s50 = scalar_select %p47, %s48, %s49
    %p53 = pneg %p47
    %p54 = scmp.eq.s32.totalorder %s12, 1
    %p55 = por %p53, %p54
    %p56 = scmp.ne.s32.totalorder %s48, %s51
    %p57 = scmp.eq.s32.totalorder %s12, 0
    %p58 = por %p56, %p57
    %p59 = scmp.ne.s32.totalorder %s48, %s51
    %p60 = scmp.eq.s32.totalorder %s17, 1
    %p61 = por %p59, %p60
    %p62 = scmp.ne.s32.totalorder %s51, %s52
    %p63 = scmp.eq.s32.totalorder %s17, 0
    %p64 = por %p62, %p63
    %p65 = scmp.ne.s32.totalorder %s51, %s52
    %p66 = scmp.eq.s32.totalorder %s18, 1
    %p67 = por %p65, %p66
    %p69 = scmp.ne.s32.totalorder %s52, %s68
    %p70 = scmp.eq.s32.totalorder %s18, 0
    %p71 = por %p69, %p70
    %s73 = sadd.s32 %s72, 1
    %p76 = scmp.eq.s32.totalorder %s12, 1
    %p77 = scmp.ne.s32.totalorder %s72, %s74
    %p78 = scmp.eq.s32.totalorder %s12, 0
    %p79 = por %p77, %p78
    %p80 = scmp.ne.s32.totalorder %s72, %s74
    %p81 = scmp.eq.s32.totalorder %s17, 1
    %p82 = por %p80, %p81
    %p83 = scmp.ne.s32.totalorder %s74, %s75
    %p84 = scmp.eq.s32.totalorder %s17, 0
    %p85 = por %p83, %p84
    %p86 = scmp.ne.s32.totalorder %s74, %s75
    %p87 = scmp.eq.s32.totalorder %s18, 1
    %p88 = por %p86, %p87
    %p90 = scmp.ne.s32.totalorder %s75, %s89
    %p91 = scmp.eq.s32.totalorder %s18, 0
    %p92 = por %p90, %p91
    %s94 = sadd.s32 %s93, 1
    %p97 = scmp.eq.s32.totalorder %s12, 1
    %p98 = scmp.ne.s32.totalorder %s93, %s95
    %p99 = scmp.eq.s32.totalorder %s12, 0
    %p100 = por %p98, %p99
    %p101 = scmp.ne.s32.totalorder %s93, %s95
    %p102 = scmp.eq.s32.totalorder %s17, 1
    %p103 = por %p101, %p102
    %p104 = scmp.ne.s32.totalorder %s95, %s96
    %p105 = scmp.eq.s32.totalorder %s17, 0
    %p106 = por %p104, %p105
    %p107 = scmp.ne.s32.totalorder %s95, %s96
    %p108 = scmp.eq.s32.totalorder %s18, 1
    %p109 = por %p107, %p108
    %p111 = scmp.ne.s32.totalorder %s96, %s110
    %p112 = scmp.eq.s32.totalorder %s18, 0
    %p113 = por %p111, %p112
    %s114 = ssub.s32 %s12, %s19
    %p115 = scmp.eq.s32.totalorder %s114, 0
    %s117 = sadd.s32 %s116, 1
    %s118 = scalar_select %p115, %s116, %s117
    %p121 = pneg %p115
    %p122 = scmp.eq.s32.totalorder %s12, 1
    %p123 = por %p121, %p122
    %p124 = scmp.ne.s32.totalorder %s116, %s119
    %p125 = scmp.eq.s32.totalorder %s12, 0
    %p126 = por %p124, %p125
    %p127 = scmp.ne.s32.totalorder %s116, %s119
    %p128 = scmp.eq.s32.totalorder %s17, 1
    %p129 = por %p127, %p128
    %p130 = scmp.ne.s32.totalorder %s119, %s120
    %p131 = scmp.eq.s32.totalorder %s17, 0
    %p132 = por %p130, %p131
    %p133 = scmp.ne.s32.totalorder %s119, %s120
    %p134 = scmp.eq.s32.totalorder %s18, 1
    %p135 = por %p133, %p134
    %p137 = scmp.ne.s32.totalorder %s120, %s136
    %p138 = scmp.eq.s32.totalorder %s18, 0
    %p139 = por %p137, %p138
    %s140 = ssub.s32 %s12, %s19
    %p141 = scmp.eq.s32.totalorder %s140, 0
    %s143 = sadd.s32 %s142, 1
    %s144 = scalar_select %p141, %s142, %s143
    %p147 = pneg %p141
    %p148 = scmp.eq.s32.totalorder %s12, 1
    %p149 = por %p147, %p148
    %p150 = scmp.ne.s32.totalorder %s142, %s145
    %p151 = scmp.eq.s32.totalorder %s12, 0
    %p152 = por %p150, %p151
    %p153 = scmp.ne.s32.totalorder %s142, %s145
    %p154 = scmp.eq.s32.totalorder %s17, 1
    %p155 = por %p153, %p154
    %p156 = scmp.ne.s32.totalorder %s145, %s146
    %p157 = scmp.eq.s32.totalorder %s17, 0
    %p158 = por %p156, %p157
    %p159 = scmp.ne.s32.totalorder %s145, %s146
    %p160 = scmp.eq.s32.totalorder %s18, 1
    %p161 = por %p159, %p160
    %p163 = scmp.ne.s32.totalorder %s146, %s162
    %p164 = scmp.eq.s32.totalorder %s18, 0
    %p165 = por %p163, %p164
    %p166 = scmp.le.s32.totalorder 1, %s12
    %p167 = scmp.lt.s32.totalorder %s12, 3
    %p168 = pnand %p166, %p167
    %p169 = pneg %p168
    // Predicated region
    $region9: #{rpn_forward.12} parent=5 // pred_check
      _
    $region10: #{rpn_forward.12} parent=5 // pred_check_branch
      %171 = sbr.rel (%p168) target = $region12
    $region11: #{rpn_forward.12} parent=5 // pred_region
      %s172 = ssub.s32 %s12, 1
      // Predicated region
      $region13: #{rpn_forward.12} parent=11 // pred_check
        %p173 = pneg %p85
      $region14: #{rpn_forward.12} parent=11 // pred_check_branch
        %175 = sbr.rel (%p173) target = $region16
      $region15: #{rpn_forward.12} parent=11 // pred_region
        _
      $region16: #{rpn_forward.12} parent=11 // pred_fallthru
        _
      // Predicated region
      $region17: #{rpn_forward.12} parent=11 // pred_check
        %p176 = pneg %p106
      $region18: #{rpn_forward.12} parent=11 // pred_check_branch
        %178 = sbr.rel (%p176) target = $region20
      $region19: #{rpn_forward.12} parent=11 // pred_region
        _
      $region20: #{rpn_forward.12} parent=11 // pred_fallthru
        _
    $region12: #{rpn_forward.12} parent=5 // pred_fallthru
      _
    %p179 = scmp.lt.s32.totalorder %s12, 2
    // Predicated region
    $region21: #{rpn_forward.12} parent=5 // pred_check
      %p180 = pneg %p179
    $region22: #{rpn_forward.12} parent=5 // pred_check_branch
      %182 = sbr.rel (%p180) target = $region24
    $region23: #{rpn_forward.12} parent=5 // pred_region
      // Predicated region
      $region25: #{rpn_forward.12} parent=23 // pred_check
        %p183 = pneg %p32
      $region26: #{rpn_forward.12} parent=23 // pred_check_branch
        %185 = sbr.rel (%p183) target = $region28
      $region27: #{rpn_forward.12} parent=23 // pred_region
        %s186 = smul.u32 2, %s12
        %p187 = scmp.lt.s32.totalorder %s186, 3
        %s188 = scalar_select %p187, %s186, 3
        %s189 = smul.addr %s188, 4
        %s190 = scalar_lea.vmem %s0, %s189
        %s191 = smul.u32 2, %s12
      $region28: #{rpn_forward.12} parent=23 // pred_fallthru
        _
      // Predicated region
      $region29: #{rpn_forward.12} parent=23 // pred_check
        %p192 = pneg %p58
      $region30: #{rpn_forward.12} parent=23 // pred_check_branch
        %194 = sbr.rel (%p192) target = $region32
      $region31: #{rpn_forward.12} parent=23 // pred_region
        %s195 = smul.u32 2, %s12
        %p196 = scmp.lt.s32.totalorder %s195, 3
        %s197 = scalar_select %p196, %s195, 3
        %s198 = smul.addr %s197, 4
        %s199 = scalar_lea.vmem %s1, %s198
        %s200 = smul.u32 2, %s12
      $region32: #{rpn_forward.12} parent=23 // pred_fallthru
        _
    $region24: #{rpn_forward.12} parent=5 // pred_fallthru
      _
    %p201 = scmp.le.s32.totalorder 1, %s12
    %p202 = scmp.lt.s32.totalorder %s12, 3
    %p203 = pnand %p201, %p202
    %p204 = pneg %p203
    // Predicated region
    $region33: #{rpn_forward.12} parent=5 // pred_check
      _
    $region34: #{rpn_forward.12} parent=5 // pred_check_branch
      %206 = sbr.rel (%p203) target = $region36
    $region35: #{rpn_forward.12} parent=5 // pred_region
      %s207 = ssub.s32 %s12, 1
      %s208 = smul.u32 2, %s17
      %p209 = scmp.lt.s32.totalorder %s208, 3
      %s210 = scalar_select %p209, %s208, 3
      %s211 = smul.addr %s210, 4
      %s212 = scalar_lea.vmem %s0, %s211
      %p213 = pneg %p38
      %p214 = pneg %p35
      %s215 = smul.u32 2, %s17
      %p216 = scmp.lt.s32.totalorder %s215, 3
      %s217 = scalar_select %p216, %s215, 3
      %s218 = smul.addr %s217, 4
      %s219 = scalar_lea.vmem %s1, %s218
      %p220 = pneg %p64
      %p221 = pneg %p61
      %p222 = pneg %p85
      %p223 = pneg %p82
      %p224 = pneg %p106
      %p225 = pneg %p103
      %p226 = pneg %p132
      %p227 = pneg %p129
      %s228 = smul.u32 2, %s17
      %p229 = scmp.lt.s32.totalorder %s228, 3
      %s230 = scalar_select %p229, %s228, 3
      %s231 = smul.addr %s230, 4
      %s232 = scalar_lea.vmem %s4, %s231
      %p233 = pneg %p158
      %p234 = pneg %p155
      %s235 = smul.u32 2, %s17
      %p236 = scmp.lt.s32.totalorder %s235, 3
      %s237 = scalar_select %p236, %s235, 3
      %s238 = smul.addr %s237, 4
      %s239 = scalar_lea.vmem %s5, %s238
      %s240 = smul.u32 2, %s17
      %p241 = scmp.lt.s32.totalorder %s240, 3
      %s242 = scalar_select %p241, %s240, 3
      %s243 = smul.addr %s242, 4
      %s244 = scalar_lea.vmem %s0, %s243
      %s245 = smul.u32 2, %s17
      %s246 = smul.u32 2, %s17
      %p247 = scmp.lt.s32.totalorder %s246, 3
      %s248 = scalar_select %p247, %s246, 3
      %s249 = smul.addr %s248, 4
      %s250 = scalar_lea.vmem %s1, %s249
      %s251 = smul.u32 2, %s17
      %s252 = smul.u32 2, %s17
      %p253 = scmp.lt.s32.totalorder %s252, 3
      %s254 = scalar_select %p253, %s252, 3
      %s255 = smul.addr %s254, 4
      %s256 = scalar_lea.vmem %s4, %s255
      %s257 = smul.u32 2, %s17
      %s258 = smul.u32 2, %s17
      %p259 = scmp.lt.s32.totalorder %s258, 3
      %s260 = scalar_select %p259, %s258, 3
      %s261 = smul.addr %s260, 4
      %s262 = scalar_lea.vmem %s5, %s261
      %s263 = smul.u32 2, %s17
      %v265 = vld [vmem:[%s244] sm:$0xf]
      %v266 = vld [vmem:[%s244 + $0x4] sm:$0xf]
      %v267 = vld [vmem:[%s250] sm:$0xf]
      %v268 = vld [vmem:[%s250 + $0x4] sm:$0xf]
      %v269 = vld [vmem:[%s2] sm:$0xf]
      %v270 = vld [vmem:[%s2 + $0x4] sm:$0xf]
      %v271 = vld [vmem:[%s2 + $0x8] sm:$0xf]
      %v272 = vld [vmem:[%s2 + $0xc] sm:$0xf]
      %v273 = vld [vmem:[%s3] sm:$0x1]
      %v275 = vperm.slane %v273, 0
      %v279 = vunpack.c.l.b16 %v265
      %v280 = vunpack.c.l.b16 %v266
      %v281 = vpack.c.b16 %v280, %v279
      %v286 = vunpack.c.l.b16 %v269
      %v287 = vunpack.c.l.b16 %v270
      %v288 = vunpack.c.l.b16 %v271
      %v289 = vunpack.c.l.b16 %v272
      %v290 = vpack.c.b16 %v287, %v286
      %v291 = vpack.c.b16 %v289, %v288
      %vm294 = vcmask 261120
      %v296 = vsel %vm294, %v281, 0
      %298 = vmatpush.bf16.msra.mxu0 0
      %299 = vmatpush.bf16.msra.mxu0 0
      %300 = vmatpush.bf16.msra.mxu0 0
      %301 = vmatpush.bf16.msra.mxu0 0
      %302 = vmatpush.bf16.msra.mxu0 0
      %303 = vmatpush.bf16.msra.mxu0 0
      %304 = vmatpush.bf16.msra.mxu0 %v291
      %305 = vmatpush.bf16.msra.mxu0 %v290
      %306 = vmatmul.bf16.gmra.mxu0 %v296
      %v307 = vpop.f32.mrf.mxu0
      %v308 = vadd.f32 %v275, %v307
      %v309 = vpop.f32.mrf.mxu0
      %v310 = vadd.f32 %v275, %v309
      %311 = vdwg.mxu0
      %s312 = scalar_lea.vmem %s2, 16
      %v313 = vld [vmem:[%s312] sm:$0xf]
      %v314 = vld [vmem:[%s312 + $0x4] sm:$0xf]
      %v315 = vld [vmem:[%s312 + $0x8] sm:$0xf]
      %v316 = vld [vmem:[%s312 + $0xc] sm:$0xf]
      %s317 = scalar_lea.vmem %s3, 1
      %v318 = vld [vmem:[%s317] sm:$0x1]
      %v320 = vperm.slane %v318, 0
      %v324 = vunpack.c.l.b16 %v267
      %v325 = vunpack.c.l.b16 %v268
      %v326 = vpack.c.b16 %v325, %v324
      %v331 = vunpack.c.l.b16 %v313
      %v332 = vunpack.c.l.b16 %v314
      %v333 = vunpack.c.l.b16 %v315
      %v334 = vunpack.c.l.b16 %v316
      %v335 = vpack.c.b16 %v332, %v331
      %v336 = vpack.c.b16 %v334, %v333
      %v340 = vsel %vm294, %v326, 0
      %342 = vmatpush.bf16.msra.mxu0 0
      %343 = vmatpush.bf16.msra.mxu0 0
      %344 = vmatpush.bf16.msra.mxu0 0
      %345 = vmatpush.bf16.msra.mxu0 0
      %346 = vmatpush.bf16.msra.mxu0 0
      %347 = vmatpush.bf16.msra.mxu0 0
      %348 = vmatpush.bf16.msra.mxu0 %v336
      %349 = vmatpush.bf16.msra.mxu0 %v335
      %350 = vmatmul.bf16.gmra.mxu0 %v340
      %v351 = vpop.f32.mrf.mxu0
      %v352 = vadd.f32 %v320, %v351
      %v353 = vpop.f32.mrf.mxu0
      %v354 = vadd.f32 %v320, %v353
      %355 = vdwg.mxu0
      %v356 = vmax.f32 %v308, 0.0
      %v357 = vmax.f32 %v310, 0.0
      %v358 = vpack.c.bf16 %v356, %v356
      %v359 = vpack.c.bf16 %v357, %v357
      %vm360 = vcmask 519168
      %361 = vst.msk [vmem:[%s256] sm:$0xf] %vm360, %v358
      %362 = vst.msk [vmem:[%s256 + $0x4] sm:$0xf] %vm360, %v359
      %v363 = vmax.f32 %v352, 0.0
      %v364 = vmax.f32 %v354, 0.0
      %v365 = vpack.c.bf16 %v363, %v363
      %v366 = vpack.c.bf16 %v364, %v364
      %367 = vst.msk [vmem:[%s262] sm:$0xf] %vm360, %v365
      %368 = vst.msk [vmem:[%s262 + $0x4] sm:$0xf] %vm360, %v366
      %s369 = smul.u32 2, %s17
      %p370 = scmp.lt.s32.totalorder %s369, 3
      %s371 = scalar_select %p370, %s369, 3
      %s372 = smul.addr %s371, 4
      %s373 = scalar_lea.vmem %s4, %s372
      %s374 = smul.u32 2, %s17
      %p375 = scmp.lt.s32.totalorder %s374, 3
      %s376 = scalar_select %p375, %s374, 3
      %s377 = smul.addr %s376, 4
      %s378 = scalar_lea.vmem %s5, %s377
      // Predicated region
      $region37: #{rpn_forward.12} parent=35 // pred_check
        %p379 = pneg %p129
      $region38: #{rpn_forward.12} parent=35 // pred_check_branch
        %381 = sbr.rel (%p379) target = $region40
      $region39: #{rpn_forward.12} parent=35 // pred_region
        %s382 = smul.u32 2, %s17
      $region40: #{rpn_forward.12} parent=35 // pred_fallthru
        _
      // Predicated region
      $region41: #{rpn_forward.12} parent=35 // pred_check
        %p383 = pneg %p155
      $region42: #{rpn_forward.12} parent=35 // pred_check_branch
        %385 = sbr.rel (%p383) target = $region44
      $region43: #{rpn_forward.12} parent=35 // pred_region
        %s386 = smul.u32 2, %s17
      $region44: #{rpn_forward.12} parent=35 // pred_fallthru
        _
    $region36: #{rpn_forward.12} parent=5 // pred_fallthru
      _
    %p387 = scmp.le.s32.totalorder 2, %s12
    // Predicated region
    $region45: #{rpn_forward.12} parent=5 // pred_check
      %p388 = pneg %p387
    $region46: #{rpn_forward.12} parent=5 // pred_check_branch
      %390 = sbr.rel (%p388) target = $region48
    $region47: #{rpn_forward.12} parent=5 // pred_region
      %s391 = ssub.s32 %s12, 2
      // Predicated region
      $region49: #{rpn_forward.12} parent=47 // pred_check
        %p392 = pneg %p135
      $region50: #{rpn_forward.12} parent=47 // pred_check_branch
        %394 = sbr.rel (%p392) target = $region52
      $region51: #{rpn_forward.12} parent=47 // pred_region
        %s395 = smul.u32 2, %s18
        %p396 = scmp.lt.s32.totalorder %s395, 3
        %s397 = scalar_select %p396, %s395, 3
        %s398 = smul.addr %s397, 4
        %s399 = scalar_lea.vmem %s4, %s398
      $region52: #{rpn_forward.12} parent=47 // pred_fallthru
        _
      // Predicated region
      $region53: #{rpn_forward.12} parent=47 // pred_check
        %p400 = pneg %p161
      $region54: #{rpn_forward.12} parent=47 // pred_check_branch
        %402 = sbr.rel (%p400) target = $region56
      $region55: #{rpn_forward.12} parent=47 // pred_region
        %s403 = smul.u32 2, %s18
        %p404 = scmp.lt.s32.totalorder %s403, 3
        %s405 = scalar_select %p404, %s403, 3
        %s406 = smul.addr %s405, 4
        %s407 = scalar_lea.vmem %s5, %s406
      $region56: #{rpn_forward.12} parent=47 // pred_fallthru
        _
    $region48: #{rpn_forward.12} parent=5 // pred_fallthru
      _
  $region6: #{rpn_forward.12} parent=0 // loop_footer
    %s16 = sadd.s32 1, %s12
  $region7: #{rpn_forward.12} parent=0 // loop_footer_branch
    %11 = sbr.rel target = $region3
  $region8: #{rpn_forward.12} parent=0 // loop_exit
    _

// kernel: rpn_forward.11
$region0: #{rpn_forward.11}
  #allocation0 [shape = 'u32[]', space=smem, size = 0x4, offset = 0x4, fixed_abs, tag = 'smem constant byte address 0x4 - core index']
  #allocation1 [shape = 'u32[72,128]{1,0:T(1,128)}', space=vmem, size = 0x9000, scoped, tag = 'internal scratch']
  %s0 = inlined_call_operand.vmem [shape: bf16[2,8,8,32], index: 0, kind: input, shape index: {}]
  %s1 = inlined_call_operand.vmem [shape: bf16[2,14,14,32], index: 1, kind: input, shape index: {}]
  %s2 = inlined_call_operand.vmem [shape: bf16[32,32], index: 2, kind: input, shape index: {}]
  %s3 = inlined_call_operand.vmem [shape: bf16[2,64,32], index: 3, kind: output, shape index: {}]
  %s4 = sld [smem:[#allocation0]]
  $region45: #{rpn_forward.11} parent=0
    _
  %s6 = ssub.s32 1, %s4
  %s7 = scalar_select 0, %s6, %s4
  loop: start=0, step=1, limit=4
  $region2: #{rpn_forward.11} parent=0 // loop_pre_header
    _
  $region3: #{rpn_forward.11} parent=0 // loop_header
    %s9 = sphi 0, %s13
    %p10 = scmp.ge.s32.totalorder %s9, 4
    %s19 = sphi 0, %s21
    %s22 = sphi 0, %s19
    %s23 = sphi 0, %s22
    %s39 = sphi 0, %s23
    %s45 = sphi 0, %s47
    %s48 = sphi 0, %s45
    %s49 = sphi 0, %s48
    %s65 = sphi 0, %s49
    %s69 = sphi 0, %s69
    %s71 = sphi 0, %s69
    %s72 = sphi 0, %s71
    %s86 = sphi 0, %s72
    %s92 = sphi 0, %s94
    %s95 = sphi 0, %s92
    %s96 = sphi 0, %s95
    %s112 = sphi 0, %s96
  $region4: #{rpn_forward.11} parent=0 // loop_header_branch
    %12 = sbr.rel (%p10) target = $region8
  $region5: #{rpn_forward.11} parent=0 // loop_body
    %s14 = ssub.s32 %s9, 1
    %s15 = ssub.s32 %s9, 2
    %s16 = sadd.s32 %s9, 1
    %s17 = ssub.s32 %s9, %s16
    %p18 = scmp.eq.s32.totalorder %s17, 0
    %s20 = sadd.s32 %s19, 1
    %s21 = scalar_select %p18, %s19, %s20
    %p24 = pneg %p18
    %p25 = scmp.eq.s32.totalorder %s9, 1
    %p26 = por %p24, %p25
    %p27 = scmp.ne.s32.totalorder %s19, %s22
    %p28 = scmp.eq.s32.totalorder %s9, 0
    %p29 = por %p27, %p28
    %p30 = scmp.ne.s32.totalorder %s19, %s22
    %p31 = scmp.eq.s32.totalorder %s14, 1
    %p32 = por %p30, %p31
    %p33 = scmp.ne.s32.totalorder %s22, %s23
    %p34 = scmp.eq.s32.totalorder %s14, 0
    %p35 = por %p33, %p34
    %p36 = scmp.ne.s32.totalorder %s22, %s23
    %p37 = scmp.eq.s32.totalorder %s15, 1
    %p38 = por %p36, %p37
    %p40 = scmp.ne.s32.totalorder %s23, %s39
    %p41 = scmp.eq.s32.totalorder %s15, 0
    %p42 = por %p40, %p41
    %s43 = ssub.s32 %s9, %s16
    %p44 = scmp.eq.s32.totalorder %s43, 0
    %s46 = sadd.s32 %s45, 1
    %s47 = scalar_select %p44, %s45, %s46
    %p50 = pneg %p44
    %p51 = scmp.eq.s32.totalorder %s9, 1
    %p52 = por %p50, %p51
    %p53 = scmp.ne.s32.totalorder %s45, %s48
    %p54 = scmp.eq.s32.totalorder %s9, 0
    %p55 = por %p53, %p54
    %p56 = scmp.ne.s32.totalorder %s45, %s48
    %p57 = scmp.eq.s32.totalorder %s14, 1
    %p58 = por %p56, %p57
    %p59 = scmp.ne.s32.totalorder %s48, %s49
    %p60 = scmp.eq.s32.totalorder %s14, 0
    %p61 = por %p59, %p60
    %p62 = scmp.ne.s32.totalorder %s48, %s49
    %p63 = scmp.eq.s32.totalorder %s15, 1
    %p64 = por %p62, %p63
    %p66 = scmp.ne.s32.totalorder %s49, %s65
    %p67 = scmp.eq.s32.totalorder %s15, 0
    %p68 = por %p66, %p67
    %s70 = sadd.s32 %s69, 1
    %p73 = scmp.eq.s32.totalorder %s9, 1
    %p74 = scmp.ne.s32.totalorder %s69, %s71
    %p75 = scmp.eq.s32.totalorder %s9, 0
    %p76 = por %p74, %p75
    %p77 = scmp.ne.s32.totalorder %s69, %s71
    %p78 = scmp.eq.s32.totalorder %s14, 1
    %p79 = por %p77, %p78
    %p80 = scmp.ne.s32.totalorder %s71, %s72
    %p81 = scmp.eq.s32.totalorder %s14, 0
    %p82 = por %p80, %p81
    %p83 = scmp.ne.s32.totalorder %s71, %s72
    %p84 = scmp.eq.s32.totalorder %s15, 1
    %p85 = por %p83, %p84
    %p87 = scmp.ne.s32.totalorder %s72, %s86
    %p88 = scmp.eq.s32.totalorder %s15, 0
    %p89 = por %p87, %p88
    %s90 = ssub.s32 %s9, %s16
    %p91 = scmp.eq.s32.totalorder %s90, 0
    %s93 = sadd.s32 %s92, 1
    %s94 = scalar_select %p91, %s92, %s93
    %p97 = pneg %p91
    %p98 = scmp.eq.s32.totalorder %s9, 1
    %p99 = por %p97, %p98
    %p100 = scmp.ne.s32.totalorder %s92, %s95
    %p101 = scmp.eq.s32.totalorder %s9, 0
    %p102 = por %p100, %p101
    %p103 = scmp.ne.s32.totalorder %s92, %s95
    %p104 = scmp.eq.s32.totalorder %s14, 1
    %p105 = por %p103, %p104
    %p106 = scmp.ne.s32.totalorder %s95, %s96
    %p107 = scmp.eq.s32.totalorder %s14, 0
    %p108 = por %p106, %p107
    %p109 = scmp.ne.s32.totalorder %s95, %s96
    %p110 = scmp.eq.s32.totalorder %s15, 1
    %p111 = por %p109, %p110
    %p113 = scmp.ne.s32.totalorder %s96, %s112
    %p114 = scmp.eq.s32.totalorder %s15, 0
    %p115 = por %p113, %p114
    %p116 = scmp.le.s32.totalorder 1, %s9
    %p117 = scmp.lt.s32.totalorder %s9, 3
    %p118 = pnand %p116, %p117
    %p119 = pneg %p118
    // Predicated region
    $region9: #{rpn_forward.11} parent=5 // pred_check
      _
    $region10: #{rpn_forward.11} parent=5 // pred_check_branch
      %121 = sbr.rel (%p118) target = $region12
    $region11: #{rpn_forward.11} parent=5 // pred_region
      %s122 = ssub.s32 %s9, 1
      // Predicated region
      $region13: #{rpn_forward.11} parent=11 // pred_check
        %p123 = pneg %p82
      $region14: #{rpn_forward.11} parent=11 // pred_check_branch
        %125 = sbr.rel (%p123) target = $region16
      $region15: #{rpn_forward.11} parent=11 // pred_region
        _
      $region16: #{rpn_forward.11} parent=11 // pred_fallthru
        _
    $region12: #{rpn_forward.11} parent=5 // pred_fallthru
      _
    %p126 = scmp.lt.s32.totalorder %s9, 2
    // Predicated region
    $region17: #{rpn_forward.11} parent=5 // pred_check
      %p127 = pneg %p126
    $region18: #{rpn_forward.11} parent=5 // pred_check_branch
      %129 = sbr.rel (%p127) target = $region20
    $region19: #{rpn_forward.11} parent=5 // pred_region
      // Predicated region
      $region21: #{rpn_forward.11} parent=19 // pred_check
        %p130 = pneg %p29
      $region22: #{rpn_forward.11} parent=19 // pred_check_branch
        %132 = sbr.rel (%p130) target = $region24
      $region23: #{rpn_forward.11} parent=19 // pred_region
        %p133 = scmp.lt.s32.totalorder %s9, 1
        %s134 = scalar_select %p133, %s9, 1
        %s135 = smul.addr %s134, 8
        %s136 = smul.addr %s135, 4
        %s137 = scalar_lea.vmem %s0, %s136
      $region24: #{rpn_forward.11} parent=19 // pred_fallthru
        _
      // Predicated region
      $region25: #{rpn_forward.11} parent=19 // pred_check
        %p138 = pneg %p55
      $region26: #{rpn_forward.11} parent=19 // pred_check_branch
        %140 = sbr.rel (%p138) target = $region28
      $region27: #{rpn_forward.11} parent=19 // pred_region
        %p141 = scmp.lt.s32.totalorder %s9, 1
        %s142 = scalar_select %p141, %s9, 1
        %s143 = smul.addr %s142, 28
        %s144 = smul.addr %s143, 4
        %s145 = scalar_lea.vmem %s1, %s144
      $region28: #{rpn_forward.11} parent=19 // pred_fallthru
        _
    $region20: #{rpn_forward.11} parent=5 // pred_fallthru
      _
    %p146 = scmp.le.s32.totalorder 1, %s9
    %p147 = scmp.lt.s32.totalorder %s9, 3
    %p148 = pnand %p146, %p147
    %p149 = pneg %p148
    // Predicated region
    $region29: #{rpn_forward.11} parent=5 // pred_check
      _
    $region30: #{rpn_forward.11} parent=5 // pred_check_branch
      %151 = sbr.rel (%p148) target = $region32
    $region31: #{rpn_forward.11} parent=5 // pred_region
      %s152 = ssub.s32 %s9, 1
      %p153 = scmp.lt.s32.totalorder %s14, 1
      %s154 = scalar_select %p153, %s14, 1
      %s155 = smul.addr %s154, 8
      %s156 = smul.addr %s155, 4
      %s157 = scalar_lea.vmem %s0, %s156
      %p158 = pneg %p35
      %p159 = pneg %p32
      %p160 = scmp.lt.s32.totalorder %s14, 1
      %s161 = scalar_select %p160, %s14, 1
      %s162 = smul.addr %s161, 28
      %s163 = smul.addr %s162, 4
      %s164 = scalar_lea.vmem %s1, %s163
      %p165 = pneg %p61
      %p166 = pneg %p58
      %p167 = pneg %p82
      %p168 = pneg %p79
      %p169 = pneg %p108
      %p170 = pneg %p105
      %p171 = scmp.lt.s32.totalorder %s14, 1
      %s172 = scalar_select %p171, %s14, 1
      %s173 = smul.addr %s172, 8
      %s174 = smul.addr %s173, 4
      %s175 = scalar_lea.vmem %s3, %s174
      %p176 = scmp.lt.s32.totalorder %s14, 1
      %s177 = scalar_select %p176, %s14, 1
      %s178 = smul.addr %s177, 8
      %s179 = smul.addr %s178, 4
      %s180 = scalar_lea.vmem %s0, %s179
      %p181 = scmp.lt.s32.totalorder %s14, 1
      %s182 = scalar_select %p181, %s14, 1
      %s183 = smul.addr %s182, 28
      %s184 = smul.addr %s183, 4
      %s185 = scalar_lea.vmem %s1, %s184
      %p186 = scmp.lt.s32.totalorder %s14, 1
      %s187 = scalar_select %p186, %s14, 1
      %s188 = smul.addr %s187, 8
      %s189 = smul.addr %s188, 4
      %s190 = scalar_lea.vmem %s3, %s189
      %v192 = vld [vmem:[%s180] sm:$0xf]
      %v193 = vld [vmem:[%s180 + $0x4] sm:$0xf]
      %v194 = vld [vmem:[%s180 + $0x8] sm:$0xf]
      %v195 = vld [vmem:[%s180 + $0xc] sm:$0xf]
      %v196 = vld [vmem:[%s180 + $0x10] sm:$0xf]
      %v197 = vld [vmem:[%s180 + $0x14] sm:$0xf]
      %v198 = vld [vmem:[%s180 + $0x18] sm:$0xf]
      %v199 = vld [vmem:[%s180 + $0x1c] sm:$0xf]
      %v200 = vld [vmem:[%s2] sm:$0xf]
      %v201 = vld [vmem:[%s2 + $0x4] sm:$0xf]
      %v202 = vld [vmem:[%s2 + $0x8] sm:$0xf]
      %v203 = vld [vmem:[%s2 + $0xc] sm:$0xf]
      %v212 = vunpack.c.l.b16 %v192
      %v213 = vunpack.c.l.b16 %v193
      %v214 = vunpack.c.l.b16 %v194
      %v215 = vunpack.c.l.b16 %v195
      %v216 = vunpack.c.l.b16 %v196
      %v217 = vunpack.c.l.b16 %v197
      %v218 = vunpack.c.l.b16 %v198
      %v219 = vunpack.c.l.b16 %v199
      %v220 = vpack.c.b16 %v213, %v212
      %v221 = vpack.c.b16 %v215, %v214
      %v222 = vpack.c.b16 %v217, %v216
      %v223 = vpack.c.b16 %v219, %v218
      %v228 = vunpack.c.l.b16 %v200
      %v229 = vunpack.c.l.b16 %v201
      %v230 = vunpack.c.l.b16 %v202
      %v231 = vunpack.c.l.b16 %v203
      %v232 = vpack.c.b16 %v229, %v228
      %v233 = vpack.c.b16 %v231, %v230
      %vm236 = vcmask 261120
      %v238 = vsel %vm236, %v220, 0
      %v241 = vsel %vm236, %v221, 0
      %v244 = vsel %vm236, %v222, 0
      %v247 = vsel %vm236, %v223, 0
      %249 = vmatpush.bf16.msra.mxu0 0
      %250 = vmatpush.bf16.msra.mxu0 0
      %251 = vmatpush.bf16.msra.mxu0 0
      %252 = vmatpush.bf16.msra.mxu0 0
      %253 = vmatpush.bf16.msra.mxu0 0
      %254 = vmatpush.bf16.msra.mxu0 0
      %255 = vmatpush.bf16.msra.mxu0 %v233
      %256 = vmatpush.bf16.msra.mxu0 %v232
      %257 = vmatmul.bf16.gmra.mxu0 %v238
      %v258 = vpop.f32.mrf.mxu0
      %v259 = vadd.f32 0.0, %v258
      %v260 = vpop.f32.mrf.mxu0
      %v261 = vadd.f32 0.0, %v260
      %262 = vmatmul.bf16.gmra.mxu0 %v241
      %v263 = vpop.f32.mrf.mxu0
      %v264 = vadd.f32 0.0, %v263
      %v265 = vpop.f32.mrf.mxu0
      %v266 = vadd.f32 0.0, %v265
      %267 = vmatmul.bf16.gmra.mxu0 %v244
      %v268 = vpop.f32.mrf.mxu0
      %v269 = vadd.f32 0.0, %v268
      %v270 = vpop.f32.mrf.mxu0
      %v271 = vadd.f32 0.0, %v270
      %272 = vmatmul.bf16.gmra.mxu0 %v247
      %v273 = vpop.f32.mrf.mxu0
      %v274 = vadd.f32 0.0, %v273
      %v275 = vpop.f32.mrf.mxu0
      %v276 = vadd.f32 0.0, %v275
      %277 = vdwg.mxu0
      %v278 = vld [vmem:[%s185] sm:$0xf]
      %v279 = vld [vmem:[%s185 + $0x4] sm:$0x7]
      %v280 = vld [vmem:[%s185 + $0x8] sm:$0xf]
      %v281 = vld [vmem:[%s185 + $0xc] sm:$0x7]
      %v282 = vld [vmem:[%s185 + $0x10] sm:$0xf]
      %v283 = vld [vmem:[%s185 + $0x14] sm:$0x7]
      %v284 = vld [vmem:[%s185 + $0x18] sm:$0xf]
      %v285 = vld [vmem:[%s185 + $0x1c] sm:$0x7]
      %v286 = vld [vmem:[%s185 + $0x20] sm:$0xf]
      %v287 = vld [vmem:[%s185 + $0x24] sm:$0x7]
      %v288 = vld [vmem:[%s185 + $0x28] sm:$0xf]
      %v289 = vld [vmem:[%s185 + $0x2c] sm:$0x7]
      %v290 = vld [vmem:[%s185 + $0x30] sm:$0xf]
      %v291 = vld [vmem:[%s185 + $0x34] sm:$0x7]
      %v292 = vld [vmem:[%s185 + $0x38] sm:$0xf]
      %v293 = vld [vmem:[%s185 + $0x3c] sm:$0x7]
      %v294 = vld [vmem:[%s185 + $0x40] sm:$0xf]
      %v295 = vld [vmem:[%s185 + $0x44] sm:$0x7]
      %v296 = vld [vmem:[%s185 + $0x48] sm:$0xf]
      %v297 = vld [vmem:[%s185 + $0x4c] sm:$0x7]
      %v298 = vld [vmem:[%s185 + $0x50] sm:$0xf]
      %v299 = vld [vmem:[%s185 + $0x54] sm:$0x7]
      %v300 = vld [vmem:[%s185 + $0x58] sm:$0xf]
      %v301 = vld [vmem:[%s185 + $0x5c] sm:$0x7]
      %v302 = vld [vmem:[%s185 + $0x60] sm:$0xf]
      %v303 = vld [vmem:[%s185 + $0x64] sm:$0x7]
      %v304 = vld [vmem:[%s185 + $0x68] sm:$0xf]
      %v305 = vld [vmem:[%s185 + $0x6c] sm:$0x7]
      %v306 = vunpack.c.l.bf16 %v278
      %v307 = vunpack.c.l.bf16 %v279
      %v308 = vunpack.c.l.bf16 %v280
      %v309 = vunpack.c.l.bf16 %v281
      %v310 = vunpack.c.l.bf16 %v282
      %v311 = vunpack.c.l.bf16 %v283
      %v312 = vunpack.c.l.bf16 %v284
      %v313 = vunpack.c.l.bf16 %v285
      %v314 = vunpack.c.l.bf16 %v286
      %v315 = vunpack.c.l.bf16 %v287
      %v316 = vunpack.c.l.bf16 %v288
      %v317 = vunpack.c.l.bf16 %v289
      %v318 = vunpack.c.l.bf16 %v290
      %v319 = vunpack.c.l.bf16 %v291
      %v320 = vunpack.c.l.bf16 %v292
      %v321 = vunpack.c.l.bf16 %v293
      %v322 = vunpack.c.l.bf16 %v294
      %v323 = vunpack.c.l.bf16 %v295
      %v324 = vunpack.c.l.bf16 %v296
      %v325 = vunpack.c.l.bf16 %v297
      %v326 = vunpack.c.l.bf16 %v298
      %v327 = vunpack.c.l.bf16 %v299
      %v328 = vunpack.c.l.bf16 %v300
      %v329 = vunpack.c.l.bf16 %v301
      %v330 = vunpack.c.l.bf16 %v302
      %v331 = vunpack.c.l.bf16 %v303
      %v332 = vunpack.c.l.bf16 %v304
      %v333 = vunpack.c.l.bf16 %v305
      %v334 = vmul.f32 %v312, 3.0
      %v335 = vmul.f32 %v313, 3.0
      %v336 = vmul.f32 %v314, 3.0
      %v337 = vmul.f32 %v315, 3.0
      %v338 = vmul.f32 %v316, 3.0
      %v339 = vmul.f32 %v317, 3.0
      %v340 = vmul.f32 %v318, 3.0
      %v341 = vmul.f32 %v319, 3.0
      %v342 = vmul.f32 %v320, 3.0
      %v343 = vmul.f32 %v321, 3.0
      %v344 = vmul.f32 %v322, 3.0
      %v345 = vmul.f32 %v323, 3.0
      %v346 = vmul.f32 %v324, 3.0
      %v347 = vmul.f32 %v325, 3.0
      %v348 = vmul.f32 %v326, 3.0
      %v349 = vmul.f32 %v327, 3.0
      %v350 = vadd.f32 %v310, %v314
      %v351 = vadd.f32 %v311, %v315
      %v352 = vadd.f32 %v312, %v316
      %v353 = vadd.f32 %v313, %v317
      %v354 = vadd.f32 %v314, %v318
      %v355 = vadd.f32 %v315, %v319
      %v356 = vadd.f32 %v316, %v320
      %v357 = vadd.f32 %v317, %v321
      %v358 = vadd.f32 %v318, %v322
      %v359 = vadd.f32 %v319, %v323
      %v360 = vadd.f32 %v320, %v324
      %v361 = vadd.f32 %v321, %v325
      %v362 = vadd.f32 %v322, %v326
      %v363 = vadd.f32 %v323, %v327
      %v364 = vadd.f32 %v324, %v328
      %v365 = vadd.f32 %v325, %v329
      %vm382 = vcmask 1040384
      %v383 = vrot.slane %v350, 7
      %v384 = vrot.slane %v351, 7
      %v385 = vsel %vm382, %v383, %v384
      %v386 = vrot.slane %v352, 7
      %v387 = vrot.slane %v353, 7
      %v388 = vsel %vm382, %v386, %v387
      %v389 = vrot.slane %v354, 7
      %v390 = vrot.slane %v355, 7
      %v391 = vsel %vm382, %v389, %v390
      %v392 = vrot.slane %v356, 7
      %v393 = vrot.slane %v357, 7
      %v394 = vsel %vm382, %v392, %v393
      %v395 = vrot.slane %v358, 7
      %v396 = vrot.slane %v359, 7
      %v397 = vsel %vm382, %v395, %v396
      %v398 = vrot.slane %v360, 7
      %v399 = vrot.slane %v361, 7
      %v400 = vsel %vm382, %v398, %v399
      %v401 = vrot.slane %v362, 7
      %v402 = vrot.slane %v363, 7
      %v403 = vsel %vm382, %v401, %v402
      %v404 = vrot.slane %v364, 7
      %v405 = vrot.slane %v365, 7
      %v406 = vsel %vm382, %v404, %v405
      %v423 = vadd.f32 %v334, %v383
      %v424 = vadd.f32 %v335, %v385
      %v425 = vadd.f32 %v336, %v386
      %v426 = vadd.f32 %v337, %v388
      %v427 = vadd.f32 %v338, %v389
      %v428 = vadd.f32 %v339, %v391
      %v429 = vadd.f32 %v340, %v392
      %v430 = vadd.f32 %v341, %v394
      %v431 = vadd.f32 %v342, %v395
      %v432 = vadd.f32 %v343, %v397
      %v433 = vadd.f32 %v344, %v398
      %v434 = vadd.f32 %v345, %v400
      %v435 = vadd.f32 %v346, %v401
      %v436 = vadd.f32 %v347, %v403
      %v437 = vadd.f32 %v348, %v404
      %v438 = vadd.f32 %v349, %v406
      %vm439 = vcmask 1046528
      %v440 = vrot.slane %v350, 1
      %v441 = vrot.slane %v351, 1
      %v442 = vsel %vm439, %v440, %v441
      %v443 = vrot.slane %v352, 1
      %v444 = vrot.slane %v353, 1
      %v445 = vsel %vm439, %v443, %v444
      %v446 = vrot.slane %v354, 1
      %v447 = vrot.slane %v355, 1
      %v448 = vsel %vm439, %v446, %v447
      %v449 = vrot.slane %v356, 1
      %v450 = vrot.slane %v357, 1
      %v451 = vsel %vm439, %v449, %v450
      %v452 = vrot.slane %v358, 1
      %v453 = vrot.slane %v359, 1
      %v454 = vsel %vm439, %v452, %v453
      %v455 = vrot.slane %v360, 1
      %v456 = vrot.slane %v361, 1
      %v457 = vsel %vm439, %v455, %v456
      %v458 = vrot.slane %v362, 1
      %v459 = vrot.slane %v363, 1
      %v460 = vsel %vm439, %v458, %v459
      %v461 = vrot.slane %v364, 1
      %v462 = vrot.slane %v365, 1
      %v463 = vsel %vm439, %v461, %v462
      %v480 = vadd.f32 %v423, %v442
      %v481 = vadd.f32 %v424, %v441
      %v482 = vadd.f32 %v425, %v445
      %v483 = vadd.f32 %v426, %v444
      %v484 = vadd.f32 %v427, %v448
      %v485 = vadd.f32 %v428, %v447
      %v486 = vadd.f32 %v429, %v451
      %v487 = vadd.f32 %v430, %v450
      %v488 = vadd.f32 %v431, %v454
      %v489 = vadd.f32 %v432, %v453
      %v490 = vadd.f32 %v433, %v457
      %v491 = vadd.f32 %v434, %v456
      %v492 = vadd.f32 %v435, %v460
      %v493 = vadd.f32 %v436, %v459
      %v494 = vadd.f32 %v437, %v463
      %v495 = vadd.f32 %v438, %v462
      %v496 = vadd.f32 %v308, %v316
      %v497 = vadd.f32 %v309, %v317
      %v498 = vadd.f32 %v310, %v318
      %v499 = vadd.f32 %v311, %v319
      %v500 = vadd.f32 %v312, %v320
      %v501 = vadd.f32 %v313, %v321
      %v502 = vadd.f32 %v314, %v322
      %v503 = vadd.f32 %v315, %v323
      %v504 = vadd.f32 %v316, %v324
      %v505 = vadd.f32 %v317, %v325
      %v506 = vadd.f32 %v318, %v326
      %v507 = vadd.f32 %v319, %v327
      %v508 = vadd.f32 %v320, %v328
      %v509 = vadd.f32 %v321, %v329
      %v510 = vadd.f32 %v322, %v330
      %v511 = vadd.f32 %v323, %v331
      %vm528 = vcmask 1041408
      %v529 = vrot.slane %v496, 6
      %v530 = vrot.slane %v497, 6
      %v531 = vsel %vm528, %v529, %v530
      %v532 = vrot.slane %v498, 6
      %v533 = vrot.slane %v499, 6
      %v534 = vsel %vm528, %v532, %v533
      %v535 = vrot.slane %v500, 6
      %v536 = vrot.slane %v501, 6
      %v537 = vsel %vm528, %v535, %v536
      %v538 = vrot.slane %v502, 6
      %v539 = vrot.slane %v503, 6
      %v540 = vsel %vm528, %v538, %v539
      %v541 = vrot.slane %v504, 6
      %v542 = vrot.slane %v505, 6
      %v543 = vsel %vm528, %v541, %v542
      %v544 = vrot.slane %v506, 6
      %v545 = vrot.slane %v507, 6
      %v546 = vsel %vm528, %v544, %v545
      %v547 = vrot.slane %v508, 6
      %v548 = vrot.slane %v509, 6
      %v549 = vsel %vm528, %v547, %v548
      %v550 = vrot.slane %v510, 6
      %v551 = vrot.slane %v511, 6
      %v552 = vsel %vm528, %v550, %v551
      %v569 = vadd.f32 %v480, %v529
      %v570 = vadd.f32 %v481, %v531
      %v571 = vadd.f32 %v482, %v532
      %v572 = vadd.f32 %v483, %v534
      %v573 = vadd.f32 %v484, %v535
      %v574 = vadd.f32 %v485, %v537
      %v575 = vadd.f32 %v486, %v538
      %v576 = vadd.f32 %v487, %v540
      %v577 = vadd.f32 %v488, %v541
      %v578 = vadd.f32 %v489, %v543
      %v579 = vadd.f32 %v490, %v544
      %v580 = vadd.f32 %v491, %v546
      %v581 = vadd.f32 %v492, %v547
      %v582 = vadd.f32 %v493, %v549
      %v583 = vadd.f32 %v494, %v550
      %v584 = vadd.f32 %v495, %v552
      %vm585 = vcmask 1045504
      %v586 = vrot.slane %v496, 2
      %v587 = vrot.slane %v497, 2
      %v588 = vsel %vm585, %v586, %v587
      %v589 = vrot.slane %v498, 2
      %v590 = vrot.slane %v499, 2
      %v591 = vsel %vm585, %v589, %v590
      %v592 = vrot.slane %v500, 2
      %v593 = vrot.slane %v501, 2
      %v594 = vsel %vm585, %v592, %v593
      %v595 = vrot.slane %v502, 2
      %v596 = vrot.slane %v503, 2
      %v597 = vsel %vm585, %v595, %v596
      %v598 = vrot.slane %v504, 2
      %v599 = vrot.slane %v505, 2
      %v600 = vsel %vm585, %v598, %v599
      %v601 = vrot.slane %v506, 2
      %v602 = vrot.slane %v507, 2
      %v603 = vsel %vm585, %v601, %v602
      %v604 = vrot.slane %v508, 2
      %v605 = vrot.slane %v509, 2
      %v606 = vsel %vm585, %v604, %v605
      %v607 = vrot.slane %v510, 2
      %v608 = vrot.slane %v511, 2
      %v609 = vsel %vm585, %v607, %v608
      %v626 = vadd.f32 %v569, %v588
      %v627 = vadd.f32 %v570, %v587
      %v628 = vadd.f32 %v571, %v591
      %v629 = vadd.f32 %v572, %v590
      %v630 = vadd.f32 %v573, %v594
      %v631 = vadd.f32 %v574, %v593
      %v632 = vadd.f32 %v575, %v597
      %v633 = vadd.f32 %v576, %v596
      %v634 = vadd.f32 %v577, %v600
      %v635 = vadd.f32 %v578, %v599
      %v636 = vadd.f32 %v579, %v603
      %v637 = vadd.f32 %v580, %v602
      %v638 = vadd.f32 %v581, %v606
      %v639 = vadd.f32 %v582, %v605
      %v640 = vadd.f32 %v583, %v609
      %v641 = vadd.f32 %v584, %v608
      %v642 = vadd.f32 %v306, %v318
      %v643 = vadd.f32 %v307, %v319
      %v644 = vadd.f32 %v308, %v320
      %v645 = vadd.f32 %v309, %v321
      %v646 = vadd.f32 %v310, %v322
      %v647 = vadd.f32 %v311, %v323
      %v648 = vadd.f32 %v312, %v324
      %v649 = vadd.f32 %v313, %v325
      %v650 = vadd.f32 %v314, %v326
      %v651 = vadd.f32 %v315, %v327
      %v652 = vadd.f32 %v316, %v328
      %v653 = vadd.f32 %v317, %v329
      %v654 = vadd.f32 %v318, %v330
      %v655 = vadd.f32 %v319, %v331
      %v656 = vadd.f32 %v320, %v332
      %v657 = vadd.f32 %v321, %v333
      %v666 = vrot.slane %v642, 5
      %v667 = vrot.slane %v644, 5
      %v668 = vrot.slane %v646, 5
      %v669 = vrot.slane %v648, 5
      %v670 = vrot.slane %v650, 5
      %v671 = vrot.slane %v652, 5
      %v672 = vrot.slane %v654, 5
      %v673 = vrot.slane %v656, 5
      %v682 = vadd.f32 %v626, %v666
      %v683 = vadd.f32 %v627, %v666
      %v684 = vadd.f32 %v628, %v667
      %v685 = vadd.f32 %v629, %v667
      %v686 = vadd.f32 %v630, %v668
      %v687 = vadd.f32 %v631, %v668
      %v688 = vadd.f32 %v632, %v669
      %v689 = vadd.f32 %v633, %v669
      %v690 = vadd.f32 %v634, %v670
      %v691 = vadd.f32 %v635, %v670
      %v692 = vadd.f32 %v636, %v671
      %v693 = vadd.f32 %v637, %v671
      %v694 = vadd.f32 %v638, %v672
      %v695 = vadd.f32 %v639, %v672
      %v696 = vadd.f32 %v640, %v673
      %v697 = vadd.f32 %v641, %v673
      %vm706 = vcmask 1044480
      %v707 = vrot.slane %v642, 3
      %v708 = vrot.slane %v643, 3
      %v709 = vsel %vm706, %v707, %v708
      %v710 = vrot.slane %v644, 3
      %v711 = vrot.slane %v645, 3
      %v712 = vsel %vm706, %v710, %v711
      %v713 = vrot.slane %v646, 3
      %v714 = vrot.slane %v647, 3
      %v715 = vsel %vm706, %v713, %v714
      %v716 = vrot.slane %v648, 3
      %v717 = vrot.slane %v649, 3
      %v718 = vsel %vm706, %v716, %v717
      %v719 = vrot.slane %v650, 3
      %v720 = vrot.slane %v651, 3
      %v721 = vsel %vm706, %v719, %v720
      %v722 = vrot.slane %v652, 3
      %v723 = vrot.slane %v653, 3
      %v724 = vsel %vm706, %v722, %v723
      %v725 = vrot.slane %v654, 3
      %v726 = vrot.slane %v655, 3
      %v727 = vsel %vm706, %v725, %v726
      %v728 = vrot.slane %v656, 3
      %v729 = vrot.slane %v657, 3
      %v730 = vsel %vm706, %v728, %v729
      %v747 = vadd.f32 %v682, %v709
      %v748 = vadd.f32 %v683, %v708
      %v749 = vadd.f32 %v684, %v712
      %v750 = vadd.f32 %v685, %v711
      %v751 = vadd.f32 %v686, %v715
      %v752 = vadd.f32 %v687, %v714
      %v753 = vadd.f32 %v688, %v718
      %v754 = vadd.f32 %v689, %v717
      %v755 = vadd.f32 %v690, %v721
      %v756 = vadd.f32 %v691, %v720
      %v757 = vadd.f32 %v692, %v724
      %v758 = vadd.f32 %v693, %v723
      %v759 = vadd.f32 %v694, %v727
      %v760 = vadd.f32 %v695, %v726
      %v761 = vadd.f32 %v696, %v730
      %v762 = vadd.f32 %v697, %v729
      %v779 = vrot.slane %v747, 3
      %v780 = vrot.slane %v748, 3
      %v781 = vsel %vm706, %v779, %v780
      %v782 = vrot.slane %v749, 3
      %v783 = vrot.slane %v750, 3
      %v784 = vsel %vm706, %v782, %v783
      %v785 = vrot.slane %v751, 3
      %v786 = vrot.slane %v752, 3
      %v787 = vsel %vm706, %v785, %v786
      %v788 = vrot.slane %v753, 3
      %v789 = vrot.slane %v754, 3
      %v790 = vsel %vm706, %v788, %v789
      %v791 = vrot.slane %v755, 3
      %v792 = vrot.slane %v756, 3
      %v793 = vsel %vm706, %v791, %v792
      %v794 = vrot.slane %v757, 3
      %v795 = vrot.slane %v758, 3
      %v796 = vsel %vm706, %v794, %v795
      %v797 = vrot.slane %v759, 3
      %v798 = vrot.slane %v760, 3
      %v799 = vsel %vm706, %v797, %v798
      %v800 = vrot.slane %v761, 3
      %v801 = vrot.slane %v762, 3
      %v802 = vsel %vm706, %v800, %v801
      %v811 = vmul.f32 %v259, %v781
      %v812 = vmul.f32 %v261, %v784
      %v813 = vmul.f32 %v264, %v787
      %v814 = vmul.f32 %v266, %v790
      %v815 = vmul.f32 %v269, %v793
      %v816 = vmul.f32 %v271, %v796
      %v817 = vmul.f32 %v274, %v799
      %v818 = vmul.f32 %v276, %v802
      %v819 = vmul.f32 %v811, 0.037037037
      %v820 = vmul.f32 %v812, 0.037037037
      %v821 = vmul.f32 %v813, 0.037037037
      %v822 = vmul.f32 %v814, 0.037037037
      %v823 = vmul.f32 %v815, 0.037037037
      %v824 = vmul.f32 %v816, 0.037037037
      %v825 = vmul.f32 %v817, 0.037037037
      %v826 = vmul.f32 %v818, 0.037037037
      %v827 = vpack.c.bf16 %v819, %v819
      %v828 = vpack.c.bf16 %v820, %v820
      %v829 = vpack.c.bf16 %v821, %v821
      %v830 = vpack.c.bf16 %v822, %v822
      %v831 = vpack.c.bf16 %v823, %v823
      %v832 = vpack.c.bf16 %v824, %v824
      %v833 = vpack.c.bf16 %v825, %v825
      %v834 = vpack.c.bf16 %v826, %v826
      %vm835 = vcmask 257024
      %836 = vst.msk [vmem:[%s190] sm:$0xf] %vm835, %v827
      %837 = vst.msk [vmem:[%s190 + $0x4] sm:$0xf] %vm835, %v828
      %838 = vst.msk [vmem:[%s190 + $0x8] sm:$0xf] %vm835, %v829
      %839 = vst.msk [vmem:[%s190 + $0xc] sm:$0xf] %vm835, %v830
      %840 = vst.msk [vmem:[%s190 + $0x10] sm:$0xf] %vm835, %v831
      %841 = vst.msk [vmem:[%s190 + $0x14] sm:$0xf] %vm835, %v832
      %842 = vst.msk [vmem:[%s190 + $0x18] sm:$0xf] %vm835, %v833
      %843 = vst.msk [vmem:[%s190 + $0x1c] sm:$0xf] %vm835, %v834
      %p844 = scmp.lt.s32.totalorder %s14, 1
      %s845 = scalar_select %p844, %s14, 1
      %s846 = smul.addr %s845, 8
      %s847 = smul.addr %s846, 4
      %s848 = scalar_lea.vmem %s3, %s847
      // Predicated region
      $region33: #{rpn_forward.11} parent=31 // pred_check
        %p849 = pneg %p105
      $region34: #{rpn_forward.11} parent=31 // pred_check_branch
        %851 = sbr.rel (%p849) target = $region36
      $region35: #{rpn_forward.11} parent=31 // pred_region
        _
      $region36: #{rpn_forward.11} parent=31 // pred_fallthru
        _
    $region32: #{rpn_forward.11} parent=5 // pred_fallthru
      _
    %p852 = scmp.le.s32.totalorder 2, %s9
    // Predicated region
    $region37: #{rpn_forward.11} parent=5 // pred_check
      %p853 = pneg %p852
    $region38: #{rpn_forward.11} parent=5 // pred_check_branch
      %855 = sbr.rel (%p853) target = $region40
    $region39: #{rpn_forward.11} parent=5 // pred_region
      %s856 = ssub.s32 %s9, 2
      // Predicated region
      $region41: #{rpn_forward.11} parent=39 // pred_check
        %p857 = pneg %p111
      $region42: #{rpn_forward.11} parent=39 // pred_check_branch
        %859 = sbr.rel (%p857) target = $region44
      $region43: #{rpn_forward.11} parent=39 // pred_region
        %p860 = scmp.lt.s32.totalorder %s15, 1
        %s861 = scalar_select %p860, %s15, 1
        %s862 = smul.addr %s861, 8
        %s863 = smul.addr %s862, 4
        %s864 = scalar_lea.vmem %s3, %s863
      $region44: #{rpn_forward.11} parent=39 // pred_fallthru
        _
    $region40: #{rpn_forward.11} parent=5 // pred_fallthru
      _
  $region6: #{rpn_forward.11} parent=0 // loop_footer
    %s13 = sadd.s32 1, %s9
  $region7: #{rpn_forward.11} parent=0 // loop_footer_branch
    %8 = sbr.rel target = $region3
  $region8: #{rpn_forward.11} parent=0 // loop_exit
    _

// kernel: rpn_forward.14
$region0: #{rpn_forward.14}
  #allocation0 [shape = 'u32[]', space=smem, size = 0x4, offset = 0x4, fixed_abs, tag = 'smem constant byte address 0x4 - core index']
  #allocation1 [shape = 'u32[72,128]{1,0:T(1,128)}', space=vmem, size = 0x9000, scoped, tag = 'internal scratch']
  %s0 = inlined_call_operand.vmem [shape: bf16[32,64], index: 0, kind: input, shape index: {}]
  %s1 = inlined_call_operand.vmem [shape: bf16[64,128], index: 1, kind: input, shape index: {}]
  %s2 = inlined_call_operand.vmem [shape: f32[1,128], index: 2, kind: input, shape index: {}]
  %s3 = inlined_call_operand.vmem [shape: bf16[32,128], index: 3, kind: output, shape index: {}]
  %s4 = sld [smem:[#allocation0]]
  $region45: #{rpn_forward.14} parent=0
    _
  %s6 = ssub.s32 1, %s4
  %s7 = scalar_select 0, %s6, %s4
  loop: start=0, step=1, limit=4
  $region2: #{rpn_forward.14} parent=0 // loop_pre_header
    _
  $region3: #{rpn_forward.14} parent=0 // loop_header
    %s9 = sphi 0, %s13
    %p10 = scmp.ge.s32.totalorder %s9, 4
    %s19 = sphi 0, %s21
    %s22 = sphi 0, %s19
    %s23 = sphi 0, %s22
    %s39 = sphi 0, %s23
    %s43 = sphi 0, %s43
    %s45 = sphi 0, %s43
    %s46 = sphi 0, %s45
    %s60 = sphi 0, %s46
    %s64 = sphi 0, %s64
    %s66 = sphi 0, %s64
    %s67 = sphi 0, %s66
    %s81 = sphi 0, %s67
    %s87 = sphi 0, %s89
    %s90 = sphi 0, %s87
    %s91 = sphi 0, %s90
    %s107 = sphi 0, %s91
  $region4: #{rpn_forward.14} parent=0 // loop_header_branch
    %12 = sbr.rel (%p10) target = $region8
  $region5: #{rpn_forward.14} parent=0 // loop_body
    %s14 = ssub.s32 %s9, 1
    %s15 = ssub.s32 %s9, 2
    %s16 = sadd.s32 %s9, 1
    %s17 = ssub.s32 %s9, %s16
    %p18 = scmp.eq.s32.totalorder %s17, 0
    %s20 = sadd.s32 %s19, 1
    %s21 = scalar_select %p18, %s19, %s20
    %p24 = pneg %p18
    %p25 = scmp.eq.s32.totalorder %s9, 1
    %p26 = por %p24, %p25
    %p27 = scmp.ne.s32.totalorder %s19, %s22
    %p28 = scmp.eq.s32.totalorder %s9, 0
    %p29 = por %p27, %p28
    %p30 = scmp.ne.s32.totalorder %s19, %s22
    %p31 = scmp.eq.s32.totalorder %s14, 1
    %p32 = por %p30, %p31
    %p33 = scmp.ne.s32.totalorder %s22, %s23
    %p34 = scmp.eq.s32.totalorder %s14, 0
    %p35 = por %p33, %p34
    %p36 = scmp.ne.s32.totalorder %s22, %s23
    %p37 = scmp.eq.s32.totalorder %s15, 1
    %p38 = por %p36, %p37
    %p40 = scmp.ne.s32.totalorder %s23, %s39
    %p41 = scmp.eq.s32.totalorder %s15, 0
    %p42 = por %p40, %p41
    %s44 = sadd.s32 %s43, 1
    %p47 = scmp.eq.s32.totalorder %s9, 1
    %p48 = scmp.ne.s32.totalorder %s43, %s45
    %p49 = scmp.eq.s32.totalorder %s9, 0
    %p50 = por %p48, %p49
    %p51 = scmp.ne.s32.totalorder %s43, %s45
    %p52 = scmp.eq.s32.totalorder %s14, 1
    %p53 = por %p51, %p52
    %p54 = scmp.ne.s32.totalorder %s45, %s46
    %p55 = scmp.eq.s32.totalorder %s14, 0
    %p56 = por %p54, %p55
    %p57 = scmp.ne.s32.totalorder %s45, %s46
    %p58 = scmp.eq.s32.totalorder %s15, 1
    %p59 = por %p57, %p58
    %p61 = scmp.ne.s32.totalorder %s46, %s60
    %p62 = scmp.eq.s32.totalorder %s15, 0
    %p63 = por %p61, %p62
    %s65 = sadd.s32 %s64, 1
    %p68 = scmp.eq.s32.totalorder %s9, 1
    %p69 = scmp.ne.s32.totalorder %s64, %s66
    %p70 = scmp.eq.s32.totalorder %s9, 0
    %p71 = por %p69, %p70
    %p72 = scmp.ne.s32.totalorder %s64, %s66
    %p73 = scmp.eq.s32.totalorder %s14, 1
    %p74 = por %p72, %p73
    %p75 = scmp.ne.s32.totalorder %s66, %s67
    %p76 = scmp.eq.s32.totalorder %s14, 0
    %p77 = por %p75, %p76
    %p78 = scmp.ne.s32.totalorder %s66, %s67
    %p79 = scmp.eq.s32.totalorder %s15, 1
    %p80 = por %p78, %p79
    %p82 = scmp.ne.s32.totalorder %s67, %s81
    %p83 = scmp.eq.s32.totalorder %s15, 0
    %p84 = por %p82, %p83
    %s85 = ssub.s32 %s9, %s16
    %p86 = scmp.eq.s32.totalorder %s85, 0
    %s88 = sadd.s32 %s87, 1
    %s89 = scalar_select %p86, %s87, %s88
    %p92 = pneg %p86
    %p93 = scmp.eq.s32.totalorder %s9, 1
    %p94 = por %p92, %p93
    %p95 = scmp.ne.s32.totalorder %s87, %s90
    %p96 = scmp.eq.s32.totalorder %s9, 0
    %p97 = por %p95, %p96
    %p98 = scmp.ne.s32.totalorder %s87, %s90
    %p99 = scmp.eq.s32.totalorder %s14, 1
    %p100 = por %p98, %p99
    %p101 = scmp.ne.s32.totalorder %s90, %s91
    %p102 = scmp.eq.s32.totalorder %s14, 0
    %p103 = por %p101, %p102
    %p104 = scmp.ne.s32.totalorder %s90, %s91
    %p105 = scmp.eq.s32.totalorder %s15, 1
    %p106 = por %p104, %p105
    %p108 = scmp.ne.s32.totalorder %s91, %s107
    %p109 = scmp.eq.s32.totalorder %s15, 0
    %p110 = por %p108, %p109
    %p111 = scmp.le.s32.totalorder 1, %s9
    %p112 = scmp.lt.s32.totalorder %s9, 3
    %p113 = pnand %p111, %p112
    %p114 = pneg %p113
    // Predicated region
    $region9: #{rpn_forward.14} parent=5 // pred_check
      _
    $region10: #{rpn_forward.14} parent=5 // pred_check_branch
      %116 = sbr.rel (%p113) target = $region12
    $region11: #{rpn_forward.14} parent=5 // pred_region
      %s117 = ssub.s32 %s9, 1
      // Predicated region
      $region13: #{rpn_forward.14} parent=11 // pred_check
        %p118 = pneg %p56
      $region14: #{rpn_forward.14} parent=11 // pred_check_branch
        %120 = sbr.rel (%p118) target = $region16
      $region15: #{rpn_forward.14} parent=11 // pred_region
        _
      $region16: #{rpn_forward.14} parent=11 // pred_fallthru
        _
      // Predicated region
      $region17: #{rpn_forward.14} parent=11 // pred_check
        %p121 = pneg %p77
      $region18: #{rpn_forward.14} parent=11 // pred_check_branch
        %123 = sbr.rel (%p121) target = $region20
      $region19: #{rpn_forward.14} parent=11 // pred_region
        _
      $region20: #{rpn_forward.14} parent=11 // pred_fallthru
        _
    $region12: #{rpn_forward.14} parent=5 // pred_fallthru
      _
    %p124 = scmp.lt.s32.totalorder %s9, 2
    // Predicated region
    $region21: #{rpn_forward.14} parent=5 // pred_check
      %p125 = pneg %p124
    $region22: #{rpn_forward.14} parent=5 // pred_check_branch
      %127 = sbr.rel (%p125) target = $region24
    $region23: #{rpn_forward.14} parent=5 // pred_region
      // Predicated region
      $region25: #{rpn_forward.14} parent=23 // pred_check
        %p128 = pneg %p29
      $region26: #{rpn_forward.14} parent=23 // pred_check_branch
        %130 = sbr.rel (%p128) target = $region28
      $region27: #{rpn_forward.14} parent=23 // pred_region
        %s131 = smul.u32 2, %s9
        %p132 = scmp.lt.s32.totalorder %s131, 3
        %s133 = scalar_select %p132, %s131, 3
        %s134 = smul.addr %s133, 4
        %s135 = scalar_lea.vmem %s0, %s134
        %s136 = smul.u32 2, %s9
      $region28: #{rpn_forward.14} parent=23 // pred_fallthru
        _
    $region24: #{rpn_forward.14} parent=5 // pred_fallthru
      _
    %p137 = scmp.le.s32.totalorder 1, %s9
    %p138 = scmp.lt.s32.totalorder %s9, 3
    %p139 = pnand %p137, %p138
    %p140 = pneg %p139
    // Predicated region
    $region29: #{rpn_forward.14} parent=5 // pred_check
      _
    $region30: #{rpn_forward.14} parent=5 // pred_check_branch
      %142 = sbr.rel (%p139) target = $region32
    $region31: #{rpn_forward.14} parent=5 // pred_region
      %s143 = ssub.s32 %s9, 1
      %s144 = smul.u32 2, %s14
      %p145 = scmp.lt.s32.totalorder %s144, 3
      %s146 = scalar_select %p145, %s144, 3
      %s147 = smul.addr %s146, 4
      %s148 = scalar_lea.vmem %s0, %s147
      %p149 = pneg %p35
      %p150 = pneg %p32
      %p151 = pneg %p56
      %p152 = pneg %p53
      %p153 = pneg %p77
      %p154 = pneg %p74
      %p155 = pneg %p103
      %p156 = pneg %p100
      %s157 = smul.u32 2, %s14
      %p158 = scmp.lt.s32.totalorder %s157, 3
      %s159 = scalar_select %p158, %s157, 3
      %s160 = smul.addr %s159, 4
      %s161 = scalar_lea.vmem %s3, %s160
      %s162 = smul.u32 2, %s14
      %p163 = scmp.lt.s32.totalorder %s162, 3
      %s164 = scalar_select %p163, %s162, 3
      %s165 = smul.addr %s164, 4
      %s166 = scalar_lea.vmem %s0, %s165
      %s167 = smul.u32 2, %s14
      %s168 = smul.u32 2, %s14
      %p169 = scmp.lt.s32.totalorder %s168, 3
      %s170 = scalar_select %p169, %s168, 3
      %s171 = smul.addr %s170, 4
      %s172 = scalar_lea.vmem %s3, %s171
      %s173 = smul.u32 2, %s14
      %v175 = vld [vmem:[%s166] sm:$0xf]
      %v176 = vld [vmem:[%s166 + $0x4] sm:$0xf]
      %v177 = vld [vmem:[%s1] sm:$0xf]
      %v178 = vld [vmem:[%s1 + $0x4] sm:$0xf]
      %v179 = vld [vmem:[%s1 + $0x8] sm:$0xf]
      %v180 = vld [vmem:[%s1 + $0xc] sm:$0xf]
      %v181 = vld [vmem:[%s1 + $0x10] sm:$0xf]
      %v182 = vld [vmem:[%s1 + $0x14] sm:$0xf]
      %v183 = vld [vmem:[%s1 + $0x18] sm:$0xf]
      %v184 = vld [vmem:[%s1 + $0x1c] sm:$0xf]
      %v185 = vld [vmem:[%s2] sm:$0x1]
      %v187 = vperm.slane %v185, 0
      %v191 = vunpack.c.l.b16 %v175
      %v192 = vunpack.c.l.b16 %v176
      %v193 = vpack.c.b16 %v192, %v191
      %v202 = vunpack.c.l.b16 %v177
      %v203 = vunpack.c.l.b16 %v178
      %v204 = vunpack.c.l.b16 %v179
      %v205 = vunpack.c.l.b16 %v180
      %v206 = vunpack.c.l.b16 %v181
      %v207 = vunpack.c.l.b16 %v182
      %v208 = vunpack.c.l.b16 %v183
      %v209 = vunpack.c.l.b16 %v184
      %v210 = vpack.c.b16 %v203, %v202
      %v211 = vpack.c.b16 %v205, %v204
      %v212 = vpack.c.b16 %v207, %v206
      %v213 = vpack.c.b16 %v209, %v208
      %vm218 = vcmask 523264
      %v220 = vsel %vm218, %v193, 0
      %222 = vmatpush.bf16.msra.mxu0 0
      %223 = vmatpush.bf16.msra.mxu0 0
      %224 = vmatpush.bf16.msra.mxu0 0
      %225 = vmatpush.bf16.msra.mxu0 0
      %226 = vmatpush.bf16.msra.mxu0 %v213
      %227 = vmatpush.bf16.msra.mxu0 %v212
      %228 = vmatpush.bf16.msra.mxu0 %v211
      %229 = vmatpush.bf16.msra.mxu0 %v210
      %230 = vmatmul.bf16.gmra.mxu0 %v220
      %v231 = vpop.f32.mrf.mxu0
      %v232 = vadd.f32 %v187, %v231
      %v233 = vpop.f32.mrf.mxu0
      %v234 = vadd.f32 %v187, %v233
      %235 = vdwg.mxu0
      %v236 = vmax.f32 %v232, 0.0
      %v237 = vmax.f32 %v234, 0.0
      %v238 = vpack.c.bf16 %v236, %v236
      %v239 = vpack.c.bf16 %v237, %v237
      %240 = vst [vmem:[%s172] sm:$0xf] %v238
      %241 = vst [vmem:[%s172 + $0x4] sm:$0xf] %v239
      %s242 = smul.u32 2, %s14
      %p243 = scmp.lt.s32.totalorder %s242, 3
      %s244 = scalar_select %p243, %s242, 3
      %s245 = smul.addr %s244, 4
      %s246 = scalar_lea.vmem %s3, %s245
      // Predicated region
      $region33: #{rpn_forward.14} parent=31 // pred_check
        %p247 = pneg %p100
      $region34: #{rpn_forward.14} parent=31 // pred_check_branch
        %249 = sbr.rel (%p247) target = $region36
      $region35: #{rpn_forward.14} parent=31 // pred_region
        %s250 = smul.u32 2, %s14
      $region36: #{rpn_forward.14} parent=31 // pred_fallthru
        _
    $region32: #{rpn_forward.14} parent=5 // pred_fallthru
      _
    %p251 = scmp.le.s32.totalorder 2, %s9
    // Predicated region
    $region37: #{rpn_forward.14} parent=5 // pred_check
      %p252 = pneg %p251
    $region38: #{rpn_forward.14} parent=5 // pred_check_branch
      %254 = sbr.rel (%p252) target = $region40
    $region39: #{rpn_forward.14} parent=5 // pred_region
      %s255 = ssub.s32 %s9, 2
      // Predicated region
      $region41: #{rpn_forward.14} parent=39 // pred_check
        %p256 = pneg %p106
      $region42: #{rpn_forward.14} parent=39 // pred_check_branch
        %258 = sbr.rel (%p256) target = $region44
      $region43: #{rpn_forward.14} parent=39 // pred_region
        %s259 = smul.u32 2, %s15
        %p260 = scmp.lt.s32.totalorder %s259, 3
        %s261 = scalar_select %p260, %s259, 3
        %s262 = smul.addr %s261, 4
        %s263 = scalar_lea.vmem %s3, %s262
      $region44: #{rpn_forward.14} parent=39 // pred_fallthru
        _
    $region40: #{rpn_forward.14} parent=5 // pred_fallthru
      _
  $region6: #{rpn_forward.14} parent=0 // loop_footer
    %s13 = sadd.s32 1, %s9
  $region7: #{rpn_forward.14} parent=0 // loop_footer_branch
    %8 = sbr.rel target = $region3
  $region8: #{rpn_forward.14} parent=0 // loop_exit
    _

// kernel: rpn_forward.15
$region0: #{rpn_forward.15}
  #allocation0 [shape = 'u32[]', space=smem, size = 0x4, offset = 0x4, fixed_abs, tag = 'smem constant byte address 0x4 - core index']
  #allocation1 [shape = 'u32[72,128]{1,0:T(1,128)}', space=vmem, size = 0x9000, scoped, tag = 'internal scratch']
  %s0 = inlined_call_operand.vmem [shape: bf16[2,4,4,128], index: 0, kind: input, shape index: {}]
  %s1 = inlined_call_operand.vmem [shape: bf16[2,4,4,128], index: 1, kind: input, shape index: {}]
  %s2 = inlined_call_operand.vmem [shape: bf16[3,3,128,64], index: 2, kind: input, shape index: {}]
  %s3 = inlined_call_operand.vmem [shape: f32[1,64], index: 3, kind: input, shape index: {}]
  %s4 = inlined_call_operand.vmem [shape: bf16[64,128], index: 4, kind: input, shape index: {}]
  %s5 = inlined_call_operand.vmem [shape: f32[1,128], index: 5, kind: input, shape index: {}]
  %s6 = inlined_call_operand.vmem [shape: f32[2,16,128], index: 6, kind: output, shape index: {}]
  %s7 = sld [smem:[#allocation0]]
  $region57: #{rpn_forward.15} parent=0
    _
  %s9 = ssub.s32 1, %s7
  %s10 = scalar_select 0, %s9, %s7
  loop: start=0, step=1, limit=4
  $region2: #{rpn_forward.15} parent=0 // loop_pre_header
    _
  $region3: #{rpn_forward.15} parent=0 // loop_header
    %s12 = sphi 0, %s16
    %p13 = scmp.ge.s32.totalorder %s12, 4
    %s22 = sphi 0, %s24
    %s25 = sphi 0, %s22
    %s26 = sphi 0, %s25
    %s42 = sphi 0, %s26
    %s48 = sphi 0, %s50
    %s51 = sphi 0, %s48
    %s52 = sphi 0, %s51
    %s68 = sphi 0, %s52
    %s72 = sphi 0, %s72
    %s74 = sphi 0, %s72
    %s75 = sphi 0, %s74
    %s89 = sphi 0, %s75
    %s93 = sphi 0, %s93
    %s95 = sphi 0, %s93
    %s96 = sphi 0, %s95
    %s110 = sphi 0, %s96
    %s114 = sphi 0, %s114
    %s116 = sphi 0, %s114
    %s117 = sphi 0, %s116
    %s131 = sphi 0, %s117
    %s135 = sphi 0, %s135
    %s137 = sphi 0, %s135
    %s138 = sphi 0, %s137
    %s152 = sphi 0, %s138
    %s158 = sphi 0, %s160
    %s161 = sphi 0, %s158
    %s162 = sphi 0, %s161
    %s178 = sphi 0, %s162
  $region4: #{rpn_forward.15} parent=0 // loop_header_branch
    %15 = sbr.rel (%p13) target = $region8
  $region5: #{rpn_forward.15} parent=0 // loop_body
    %s17 = ssub.s32 %s12, 1
    %s18 = ssub.s32 %s12, 2
    %s19 = sadd.s32 %s12, 1
    %s20 = ssub.s32 %s12, %s19
    %p21 = scmp.eq.s32.totalorder %s20, 0
    %s23 = sadd.s32 %s22, 1
    %s24 = scalar_select %p21, %s22, %s23
    %p27 = pneg %p21
    %p28 = scmp.eq.s32.totalorder %s12, 1
    %p29 = por %p27, %p28
    %p30 = scmp.ne.s32.totalorder %s22, %s25
    %p31 = scmp.eq.s32.totalorder %s12, 0
    %p32 = por %p30, %p31
    %p33 = scmp.ne.s32.totalorder %s22, %s25
    %p34 = scmp.eq.s32.totalorder %s17, 1
    %p35 = por %p33, %p34
    %p36 = scmp.ne.s32.totalorder %s25, %s26
    %p37 = scmp.eq.s32.totalorder %s17, 0
    %p38 = por %p36, %p37
    %p39 = scmp.ne.s32.totalorder %s25, %s26
    %p40 = scmp.eq.s32.totalorder %s18, 1
    %p41 = por %p39, %p40
    %p43 = scmp.ne.s32.totalorder %s26, %s42
    %p44 = scmp.eq.s32.totalorder %s18, 0
    %p45 = por %p43, %p44
    %s46 = ssub.s32 %s12, %s19
    %p47 = scmp.eq.s32.totalorder %s46, 0
    %s49 = sadd.s32 %s48, 1
    %s50 = scalar_select %p47, %s48, %s49
    %p53 = pneg %p47
    %p54 = scmp.eq.s32.totalorder %s12, 1
    %p55 = por %p53, %p54
    %p56 = scmp.ne.s32.totalorder %s48, %s51
    %p57 = scmp.eq.s32.totalorder %s12, 0
    %p58 = por %p56, %p57
    %p59 = scmp.ne.s32.totalorder %s48, %s51
    %p60 = scmp.eq.s32.totalorder %s17, 1
    %p61 = por %p59, %p60
    %p62 = scmp.ne.s32.totalorder %s51, %s52
    %p63 = scmp.eq.s32.totalorder %s17, 0
    %p64 = por %p62, %p63
    %p65 = scmp.ne.s32.totalorder %s51, %s52
    %p66 = scmp.eq.s32.totalorder %s18, 1
    %p67 = por %p65, %p66
    %p69 = scmp.ne.s32.totalorder %s52, %s68
    %p70 = scmp.eq.s32.totalorder %s18, 0
    %p71 = por %p69, %p70
    %s73 = sadd.s32 %s72, 1
    %p76 = scmp.eq.s32.totalorder %s12, 1
    %p77 = scmp.ne.s32.totalorder %s72, %s74
    %p78 = scmp.eq.s32.totalorder %s12, 0
    %p79 = por %p77, %p78
    %p80 = scmp.ne.s32.totalorder %s72, %s74
    %p81 = scmp.eq.s32.totalorder %s17, 1
    %p82 = por %p80, %p81
    %p83 = scmp.ne.s32.totalorder %s74, %s75
    %p84 = scmp.eq.s32.totalorder %s17, 0
    %p85 = por %p83, %p84
    %p86 = scmp.ne.s32.totalorder %s74, %s75
    %p87 = scmp.eq.s32.totalorder %s18, 1
    %p88 = por %p86, %p87
    %p90 = scmp.ne.s32.totalorder %s75, %s89
    %p91 = scmp.eq.s32.totalorder %s18, 0
    %p92 = por %p90, %p91
    %s94 = sadd.s32 %s93, 1
    %p97 = scmp.eq.s32.totalorder %s12, 1
    %p98 = scmp.ne.s32.totalorder %s93, %s95
    %p99 = scmp.eq.s32.totalorder %s12, 0
    %p100 = por %p98, %p99
    %p101 = scmp.ne.s32.totalorder %s93, %s95
    %p102 = scmp.eq.s32.totalorder %s17, 1
    %p103 = por %p101, %p102
    %p104 = scmp.ne.s32.totalorder %s95, %s96
    %p105 = scmp.eq.s32.totalorder %s17, 0
    %p106 = por %p104, %p105
    %p107 = scmp.ne.s32.totalorder %s95, %s96
    %p108 = scmp.eq.s32.totalorder %s18, 1
    %p109 = por %p107, %p108
    %p111 = scmp.ne.s32.totalorder %s96, %s110
    %p112 = scmp.eq.s32.totalorder %s18, 0
    %p113 = por %p111, %p112
    %s115 = sadd.s32 %s114, 1
    %p118 = scmp.eq.s32.totalorder %s12, 1
    %p119 = scmp.ne.s32.totalorder %s114, %s116
    %p120 = scmp.eq.s32.totalorder %s12, 0
    %p121 = por %p119, %p120
    %p122 = scmp.ne.s32.totalorder %s114, %s116
    %p123 = scmp.eq.s32.totalorder %s17, 1
    %p124 = por %p122, %p123
    %p125 = scmp.ne.s32.totalorder %s116, %s117
    %p126 = scmp.eq.s32.totalorder %s17, 0
    %p127 = por %p125, %p126
    %p128 = scmp.ne.s32.totalorder %s116, %s117
    %p129 = scmp.eq.s32.totalorder %s18, 1
    %p130 = por %p128, %p129
    %p132 = scmp.ne.s32.totalorder %s117, %s131
    %p133 = scmp.eq.s32.totalorder %s18, 0
    %p134 = por %p132, %p133
    %s136 = sadd.s32 %s135, 1
    %p139 = scmp.eq.s32.totalorder %s12, 1
    %p140 = scmp.ne.s32.totalorder %s135, %s137
    %p141 = scmp.eq.s32.totalorder %s12, 0
    %p142 = por %p140, %p141
    %p143 = scmp.ne.s32.totalorder %s135, %s137
    %p144 = scmp.eq.s32.totalorder %s17, 1
    %p145 = por %p143, %p144
    %p146 = scmp.ne.s32.totalorder %s137, %s138
    %p147 = scmp.eq.s32.totalorder %s17, 0
    %p148 = por %p146, %p147
    %p149 = scmp.ne.s32.totalorder %s137, %s138
    %p150 = scmp.eq.s32.totalorder %s18, 1
    %p151 = por %p149, %p150
    %p153 = scmp.ne.s32.totalorder %s138, %s152
    %p154 = scmp.eq.s32.totalorder %s18, 0
    %p155 = por %p153, %p154
    %s156 = ssub.s32 %s12, %s19
    %p157 = scmp.eq.s32.totalorder %s156, 0
    %s159 = sadd.s32 %s158, 1
    %s160 = scalar_select %p157, %s158, %s159
    %p163 = pneg %p157
    %p164 = scmp.eq.s32.totalorder %s12, 1
    %p165 = por %p163, %p164
    %p166 = scmp.ne.s32.totalorder %s158, %s161
    %p167 = scmp.eq.s32.totalorder %s12, 0
    %p168 = por %p166, %p167
    %p169 = scmp.ne.s32.totalorder %s158, %s161
    %p170 = scmp.eq.s32.totalorder %s17, 1
    %p171 = por %p169, %p170
    %p172 = scmp.ne.s32.totalorder %s161, %s162
    %p173 = scmp.eq.s32.totalorder %s17, 0
    %p174 = por %p172, %p173
    %p175 = scmp.ne.s32.totalorder %s161, %s162
    %p176 = scmp.eq.s32.totalorder %s18, 1
    %p177 = por %p175, %p176
    %p179 = scmp.ne.s32.totalorder %s162, %s178
    %p180 = scmp.eq.s32.totalorder %s18, 0
    %p181 = por %p179, %p180
    %p182 = scmp.le.s32.totalorder 1, %s12
    %p183 = scmp.lt.s32.totalorder %s12, 3
    %p184 = pnand %p182, %p183
    %p185 = pneg %p184
    // Predicated region
    $region9: #{rpn_forward.15} parent=5 // pred_check
      _
    $region10: #{rpn_forward.15} parent=5 // pred_check_branch
      %187 = sbr.rel (%p184) target = $region12
    $region11: #{rpn_forward.15} parent=5 // pred_region
      %s188 = ssub.s32 %s12, 1
      // Predicated region
      $region13: #{rpn_forward.15} parent=11 // pred_check
        %p189 = pneg %p85
      $region14: #{rpn_forward.15} parent=11 // pred_check_branch
        %191 = sbr.rel (%p189) target = $region16
      $region15: #{rpn_forward.15} parent=11 // pred_region
        _
      $region16: #{rpn_forward.15} parent=11 // pred_fallthru
        _
      // Predicated region
      $region17: #{rpn_forward.15} parent=11 // pred_check
        %p192 = pneg %p106
      $region18: #{rpn_forward.15} parent=11 // pred_check_branch
        %194 = sbr.rel (%p192) target = $region20
      $region19: #{rpn_forward.15} parent=11 // pred_region
        _
      $region20: #{rpn_forward.15} parent=11 // pred_fallthru
        _
      // Predicated region
      $region21: #{rpn_forward.15} parent=11 // pred_check
        %p195 = pneg %p127
      $region22: #{rpn_forward.15} parent=11 // pred_check_branch
        %197 = sbr.rel (%p195) target = $region24
      $region23: #{rpn_forward.15} parent=11 // pred_region
        _
      $region24: #{rpn_forward.15} parent=11 // pred_fallthru
        _
      // Predicated region
      $region25: #{rpn_forward.15} parent=11 // pred_check
        %p198 = pneg %p148
      $region26: #{rpn_forward.15} parent=11 // pred_check_branch
        %200 = sbr.rel (%p198) target = $region28
      $region27: #{rpn_forward.15} parent=11 // pred_region
        _
      $region28: #{rpn_forward.15} parent=11 // pred_fallthru
        _
    $region12: #{rpn_forward.15} parent=5 // pred_fallthru
      _
    %p201 = scmp.lt.s32.totalorder %s12, 2
    // Predicated region
    $region29: #{rpn_forward.15} parent=5 // pred_check
      %p202 = pneg %p201
    $region30: #{rpn_forward.15} parent=5 // pred_check_branch
      %204 = sbr.rel (%p202) target = $region32
    $region31: #{rpn_forward.15} parent=5 // pred_region
      // Predicated region
      $region33: #{rpn_forward.15} parent=31 // pred_check
        %p205 = pneg %p32
      $region34: #{rpn_forward.15} parent=31 // pred_check_branch
        %207 = sbr.rel (%p205) target = $region36
      $region35: #{rpn_forward.15} parent=31 // pred_region
        %p208 = scmp.lt.s32.totalorder %s12, 1
        %s209 = scalar_select %p208, %s12, 1
        %s210 = smul.addr %s209, 4
        %s211 = smul.addr %s210, 2
        %s212 = scalar_lea.vmem %s0, %s211
      $region36: #{rpn_forward.15} parent=31 // pred_fallthru
        _
      // Predicated region
      $region37: #{rpn_forward.15} parent=31 // pred_check
        %p213 = pneg %p58
      $region38: #{rpn_forward.15} parent=31 // pred_check_branch
        %215 = sbr.rel (%p213) target = $region40
      $region39: #{rpn_forward.15} parent=31 // pred_region
        %p216 = scmp.lt.s32.totalorder %s12, 1
        %s217 = scalar_select %p216, %s12, 1
        %s218 = smul.addr %s217, 4
        %s219 = smul.addr %s218, 2
        %s220 = scalar_lea.vmem %s1, %s219
      $region40: #{rpn_forward.15} parent=31 // pred_fallthru
        _
    $region32: #{rpn_forward.15} parent=5 // pred_fallthru
      _
    %p221 = scmp.le.s32.totalorder 1, %s12
    %p222 = scmp.lt.s32.totalorder %s12, 3
    %p223 = pnand %p221, %p222
    %p224 = pneg %p223
    // Predicated region
    $region41: #{rpn_forward.15} parent=5 // pred_check
      _
    $region42: #{rpn_forward.15} parent=5 // pred_check_branch
      %226 = sbr.rel (%p223) target = $region44
    $region43: #{rpn_forward.15} parent=5 // pred_region
      %s227 = ssub.s32 %s12, 1
      %p228 = scmp.lt.s32.totalorder %s17, 1
      %s229 = scalar_select %p228, %s17, 1
      %s230 = smul.addr %s229, 4
      %s231 = smul.addr %s230, 2
      %s232 = scalar_lea.vmem %s0, %s231
      %p233 = pneg %p38
      %p234 = pneg %p35
      %p235 = scmp.lt.s32.totalorder %s17, 1
      %s236 = scalar_select %p235, %s17, 1
      %s237 = smul.addr %s236, 4
      %s238 = smul.addr %s237, 2
      %s239 = scalar_lea.vmem %s1, %s238
      %p240 = pneg %p64
      %p241 = pneg %p61
      %p242 = pneg %p85
      %p243 = pneg %p82
      %p244 = pneg %p106
      %p245 = pneg %p103
      %p246 = pneg %p127
      %p247 = pneg %p124
      %p248 = pneg %p148
      %p249 = pneg %p145
      %p250 = pneg %p174
      %p251 = pneg %p171
      %p252 = scmp.lt.s32.totalorder %s17, 1
      %s253 = scalar_select %p252, %s17, 1
      %s254 = smul.addr %s253, 2
      %s255 = smul.addr %s254, 8
      %s256 = scalar_lea.vmem %s6, %s255
      %p257 = scmp.lt.s32.totalorder %s17, 1
      %s258 = scalar_select %p257, %s17, 1
      %s259 = smul.addr %s258, 4
      %s260 = smul.addr %s259, 2
      %s261 = scalar_lea.vmem %s0, %s260
      %p262 = scmp.lt.s32.totalorder %s17, 1
      %s263 = scalar_select %p262, %s17, 1
      %s264 = smul.addr %s263, 4
      %s265 = smul.addr %s264, 2
      %s266 = scalar_lea.vmem %s1, %s265
      %p267 = scmp.lt.s32.totalorder %s17, 1
      %s268 = scalar_select %p267, %s17, 1
      %s269 = smul.addr %s268, 2
      %s270 = smul.addr %s269, 8
      %s271 = scalar_lea.vmem %s6, %s270
      %v273 = vld [vmem:[%s261] sm:$0x3]
      %v274 = vld [vmem:[%s261 + $0x2] sm:$0x3]
      %v275 = vld [vmem:[%s261 + $0x4] sm:$0x3]
      %v276 = vld [vmem:[%s261 + $0x6] sm:$0x3]
      %v277 = vunpack.c.l.bf16 %v273
      %v278 = vunpack.c.l.bf16 %v274
      %v279 = vunpack.c.l.bf16 %v275
      %v280 = vunpack.c.l.bf16 %v276
      %v281 = vld [vmem:[%s266] sm:$0x3]
      %v282 = vld [vmem:[%s266 + $0x2] sm:$0x3]
      %v283 = vld [vmem:[%s266 + $0x4] sm:$0x3]
      %v284 = vld [vmem:[%s266 + $0x6] sm:$0x3]
      %v285 = vunpack.c.l.bf16 %v281
      %v286 = vunpack.c.l.bf16 %v282
      %v287 = vunpack.c.l.bf16 %v283
      %v288 = vunpack.c.l.bf16 %v284
      %v289 = vmul.f32 %v277, %v285
      %v290 = vmul.f32 %v278, %v286
      %v291 = vmul.f32 %v279, %v287
      %v292 = vmul.f32 %v280, %v288
      %297 = vst [vmem:[#allocation1] ss:$2 sm:$0xff] %v289
      %v298 = vld.sshfl [vmem:[#allocation1] sm:$0xff pattern:$0x75316420]
      %s299 = scalar_lea.vmem [#allocation1], 16
      %300 = vst [vmem:[%s299] ss:$2 sm:$0xff] %v290
      %v301 = vld.sshfl [vmem:[#allocation1 + $0x10] sm:$0xff pattern:$0x75316420]
      %s302 = scalar_lea.vmem [#allocation1], 32
      %303 = vst [vmem:[%s302] ss:$2 sm:$0xff] %v291
      %v304 = vld.sshfl [vmem:[#allocation1 + $0x20] sm:$0xff pattern:$0x75316420]
      %s305 = scalar_lea.vmem [#allocation1], 48
      %306 = vst [vmem:[%s305] ss:$2 sm:$0xff] %v292
      %v307 = vld.sshfl [vmem:[#allocation1 + $0x30] sm:$0xff pattern:$0x75316420]
      %v308 = vrot.slane %v298, 7
      %v309 = vrot.slane %v301, 7
      %v310 = vrot.slane %v304, 7
      %v311 = vrot.slane %v307, 7
      %vm316 = vcmask 1040384
      %v317 = vsel %vm316, 0.0, %v308
      %v318 = vsel %vm316, 0.0, %v309
      %v319 = vsel %vm316, 0.0, %v310
      %v320 = vsel %vm316, 0.0, %v311
      %vm321 = vcmask 1044480
      %v322 = vsel %vm321, %v317, 0.0
      %v323 = vsel %vm321, %v318, 0.0
      %v324 = vsel %vm321, %v319, 0.0
      %v325 = vsel %vm321, %v320, 0.0
      %v326 = vpack.c.bf16 0.0, 0.0
      %v327 = vpack.c.bf16 %v322, %v322
      %v328 = vpack.c.bf16 %v323, %v323
      %v329 = vpack.c.bf16 %v324, %v324
      %v330 = vpack.c.bf16 %v325, %v325
      %v331 = vld [vmem:[%s2] sm:$0xf]
      %v332 = vld [vmem:[%s2 + $0x4] sm:$0xf]
      %v333 = vld [vmem:[%s2 + $0x8] sm:$0xf]
      %v334 = vld [vmem:[%s2 + $0xc] sm:$0xf]
      %v335 = vld [vmem:[%s2 + $0x10] sm:$0xf]
      %v336 = vld [vmem:[%s2 + $0x14] sm:$0xf]
      %v337 = vld [vmem:[%s2 + $0x18] sm:$0xf]
      %v338 = vld [vmem:[%s2 + $0x1c] sm:$0xf]
      %v339 = vld [vmem:[%s2 + $0x20] sm:$0xf]
      %v340 = vld [vmem:[%s2 + $0x24] sm:$0xf]
      %v341 = vld [vmem:[%s2 + $0x28] sm:$0xf]
      %v342 = vld [vmem:[%s2 + $0x2c] sm:$0xf]
      %v343 = vld [vmem:[%s2 + $0x30] sm:$0xf]
      %v344 = vld [vmem:[%s2 + $0x34] sm:$0xf]
      %v345 = vld [vmem:[%s2 + $0x38] sm:$0xf]
      %v346 = vld [vmem:[%s2 + $0x3c] sm:$0xf]
      %v347 = vld [vmem:[%s2 + $0x40] sm:$0xf]
      %v348 = vld [vmem:[%s2 + $0x44] sm:$0xf]
      %v349 = vld [vmem:[%s2 + $0x48] sm:$0xf]
      %v350 = vld [vmem:[%s2 + $0x4c] sm:$0xf]
      %v351 = vld [vmem:[%s2 + $0x50] sm:$0xf]
      %v352 = vld [vmem:[%s2 + $0x54] sm:$0xf]
      %v353 = vld [vmem:[%s2 + $0x58] sm:$0xf]
      %v354 = vld [vmem:[%s2 + $0x5c] sm:$0xf]
      %v355 = vld [vmem:[%s2 + $0x60] sm:$0xf]
      %v356 = vld [vmem:[%s2 + $0x64] sm:$0xf]
      %v357 = vld [vmem:[%s2 + $0x68] sm:$0xf]
      %v358 = vld [vmem:[%s2 + $0x6c] sm:$0xf]
      %v359 = vld [vmem:[%s2 + $0x70] sm:$0xf]
      %v360 = vld [vmem:[%s2 + $0x74] sm:$0xf]
      %v361 = vld [vmem:[%s2 + $0x78] sm:$0xf]
      %v362 = vld [vmem:[%s2 + $0x7c] sm:$0xf]
      %v363 = vld [vmem:[%s2 + $0x80] sm:$0xf]
      %v364 = vld [vmem:[%s2 + $0x84] sm:$0xf]
      %v365 = vld [vmem:[%s2 + $0x88] sm:$0xf]
      %v366 = vld [vmem:[%s2 + $0x8c] sm:$0xf]
      %v367 = vld [vmem:[%s2 + $0x90] sm:$0xf]
      %v368 = vld [vmem:[%s2 + $0x94] sm:$0xf]
      %v369 = vld [vmem:[%s2 + $0x98] sm:$0xf]
      %v370 = vld [vmem:[%s2 + $0x9c] sm:$0xf]
      %v371 = vld [vmem:[%s2 + $0xa0] sm:$0xf]
      %v372 = vld [vmem:[%s2 + $0xa4] sm:$0xf]
      %v373 = vld [vmem:[%s2 + $0xa8] sm:$0xf]
      %v374 = vld [vmem:[%s2 + $0xac] sm:$0xf]
      %v375 = vld [vmem:[%s2 + $0xb0] sm:$0xf]
      %v376 = vld [vmem:[%s2 + $0xb4] sm:$0xf]
      %v377 = vld [vmem:[%s2 + $0xb8] sm:$0xf]
      %v378 = vld [vmem:[%s2 + $0xbc] sm:$0xf]
      %v379 = vld [vmem:[%s2 + $0xc0] sm:$0xf]
      %v380 = vld [vmem:[%s2 + $0xc4] sm:$0xf]
      %v381 = vld [vmem:[%s2 + $0xc8] sm:$0xf]
      %v382 = vld [vmem:[%s2 + $0xcc] sm:$0xf]
      %v383 = vld [vmem:[%s2 + $0xd0] sm:$0xf]
      %v384 = vld [vmem:[%s2 + $0xd4] sm:$0xf]
      %v385 = vld [vmem:[%s2 + $0xd8] sm:$0xf]
      %v386 = vld [vmem:[%s2 + $0xdc] sm:$0xf]
      %v387 = vld [vmem:[%s2 + $0xe0] sm:$0xf]
      %v388 = vld [vmem:[%s2 + $0xe4] sm:$0xf]
      %v389 = vld [vmem:[%s2 + $0xe8] sm:$0xf]
      %v390 = vld [vmem:[%s2 + $0xec] sm:$0xf]
      %v391 = vld [vmem:[%s2 + $0xf0] sm:$0xf]
      %v392 = vld [vmem:[%s2 + $0xf4] sm:$0xf]
      %v393 = vld [vmem:[%s2 + $0xf8] sm:$0xf]
      %v394 = vld [vmem:[%s2 + $0xfc] sm:$0xf]
      %v395 = vld [vmem:[%s2 + $0x100] sm:$0xf]
      %v396 = vld [vmem:[%s2 + $0x104] sm:$0xf]
      %v397 = vld [vmem:[%s2 + $0x108] sm:$0xf]
      %v398 = vld [vmem:[%s2 + $0x10c] sm:$0xf]
      %v399 = vld [vmem:[%s2 + $0x110] sm:$0xf]
      %v400 = vld [vmem:[%s2 + $0x114] sm:$0xf]
      %v401 = vld [vmem:[%s2 + $0x118] sm:$0xf]
      %v402 = vld [vmem:[%s2 + $0x11c] sm:$0xf]
      %v403 = vld [vmem:[%s2 + $0x120] sm:$0xf]
      %v404 = vld [vmem:[%s2 + $0x124] sm:$0xf]
      %v405 = vld [vmem:[%s2 + $0x128] sm:$0xf]
      %v406 = vld [vmem:[%s2 + $0x12c] sm:$0xf]
      %v407 = vld [vmem:[%s2 + $0x130] sm:$0xf]
      %v408 = vld [vmem:[%s2 + $0x134] sm:$0xf]
      %v409 = vld [vmem:[%s2 + $0x138] sm:$0xf]
      %v410 = vld [vmem:[%s2 + $0x13c] sm:$0xf]
      %v411 = vld [vmem:[%s2 + $0x140] sm:$0xf]
      %v412 = vld [vmem:[%s2 + $0x144] sm:$0xf]
      %v413 = vld [vmem:[%s2 + $0x148] sm:$0xf]
      %v414 = vld [vmem:[%s2 + $0x14c] sm:$0xf]
      %v415 = vld [vmem:[%s2 + $0x150] sm:$0xf]
      %v416 = vld [vmem:[%s2 + $0x154] sm:$0xf]
      %v417 = vld [vmem:[%s2 + $0x158] sm:$0xf]
      %v418 = vld [vmem:[%s2 + $0x15c] sm:$0xf]
      %v419 = vld [vmem:[%s2 + $0x160] sm:$0xf]
      %v420 = vld [vmem:[%s2 + $0x164] sm:$0xf]
      %v421 = vld [vmem:[%s2 + $0x168] sm:$0xf]
      %v422 = vld [vmem:[%s2 + $0x16c] sm:$0xf]
      %v423 = vld [vmem:[%s2 + $0x170] sm:$0xf]
      %v424 = vld [vmem:[%s2 + $0x174] sm:$0xf]
      %v425 = vld [vmem:[%s2 + $0x178] sm:$0xf]
      %v426 = vld [vmem:[%s2 + $0x17c] sm:$0xf]
      %v427 = vld [vmem:[%s2 + $0x180] sm:$0xf]
      %v428 = vld [vmem:[%s2 + $0x184] sm:$0xf]
      %v429 = vld [vmem:[%s2 + $0x188] sm:$0xf]
      %v430 = vld [vmem:[%s2 + $0x18c] sm:$0xf]
      %v431 = vld [vmem:[%s2 + $0x190] sm:$0xf]
      %v432 = vld [vmem:[%s2 + $0x194] sm:$0xf]
      %v433 = vld [vmem:[%s2 + $0x198] sm:$0xf]
      %v434 = vld [vmem:[%s2 + $0x19c] sm:$0xf]
      %v435 = vld [vmem:[%s2 + $0x1a0] sm:$0xf]
      %v436 = vld [vmem:[%s2 + $0x1a4] sm:$0xf]
      %v437 = vld [vmem:[%s2 + $0x1a8] sm:$0xf]
      %v438 = vld [vmem:[%s2 + $0x1ac] sm:$0xf]
      %v439 = vld [vmem:[%s2 + $0x1b0] sm:$0xf]
      %v440 = vld [vmem:[%s2 + $0x1b4] sm:$0xf]
      %v441 = vld [vmem:[%s2 + $0x1b8] sm:$0xf]
      %v442 = vld [vmem:[%s2 + $0x1bc] sm:$0xf]
      %v443 = vld [vmem:[%s2 + $0x1c0] sm:$0xf]
      %v444 = vld [vmem:[%s2 + $0x1c4] sm:$0xf]
      %v445 = vld [vmem:[%s2 + $0x1c8] sm:$0xf]
      %v446 = vld [vmem:[%s2 + $0x1cc] sm:$0xf]
      %v447 = vld [vmem:[%s2 + $0x1d0] sm:$0xf]
      %v448 = vld [vmem:[%s2 + $0x1d4] sm:$0xf]
      %v449 = vld [vmem:[%s2 + $0x1d8] sm:$0xf]
      %v450 = vld [vmem:[%s2 + $0x1dc] sm:$0xf]
      %v451 = vld [vmem:[%s2 + $0x1e0] sm:$0xf]
      %v452 = vld [vmem:[%s2 + $0x1e4] sm:$0xf]
      %v453 = vld [vmem:[%s2 + $0x1e8] sm:$0xf]
      %v454 = vld [vmem:[%s2 + $0x1ec] sm:$0xf]
      %v455 = vld [vmem:[%s2 + $0x1f0] sm:$0xf]
      %v456 = vld [vmem:[%s2 + $0x1f4] sm:$0xf]
      %v457 = vld [vmem:[%s2 + $0x1f8] sm:$0xf]
      %v458 = vld [vmem:[%s2 + $0x1fc] sm:$0xf]
      %v459 = vld [vmem:[%s2 + $0x200] sm:$0xf]
      %v460 = vld [vmem:[%s2 + $0x204] sm:$0xf]
      %v461 = vld [vmem:[%s2 + $0x208] sm:$0xf]
      %v462 = vld [vmem:[%s2 + $0x20c] sm:$0xf]
      %v463 = vld [vmem:[%s2 + $0x210] sm:$0xf]
      %v464 = vld [vmem:[%s2 + $0x214] sm:$0xf]
      %v465 = vld [vmem:[%s2 + $0x218] sm:$0xf]
      %v466 = vld [vmem:[%s2 + $0x21c] sm:$0xf]
      %v467 = vld [vmem:[%s2 + $0x220] sm:$0xf]
      %v468 = vld [vmem:[%s2 + $0x224] sm:$0xf]
      %v469 = vld [vmem:[%s2 + $0x228] sm:$0xf]
      %v470 = vld [vmem:[%s2 + $0x22c] sm:$0xf]
      %v471 = vld [vmem:[%s2 + $0x230] sm:$0xf]
      %v472 = vld [vmem:[%s2 + $0x234] sm:$0xf]
      %v473 = vld [vmem:[%s2 + $0x238] sm:$0xf]
      %v474 = vld [vmem:[%s2 + $0x23c] sm:$0xf]
      %476 = vst [vmem:[#allocation1] ss:$4 sm:$0xff] %v327
      %s478 = scalar_lea.vmem [#allocation1], 1
      %479 = vst [vmem:[%s478] ss:$4 sm:$0xff] %v328
      %s481 = scalar_lea.vmem [#allocation1], 2
      %482 = vst [vmem:[%s481] ss:$4 sm:$0xff] %v329
      %s484 = scalar_lea.vmem [#allocation1], 3
      %485 = vst [vmem:[%s484] ss:$4 sm:$0xff] %v330
      %v486 = vld.sshfl [vmem:[#allocation1] sm:$0xff pattern:$0x73625140]
      %v504 = vunpack.c.l.b16 %v379
      %v505 = vunpack.c.l.b16 %v380
      %v506 = vunpack.c.l.b16 %v381
      %v507 = vunpack.c.l.b16 %v382
      %v508 = vunpack.c.l.b16 %v383
      %v509 = vunpack.c.l.b16 %v384
      %v510 = vunpack.c.l.b16 %v385
      %v511 = vunpack.c.l.b16 %v386
      %v512 = vunpack.c.l.b16 %v387
      %v513 = vunpack.c.l.b16 %v388
      %v514 = vunpack.c.l.b16 %v389
      %v515 = vunpack.c.l.b16 %v390
      %v516 = vunpack.c.l.b16 %v391
      %v517 = vunpack.c.l.b16 %v392
      %v518 = vunpack.c.l.b16 %v393
      %v519 = vunpack.c.l.b16 %v394
      %v520 = vpack.c.b16 %v505, %v504
      %v521 = vpack.c.b16 %v507, %v506
      %v522 = vpack.c.b16 %v509, %v508
      %v523 = vpack.c.b16 %v511, %v510
      %v524 = vpack.c.b16 %v513, %v512
      %v525 = vpack.c.b16 %v515, %v514
      %v526 = vpack.c.b16 %v517, %v516
      %v527 = vpack.c.b16 %v519, %v518
      %536 = vmatpush.bf16.msra.mxu0 %v527
      %537 = vmatpush.bf16.msra.mxu0 %v526
      %538 = vmatpush.bf16.msra.mxu0 %v525
      %539 = vmatpush.bf16.msra.mxu0 %v524
      %540 = vmatpush.bf16.msra.mxu0 %v523
      %541 = vmatpush.bf16.msra.mxu0 %v522
      %542 = vmatpush.bf16.msra.mxu0 %v521
      %543 = vmatpush.bf16.msra.mxu0 %v520
      %544 = vmatmul.bf16.gmra.mxu0 %v486
      %v545 = vpop.f32.mrf.mxu0
      %v546 = vadd.f32 0.0, %v545
      %v547 = vpop.f32.mrf.mxu0
      %v548 = vadd.f32 0.0, %v547
      %549 = vdwg.mxu0
      %551 = vst [vmem:[#allocation1] ss:$4 sm:$0xff] %v326
      %s552 = scalar_lea.vmem [#allocation1], 1
      %553 = vst [vmem:[%s552] ss:$4 sm:$0xff] %v327
      %s554 = scalar_lea.vmem [#allocation1], 2
      %555 = vst [vmem:[%s554] ss:$4 sm:$0xff] %v328
      %s556 = scalar_lea.vmem [#allocation1], 3
      %557 = vst [vmem:[%s556] ss:$4 sm:$0xff] %v329
      %v558 = vld.sshfl [vmem:[#allocation1] sm:$0xff pattern:$0x73625140]
      %v576 = vunpack.c.l.b16 %v331
      %v577 = vunpack.c.l.b16 %v332
      %v578 = vunpack.c.l.b16 %v333
      %v579 = vunpack.c.l.b16 %v334
      %v580 = vunpack.c.l.b16 %v335
      %v581 = vunpack.c.l.b16 %v336
      %v582 = vunpack.c.l.b16 %v337
      %v583 = vunpack.c.l.b16 %v338
      %v584 = vunpack.c.l.b16 %v339
      %v585 = vunpack.c.l.b16 %v340
      %v586 = vunpack.c.l.b16 %v341
      %v587 = vunpack.c.l.b16 %v342
      %v588 = vunpack.c.l.b16 %v343
      %v589 = vunpack.c.l.b16 %v344
      %v590 = vunpack.c.l.b16 %v345
      %v591 = vunpack.c.l.b16 %v346
      %v592 = vpack.c.b16 %v577, %v576
      %v593 = vpack.c.b16 %v579, %v578
      %v594 = vpack.c.b16 %v581, %v580
      %v595 = vpack.c.b16 %v583, %v582
      %v596 = vpack.c.b16 %v585, %v584
      %v597 = vpack.c.b16 %v587, %v586
      %v598 = vpack.c.b16 %v589, %v588
      %v599 = vpack.c.b16 %v591, %v590
      %608 = vmatpush.bf16.msra.mxu0 %v599
      %609 = vmatpush.bf16.msra.mxu0 %v598
      %610 = vmatpush.bf16.msra.mxu0 %v597
      %611 = vmatpush.bf16.msra.mxu0 %v596
      %612 = vmatpush.bf16.msra.mxu0 %v595
      %613 = vmatpush.bf16.msra.mxu0 %v594
      %614 = vmatpush.bf16.msra.mxu0 %v593
      %615 = vmatpush.bf16.msra.mxu0 %v592
      %616 = vmatmul.bf16.gmra.mxu0 %v558
      %v617 = vpop.f32.mrf.mxu0
      %v618 = vadd.f32 %v546, %v617
      %v619 = vpop.f32.mrf.mxu0
      %v620 = vadd.f32 %v548, %v619
      %621 = vdwg.mxu0
      %622 = vst [vmem:[#allocation1] ss:$4 sm:$0xff] %v328
      %s623 = scalar_lea.vmem [#allocation1], 1
      %624 = vst [vmem:[%s623] ss:$4 sm:$0xff] %v329
      %s625 = scalar_lea.vmem [#allocation1], 2
      %626 = vst [vmem:[%s625] ss:$4 sm:$0xff] %v330
      %s627 = scalar_lea.vmem [#allocation1], 3
      %628 = vst [vmem:[%s627] ss:$4 sm:$0xff] %v326
      %v629 = vld.sshfl [vmem:[#allocation1] sm:$0xff pattern:$0x73625140]
      %v647 = vunpack.c.l.b16 %v427
      %v648 = vunpack.c.l.b16 %v428
      %v649 = vunpack.c.l.b16 %v429
      %v650 = vunpack.c.l.b16 %v430
      %v651 = vunpack.c.l.b16 %v431
      %v652 = vunpack.c.l.b16 %v432
      %v653 = vunpack.c.l.b16 %v433
      %v654 = vunpack.c.l.b16 %v434
      %v655 = vunpack.c.l.b16 %v435
      %v656 = vunpack.c.l.b16 %v436
      %v657 = vunpack.c.l.b16 %v437
      %v658 = vunpack.c.l.b16 %v438
      %v659 = vunpack.c.l.b16 %v439
      %v660 = vunpack.c.l.b16 %v440
      %v661 = vunpack.c.l.b16 %v441
      %v662 = vunpack.c.l.b16 %v442
      %v663 = vpack.c.b16 %v648, %v647
      %v664 = vpack.c.b16 %v650, %v649
      %v665 = vpack.c.b16 %v652, %v651
      %v666 = vpack.c.b16 %v654, %v653
      %v667 = vpack.c.b16 %v656, %v655
      %v668 = vpack.c.b16 %v658, %v657
      %v669 = vpack.c.b16 %v660, %v659
      %v670 = vpack.c.b16 %v662, %v661
      %679 = vmatpush.bf16.msra.mxu0 %v670
      %680 = vmatpush.bf16.msra.mxu0 %v669
      %681 = vmatpush.bf16.msra.mxu0 %v668
      %682 = vmatpush.bf16.msra.mxu0 %v667
      %683 = vmatpush.bf16.msra.mxu0 %v666
      %684 = vmatpush.bf16.msra.mxu0 %v665
      %685 = vmatpush.bf16.msra.mxu0 %v664
      %686 = vmatpush.bf16.msra.mxu0 %v663
      %687 = vmatmul.bf16.gmra.mxu0 %v629
      %v688 = vpop.f32.mrf.mxu0
      %v689 = vadd.f32 0.0, %v688
      %v690 = vpop.f32.mrf.mxu0
      %v691 = vadd.f32 0.0, %v690
      %692 = vdwg.mxu0
      %v693 = vadd.f32 %v618, %v689
      %v694 = vadd.f32 %v620, %v691
      %v700 = vrot.slane %v326, 2
      %v701 = vrot.slane %v327, 2
      %v702 = vrot.slane %v328, 2
      %v703 = vrot.slane %v329, 2
      %v704 = vrot.slane %v330, 2
      %vm705 = vcmask 1041408
      %v707 = vsel %vm705, %v326, %v700
      %vm708 = vcmask 1043458
      %v709 = vsel %vm708, %v326, %v700
      %v711 = vrot.slane %v709, 2
      %v713 = vsel %vm705, %v327, %v701
      %v714 = vsel %vm708, %v327, %v701
      %v716 = vrot.slane %v714, 2
      %v718 = vsel %vm705, %v328, %v702
      %v719 = vsel %vm708, %v328, %v702
      %v721 = vrot.slane %v719, 2
      %v723 = vsel %vm705, %v329, %v703
      %v724 = vsel %vm708, %v329, %v703
      %v726 = vrot.slane %v724, 2
      %v728 = vsel %vm705, %v330, %v704
      %v729 = vsel %vm708, %v330, %v704
      %v731 = vrot.slane %v729, 2
      %vm732 = vsmask.f32 1280
      %vm733 = vsmask.f32 3336
      %vm734 = vmor %vm732, %vm733
      %vm735 = vsmask.f32 5392
      %vm736 = vmor %vm734, %vm735
      %vm737 = vsmask.f32 7448
      %vm738 = vmor %vm736, %vm737
      %v739 = vshrl.u32 %v707, 16
      %v741 = vrot.slane %v739, 6
      %v742 = vshll.u32 %v707, 16
      %v744 = vrot.slane %v742, 7
      %v745 = vor.u32 %v741, %v744
      %v746 = vrot.slane %v745, 2
      %v748 = vshll.u32 %v711, 16
      %v750 = vrot.slane %v748, 7
      %v751 = vsel %vm738, %v746, %v750
      %v752 = vshrl.u32 %v713, 16
      %v754 = vrot.slane %v752, 6
      %v755 = vshll.u32 %v713, 16
      %v757 = vrot.slane %v755, 7
      %v758 = vor.u32 %v754, %v757
      %v759 = vrot.slane %v758, 2
      %v761 = vshll.u32 %v716, 16
      %v763 = vrot.slane %v761, 7
      %v764 = vsel %vm738, %v759, %v763
      %v765 = vshrl.u32 %v718, 16
      %v767 = vrot.slane %v765, 6
      %v768 = vshll.u32 %v718, 16
      %v770 = vrot.slane %v768, 7
      %v771 = vor.u32 %v767, %v770
      %v772 = vrot.slane %v771, 2
      %v774 = vshll.u32 %v721, 16
      %v776 = vrot.slane %v774, 7
      %v777 = vsel %vm738, %v772, %v776
      %v778 = vshrl.u32 %v723, 16
      %v780 = vrot.slane %v778, 6
      %v781 = vshll.u32 %v723, 16
      %v783 = vrot.slane %v781, 7
      %v784 = vor.u32 %v780, %v783
      %v785 = vrot.slane %v784, 2
      %v787 = vshll.u32 %v726, 16
      %v789 = vrot.slane %v787, 7
      %v790 = vsel %vm738, %v785, %v789
      %v791 = vshrl.u32 %v728, 16
      %v793 = vrot.slane %v791, 6
      %v794 = vshll.u32 %v728, 16
      %v796 = vrot.slane %v794, 7
      %v797 = vor.u32 %v793, %v796
      %v798 = vrot.slane %v797, 2
      %v800 = vshll.u32 %v731, 16
      %v802 = vrot.slane %v800, 7
      %v803 = vsel %vm738, %v798, %v802
      %805 = vst [vmem:[#allocation1] ss:$4 sm:$0xff] %v751
      %s807 = scalar_lea.vmem [#allocation1], 1
      %808 = vst [vmem:[%s807] ss:$4 sm:$0xff] %v764
      %s810 = scalar_lea.vmem [#allocation1], 2
      %811 = vst [vmem:[%s810] ss:$4 sm:$0xff] %v777
      %s813 = scalar_lea.vmem [#allocation1], 3
      %814 = vst [vmem:[%s813] ss:$4 sm:$0xff] %v790
      %v815 = vld.sshfl [vmem:[#allocation1] sm:$0xff pattern:$0x73625140]
      %v833 = vunpack.c.l.b16 %v347
      %v834 = vunpack.c.l.b16 %v348
      %v835 = vunpack.c.l.b16 %v349
      %v836 = vunpack.c.l.b16 %v350
      %v837 = vunpack.c.l.b16 %v351
      %v838 = vunpack.c.l.b16 %v352
      %v839 = vunpack.c.l.b16 %v353
      %v840 = vunpack.c.l.b16 %v354
      %v841 = vunpack.c.l.b16 %v355
      %v842 = vunpack.c.l.b16 %v356
      %v843 = vunpack.c.l.b16 %v357
      %v844 = vunpack.c.l.b16 %v358
      %v845 = vunpack.c.l.b16 %v359
      %v846 = vunpack.c.l.b16 %v360
      %v847 = vunpack.c.l.b16 %v361
      %v848 = vunpack.c.l.b16 %v362
      %v849 = vpack.c.b16 %v834, %v833
      %v850 = vpack.c.b16 %v836, %v835
      %v851 = vpack.c.b16 %v838, %v837
      %v852 = vpack.c.b16 %v840, %v839
      %v853 = vpack.c.b16 %v842, %v841
      %v854 = vpack.c.b16 %v844, %v843
      %v855 = vpack.c.b16 %v846, %v845
      %v856 = vpack.c.b16 %v848, %v847
      %865 = vmatpush.bf16.msra.mxu0 %v856
      %866 = vmatpush.bf16.msra.mxu0 %v855
      %867 = vmatpush.bf16.msra.mxu0 %v854
      %868 = vmatpush.bf16.msra.mxu0 %v853
      %869 = vmatpush.bf16.msra.mxu0 %v852
      %870 = vmatpush.bf16.msra.mxu0 %v851
      %871 = vmatpush.bf16.msra.mxu0 %v850
      %872 = vmatpush.bf16.msra.mxu0 %v849
      %873 = vmatmul.bf16.gmra.mxu0 %v815
      %v874 = vpop.f32.mrf.mxu0
      %v875 = vadd.f32 0.0, %v874
      %v876 = vpop.f32.mrf.mxu0
      %v877 = vadd.f32 0.0, %v876
      %878 = vdwg.mxu0
      %v879 = vadd.f32 %v693, %v875
      %v880 = vadd.f32 %v694, %v877
      %881 = vst [vmem:[#allocation1] ss:$4 sm:$0xff] %v764
      %s882 = scalar_lea.vmem [#allocation1], 1
      %883 = vst [vmem:[%s882] ss:$4 sm:$0xff] %v777
      %s884 = scalar_lea.vmem [#allocation1], 2
      %885 = vst [vmem:[%s884] ss:$4 sm:$0xff] %v790
      %s887 = scalar_lea.vmem [#allocation1], 3
      %888 = vst [vmem:[%s887] ss:$4 sm:$0xff] %v803
      %v889 = vld.sshfl [vmem:[#allocation1] sm:$0xff pattern:$0x73625140]
      %v907 = vunpack.c.l.b16 %v395
      %v908 = vunpack.c.l.b16 %v396
      %v909 = vunpack.c.l.b16 %v397
      %v910 = vunpack.c.l.b16 %v398
      %v911 = vunpack.c.l.b16 %v399
      %v912 = vunpack.c.l.b16 %v400
      %v913 = vunpack.c.l.b16 %v401
      %v914 = vunpack.c.l.b16 %v402
      %v915 = vunpack.c.l.b16 %v403
      %v916 = vunpack.c.l.b16 %v404
      %v917 = vunpack.c.l.b16 %v405
      %v918 = vunpack.c.l.b16 %v406
      %v919 = vunpack.c.l.b16 %v407
      %v920 = vunpack.c.l.b16 %v408
      %v921 = vunpack.c.l.b16 %v409
      %v922 = vunpack.c.l.b16 %v410
      %v923 = vpack.c.b16 %v908, %v907
      %v924 = vpack.c.b16 %v910, %v909
      %v925 = vpack.c.b16 %v912, %v911
      %v926 = vpack.c.b16 %v914, %v913
      %v927 = vpack.c.b16 %v916, %v915
      %v928 = vpack.c.b16 %v918, %v917
      %v929 = vpack.c.b16 %v920, %v919
      %v930 = vpack.c.b16 %v922, %v921
      %939 = vmatpush.bf16.msra.mxu0 %v930
      %940 = vmatpush.bf16.msra.mxu0 %v929
      %941 = vmatpush.bf16.msra.mxu0 %v928
      %942 = vmatpush.bf16.msra.mxu0 %v927
      %943 = vmatpush.bf16.msra.mxu0 %v926
      %944 = vmatpush.bf16.msra.mxu0 %v925
      %945 = vmatpush.bf16.msra.mxu0 %v924
      %946 = vmatpush.bf16.msra.mxu0 %v923
      %947 = vmatmul.bf16.gmra.mxu0 %v889
      %v948 = vpop.f32.mrf.mxu0
      %v949 = vadd.f32 0.0, %v948
      %v950 = vpop.f32.mrf.mxu0
      %v951 = vadd.f32 0.0, %v950
      %952 = vdwg.mxu0
      %v953 = vadd.f32 %v879, %v949
      %v954 = vadd.f32 %v880, %v951
      %955 = vst [vmem:[#allocation1] ss:$4 sm:$0xff] %v777
      %s956 = scalar_lea.vmem [#allocation1], 1
      %957 = vst [vmem:[%s956] ss:$4 sm:$0xff] %v790
      %s958 = scalar_lea.vmem [#allocation1], 2
      %959 = vst [vmem:[%s958] ss:$4 sm:$0xff] %v803
      %s960 = scalar_lea.vmem [#allocation1], 3
      %961 = vst [vmem:[%s960] ss:$4 sm:$0xff] %v751
      %v962 = vld.sshfl [vmem:[#allocation1] sm:$0xff pattern:$0x73625140]
      %v980 = vunpack.c.l.b16 %v443
      %v981 = vunpack.c.l.b16 %v444
      %v982 = vunpack.c.l.b16 %v445
      %v983 = vunpack.c.l.b16 %v446
      %v984 = vunpack.c.l.b16 %v447
      %v985 = vunpack.c.l.b16 %v448
      %v986 = vunpack.c.l.b16 %v449
      %v987 = vunpack.c.l.b16 %v450
      %v988 = vunpack.c.l.b16 %v451
      %v989 = vunpack.c.l.b16 %v452
      %v990 = vunpack.c.l.b16 %v453
      %v991 = vunpack.c.l.b16 %v454
      %v992 = vunpack.c.l.b16 %v455
      %v993 = vunpack.c.l.b16 %v456
      %v994 = vunpack.c.l.b16 %v457
      %v995 = vunpack.c.l.b16 %v458
      %v996 = vpack.c.b16 %v981, %v980
      %v997 = vpack.c.b16 %v983, %v982
      %v998 = vpack.c.b16 %v985, %v984
      %v999 = vpack.c.b16 %v987, %v986
      %v1000 = vpack.c.b16 %v989, %v988
      %v1001 = vpack.c.b16 %v991, %v990
      %v1002 = vpack.c.b16 %v993, %v992
      %v1003 = vpack.c.b16 %v995, %v994
      %1012 = vmatpush.bf16.msra.mxu0 %v1003
      %1013 = vmatpush.bf16.msra.mxu0 %v1002
      %1014 = vmatpush.bf16.msra.mxu0 %v1001
      %1015 = vmatpush.bf16.msra.mxu0 %v1000
      %1016 = vmatpush.bf16.msra.mxu0 %v999
      %1017 = vmatpush.bf16.msra.mxu0 %v998
      %1018 = vmatpush.bf16.msra.mxu0 %v997
      %1019 = vmatpush.bf16.msra.mxu0 %v996
      %1020 = vmatmul.bf16.gmra.mxu0 %v962
      %v1021 = vpop.f32.mrf.mxu0
      %v1022 = vadd.f32 0.0, %v1021
      %v1023 = vpop.f32.mrf.mxu0
      %v1024 = vadd.f32 0.0, %v1023
      %1025 = vdwg.mxu0
      %v1026 = vadd.f32 %v953, %v1022
      %v1027 = vadd.f32 %v954, %v1024
      %vm1033 = vcmask 1040384
      %vm1034 = vcmask 1042434
      %vm1035 = vmor %vm1033, %vm1034
      %vm1036 = vcmask 1044484
      %vm1037 = vmor %vm1035, %vm1036
      %vm1038 = vcmask 1046534
      %vm1039 = vmor %vm1037, %vm1038
      %v1040 = vrot.slane %v707, 7
      %v1041 = vrot.slane %v1040, 2
      %v1042 = vrot.slane %v711, 7
      %v1043 = vsel %vm1039, %v1041, %v1042
      %v1044 = vrot.slane %v713, 7
      %v1045 = vrot.slane %v1044, 2
      %v1046 = vrot.slane %v716, 7
      %v1047 = vsel %vm1039, %v1045, %v1046
      %v1048 = vrot.slane %v718, 7
      %v1049 = vrot.slane %v1048, 2
      %v1050 = vrot.slane %v721, 7
      %v1051 = vsel %vm1039, %v1049, %v1050
      %v1052 = vrot.slane %v723, 7
      %v1053 = vrot.slane %v1052, 2
      %v1054 = vrot.slane %v726, 7
      %v1055 = vsel %vm1039, %v1053, %v1054
      %v1056 = vrot.slane %v728, 7
      %v1057 = vrot.slane %v1056, 2
      %v1058 = vrot.slane %v731, 7
      %v1059 = vsel %vm1039, %v1057, %v1058
      %1061 = vst [vmem:[#allocation1] ss:$4 sm:$0xff] %v1043
      %s1063 = scalar_lea.vmem [#allocation1], 1
      %1064 = vst [vmem:[%s1063] ss:$4 sm:$0xff] %v1047
      %s1066 = scalar_lea.vmem [#allocation1], 2
      %1067 = vst [vmem:[%s1066] ss:$4 sm:$0xff] %v1051
      %s1069 = scalar_lea.vmem [#allocation1], 3
      %1070 = vst [vmem:[%s1069] ss:$4 sm:$0xff] %v1055
      %v1071 = vld.sshfl [vmem:[#allocation1] sm:$0xff pattern:$0x73625140]
      %v1089 = vunpack.c.l.b16 %v363
      %v1090 = vunpack.c.l.b16 %v364
      %v1091 = vunpack.c.l.b16 %v365
      %v1092 = vunpack.c.l.b16 %v366
      %v1093 = vunpack.c.l.b16 %v367
      %v1094 = vunpack.c.l.b16 %v368
      %v1095 = vunpack.c.l.b16 %v369
      %v1096 = vunpack.c.l.b16 %v370
      %v1097 = vunpack.c.l.b16 %v371
      %v1098 = vunpack.c.l.b16 %v372
      %v1099 = vunpack.c.l.b16 %v373
      %v1100 = vunpack.c.l.b16 %v374
      %v1101 = vunpack.c.l.b16 %v375
      %v1102 = vunpack.c.l.b16 %v376
      %v1103 = vunpack.c.l.b16 %v377
      %v1104 = vunpack.c.l.b16 %v378
      %v1105 = vpack.c.b16 %v1090, %v1089
      %v1106 = vpack.c.b16 %v1092, %v1091
      %v1107 = vpack.c.b16 %v1094, %v1093
      %v1108 = vpack.c.b16 %v1096, %v1095
      %v1109 = vpack.c.b16 %v1098, %v1097
      %v1110 = vpack.c.b16 %v1100, %v1099
      %v1111 = vpack.c.b16 %v1102, %v1101
      %v1112 = vpack.c.b16 %v1104, %v1103
      %1121 = vmatpush.bf16.msra.mxu0 %v1112
      %1122 = vmatpush.bf16.msra.mxu0 %v1111
      %1123 = vmatpush.bf16.msra.mxu0 %v1110
      %1124 = vmatpush.bf16.msra.mxu0 %v1109
      %1125 = vmatpush.bf16.msra.mxu0 %v1108
      %1126 = vmatpush.bf16.msra.mxu0 %v1107
      %1127 = vmatpush.bf16.msra.mxu0 %v1106
      %1128 = vmatpush.bf16.msra.mxu0 %v1105
      %1129 = vmatmul.bf16.gmra.mxu0 %v1071
      %v1130 = vpop.f32.mrf.mxu0
      %v1131 = vadd.f32 0.0, %v1130
      %v1132 = vpop.f32.mrf.mxu0
      %v1133 = vadd.f32 0.0, %v1132
      %1134 = vdwg.mxu0
      %v1135 = vadd.f32 %v1026, %v1131
      %v1136 = vadd.f32 %v1027, %v1133
      %1137 = vst [vmem:[#allocation1] ss:$4 sm:$0xff] %v1047
      %s1138 = scalar_lea.vmem [#allocation1], 1
      %1139 = vst [vmem:[%s1138] ss:$4 sm:$0xff] %v1051
      %s1140 = scalar_lea.vmem [#allocation1], 2
      %1141 = vst [vmem:[%s1140] ss:$4 sm:$0xff] %v1055
      %s1143 = scalar_lea.vmem [#allocation1], 3
      %1144 = vst [vmem:[%s1143] ss:$4 sm:$0xff] %v1059
      %v1145 = vld.sshfl [vmem:[#allocation1] sm:$0xff pattern:$0x73625140]
      %v1163 = vunpack.c.l.b16 %v411
      %v1164 = vunpack.c.l.b16 %v412
      %v1165 = vunpack.c.l.b16 %v413
      %v1166 = vunpack.c.l.b16 %v414
      %v1167 = vunpack.c.l.b16 %v415
      %v1168 = vunpack.c.l.b16 %v416
      %v1169 = vunpack.c.l.b16 %v417
      %v1170 = vunpack.c.l.b16 %v418
      %v1171 = vunpack.c.l.b16 %v419
      %v1172 = vunpack.c.l.b16 %v420
      %v1173 = vunpack.c.l.b16 %v421
      %v1174 = vunpack.c.l.b16 %v422
      %v1175 = vunpack.c.l.b16 %v423
      %v1176 = vunpack.c.l.b16 %v424
      %v1177 = vunpack.c.l.b16 %v425
      %v1178 = vunpack.c.l.b16 %v426
      %v1179 = vpack.c.b16 %v1164, %v1163
      %v1180 = vpack.c.b16 %v1166, %v1165
      %v1181 = vpack.c.b16 %v1168, %v1167
      %v1182 = vpack.c.b16 %v1170, %v1169
      %v1183 = vpack.c.b16 %v1172, %v1171
      %v1184 = vpack.c.b16 %v1174, %v1173
      %v1185 = vpack.c.b16 %v1176, %v1175
      %v1186 = vpack.c.b16 %v1178, %v1177
      %1195 = vmatpush.bf16.msra.mxu0 %v1186
      %1196 = vmatpush.bf16.msra.mxu0 %v1185
      %1197 = vmatpush.bf16.msra.mxu0 %v1184
      %1198 = vmatpush.bf16.msra.mxu0 %v1183
      %1199 = vmatpush.bf16.msra.mxu0 %v1182
      %1200 = vmatpush.bf16.msra.mxu0 %v1181
      %1201 = vmatpush.bf16.msra.mxu0 %v1180
      %1202 = vmatpush.bf16.msra.mxu0 %v1179
      %1203 = vmatmul.bf16.gmra.mxu0 %v1145
      %v1204 = vpop.f32.mrf.mxu0
      %v1205 = vadd.f32 0.0, %v1204
      %v1206 = vpop.f32.mrf.mxu0
      %v1207 = vadd.f32 0.0, %v1206
      %1208 = vdwg.mxu0
      %v1209 = vadd.f32 %v1135, %v1205
      %v1210 = vadd.f32 %v1136, %v1207
      %1211 = vst [vmem:[#allocation1] ss:$4 sm:$0xff] %v1051
      %s1212 = scalar_lea.vmem [#allocation1], 1
      %1213 = vst [vmem:[%s1212] ss:$4 sm:$0xff] %v1055
      %s1214 = scalar_lea.vmem [#allocation1], 2
      %1215 = vst [vmem:[%s1214] ss:$4 sm:$0xff] %v1059
      %s1216 = scalar_lea.vmem [#allocation1], 3
      %1217 = vst [vmem:[%s1216] ss:$4 sm:$0xff] %v1043
      %v1218 = vld.sshfl [vmem:[#allocation1] sm:$0xff pattern:$0x73625140]
      %v1236 = vunpack.c.l.b16 %v459
      %v1237 = vunpack.c.l.b16 %v460
      %v1238 = vunpack.c.l.b16 %v461
      %v1239 = vunpack.c.l.b16 %v462
      %v1240 = vunpack.c.l.b16 %v463
      %v1241 = vunpack.c.l.b16 %v464
      %v1242 = vunpack.c.l.b16 %v465
      %v1243 = vunpack.c.l.b16 %v466
      %v1244 = vunpack.c.l.b16 %v467
      %v1245 = vunpack.c.l.b16 %v468
      %v1246 = vunpack.c.l.b16 %v469
      %v1247 = vunpack.c.l.b16 %v470
      %v1248 = vunpack.c.l.b16 %v471
      %v1249 = vunpack.c.l.b16 %v472
      %v1250 = vunpack.c.l.b16 %v473
      %v1251 = vunpack.c.l.b16 %v474
      %v1252 = vpack.c.b16 %v1237, %v1236
      %v1253 = vpack.c.b16 %v1239, %v1238
      %v1254 = vpack.c.b16 %v1241, %v1240
      %v1255 = vpack.c.b16 %v1243, %v1242
      %v1256 = vpack.c.b16 %v1245, %v1244
      %v1257 = vpack.c.b16 %v1247, %v1246
      %v1258 = vpack.c.b16 %v1249, %v1248
      %v1259 = vpack.c.b16 %v1251, %v1250
      %1268 = vmatpush.bf16.msra.mxu0 %v1259
      %1269 = vmatpush.bf16.msra.mxu0 %v1258
      %1270 = vmatpush.bf16.msra.mxu0 %v1257
      %1271 = vmatpush.bf16.msra.mxu0 %v1256
      %1272 = vmatpush.bf16.msra.mxu0 %v1255
      %1273 = vmatpush.bf16.msra.mxu0 %v1254
      %1274 = vmatpush.bf16.msra.mxu0 %v1253
      %1275 = vmatpush.bf16.msra.mxu0 %v1252
      %1276 = vmatmul.bf16.gmra.mxu0 %v1218
      %v1277 = vpop.f32.mrf.mxu0
      %v1278 = vadd.f32 0.0, %v1277
      %v1279 = vpop.f32.mrf.mxu0
      %v1280 = vadd.f32 0.0, %v1279
      %1281 = vdwg.mxu0
      %v1282 = vadd.f32 %v1209, %v1278
      %v1283 = vadd.f32 %v1210, %v1280
      %v1284 = vld [vmem:[%s3] sm:$0x1]
      %v1286 = vperm.slane %v1284, 0
      %v1288 = vadd.f32 %v1282, %v1286
      %v1289 = vadd.f32 %v1283, %v1286
      %v1290 = vmax.f32 %v1288, 0.0
      %v1291 = vmax.f32 %v1289, 0.0
      %v1292 = vpack.c.bf16 %v1291, %v1290
      %v1293 = vld [vmem:[%s4] sm:$0xf]
      %v1294 = vld [vmem:[%s4 + $0x4] sm:$0xf]
      %v1295 = vld [vmem:[%s4 + $0x8] sm:$0xf]
      %v1296 = vld [vmem:[%s4 + $0xc] sm:$0xf]
      %v1297 = vld [vmem:[%s4 + $0x10] sm:$0xf]
      %v1298 = vld [vmem:[%s4 + $0x14] sm:$0xf]
      %v1299 = vld [vmem:[%s4 + $0x18] sm:$0xf]
      %v1300 = vld [vmem:[%s4 + $0x1c] sm:$0xf]
      %v1301 = vld [vmem:[%s5] sm:$0x1]
      %v1303 = vperm.slane %v1301, 0
      %v1313 = vunpack.c.l.b16 %v1293
      %v1314 = vunpack.c.l.b16 %v1294
      %v1315 = vunpack.c.l.b16 %v1295
      %v1316 = vunpack.c.l.b16 %v1296
      %v1317 = vunpack.c.l.b16 %v1297
      %v1318 = vunpack.c.l.b16 %v1298
      %v1319 = vunpack.c.l.b16 %v1299
      %v1320 = vunpack.c.l.b16 %v1300
      %v1321 = vpack.c.b16 %v1314, %v1313
      %v1322 = vpack.c.b16 %v1316, %v1315
      %v1323 = vpack.c.b16 %v1318, %v1317
      %v1324 = vpack.c.b16 %v1320, %v1319
      %vm1329 = vcmask 523264
      %v1331 = vsel %vm1329, %v1292, 0
      %1333 = vmatpush.bf16.msra.mxu0 0
      %1334 = vmatpush.bf16.msra.mxu0 0
      %1335 = vmatpush.bf16.msra.mxu0 0
      %1336 = vmatpush.bf16.msra.mxu0 0
      %1337 = vmatpush.bf16.msra.mxu0 %v1324
      %1338 = vmatpush.bf16.msra.mxu0 %v1323
      %1339 = vmatpush.bf16.msra.mxu0 %v1322
      %1340 = vmatpush.bf16.msra.mxu0 %v1321
      %1341 = vmatmul.bf16.gmra.mxu0 %v1331
      %v1342 = vpop.f32.mrf.mxu0
      %v1343 = vadd.f32 %v1303, %v1342
      %v1344 = vpop.f32.mrf.mxu0
      %v1345 = vadd.f32 %v1303, %v1344
      %1346 = vdwg.mxu0
      %1347 = vst [vmem:[%s271] sm:$0xff] %v1343
      %1348 = vst [vmem:[%s271 + $0x8] sm:$0xff] %v1345
      %p1349 = scmp.lt.s32.totalorder %s17, 1
      %s1350 = scalar_select %p1349, %s17, 1
      %s1351 = smul.addr %s1350, 2
      %s1352 = smul.addr %s1351, 8
      %s1353 = scalar_lea.vmem %s6, %s1352
      // Predicated region
      $region45: #{rpn_forward.15} parent=43 // pred_check
        %p1354 = pneg %p171
      $region46: #{rpn_forward.15} parent=43 // pred_check_branch
        %1356 = sbr.rel (%p1354) target = $region48
      $region47: #{rpn_forward.15} parent=43 // pred_region
        _
      $region48: #{rpn_forward.15} parent=43 // pred_fallthru
        _
    $region44: #{rpn_forward.15} parent=5 // pred_fallthru
      _
    %p1357 = scmp.le.s32.totalorder 2, %s12
    // Predicated region
    $region49: #{rpn_forward.15} parent=5 // pred_check
      %p1358 = pneg %p1357
    $region50: #{rpn_forward.15} parent=5 // pred_check_branch
      %1360 = sbr.rel (%p1358) target = $region52
    $region51: #{rpn_forward.15} parent=5 // pred_region
      %s1361 = ssub.s32 %s12, 2
      // Predicated region
      $region53: #{rpn_forward.15} parent=51 // pred_check
        %p1362 = pneg %p177
      $region54: #{rpn_forward.15} parent=51 // pred_check_branch
        %1364 = sbr.rel (%p1362) target = $region56
      $region55: #{rpn_forward.15} parent=51 // pred_region
        %p1365 = scmp.lt.s32.totalorder %s18, 1
        %s1366 = scalar_select %p1365, %s18, 1
        %s1367 = smul.addr %s1366, 2
        %s1368 = smul.addr %s1367, 8
        %s1369 = scalar_lea.vmem %s6, %s1368
      $region56: #{rpn_forward.15} parent=51 // pred_fallthru
        _
    $region52: #{rpn_forward.15} parent=5 // pred_fallthru
      _
  $region6: #{rpn_forward.15} parent=0 // loop_footer
    %s16 = sadd.s32 1, %s12
  $region7: #{rpn_forward.15} parent=0 // loop_footer_branch
    %11 = sbr.rel target = $region3
  $region8: #{rpn_forward.15} parent=0 // loop_exit
    _

</llo_original>
